<compile_context>
chip_gen: v5e
topology: v5e:2x2
jax: 0.10.0
libtpu: 0.0.40
codegen_flags: <defaults>
</compile_context>

<pallas_src>
import functools

import jax
import jax.numpy as jnp
from jax.experimental import pallas as pl
from jax.experimental.pallas import tpu as pltpu


def _round_up(x, m):
    return ((x + m - 1) // m) * m


def _tpu_vmem_capacity_bytes():
    """Physical VMEM per TensorCore, with a conservative (v7x-sized) fallback."""
    try:
        cap = getattr(pltpu.get_tpu_info(), "vmem_capacity_bytes", None)
        if cap:
            return int(cap)
    except Exception:
        pass
    return 64 * 1024 * 1024


_VMEM_CAP = _tpu_vmem_capacity_bytes()
# Never the full physical VMEM: leave headroom for double-buffering and the
# compiler's (t, t) f32 internal scratch.  ~96 MiB on v5e/v6e, ~48 MiB on v7x.
_ATTN_VMEM_LIMIT = int(_VMEM_CAP * 3 // 4)
# Generation-keyed attention tile: 1024 on 128-MiB parts, 512 on 64-MiB parts.
_DEFAULT_ATTN_TILE = 1024 if _VMEM_CAP >= (96 << 20) else 512


# ---------------------------------------------------------------------------
# Kernel 1: two-layer MLP  (NodeEncoder, EdgeEncoder, ScorePredictor)
# ---------------------------------------------------------------------------
def _mlp_kernel(x_ref, w1_ref, b1_ref, w2_ref, b2_ref, o_ref):
    x = x_ref[...].astype(jnp.bfloat16)
    w1 = w1_ref[...].astype(jnp.bfloat16)
    h = jnp.dot(x, w1, preferred_element_type=jnp.float32) + b1_ref[...]
    h = jnp.maximum(h, 0.0)                                  # ReLU
    o_ref[...] = (
        jnp.dot(h.astype(jnp.bfloat16), w2_ref[...].astype(jnp.bfloat16),
                preferred_element_type=jnp.float32)
        + b2_ref[...]
    )


def mlp2(x, w1, b1, w2, b2, tile_rows=2048):
    rows, fin = x.shape
    hid = w1.shape[1]
    out = w2.shape[1]
    tile_rows = min(tile_rows, _round_up(rows, 8))
    rows_p = _round_up(rows, tile_rows)
    if rows_p != rows:
        x = jnp.pad(x, ((0, rows_p - rows), (0, 0)))
    grid = (rows_p // tile_rows,)
    # TODO(synk): when out == 1 (score predictor) the store is lane-sparse; a
    # lane-major (1, rows) output layout would avoid masked vst at very large E.
    y = pl.pallas_call(
        _mlp_kernel,
        out_shape=jax.ShapeDtypeStruct((rows_p, out), jnp.float32),
        grid_spec=pltpu.PrefetchScalarGridSpec(
            num_scalar_prefetch=0,
            grid=grid,
            in_specs=[
                pl.BlockSpec((tile_rows, fin), lambda i: (i, 0)),
                pl.BlockSpec((fin, hid), lambda i: (0, 0)),
                pl.BlockSpec((1, hid), lambda i: (0, 0)),
                pl.BlockSpec((hid, out), lambda i: (0, 0)),
                pl.BlockSpec((1, out), lambda i: (0, 0)),
            ],
            out_specs=pl.BlockSpec((tile_rows, out), lambda i: (i, 0)),
        ),
        compiler_params=pltpu.CompilerParams(dimension_semantics=("parallel",)),
    )(x, w1, b1, w2, b2)
    return y if rows_p == rows else y[:rows]


# ---------------------------------------------------------------------------
# Kernel 2a: fused GAT projection (all heads + attention terms in ONE matmul)
#   w_ext = [W_0 | W_1 | W_2 | W_h a_l_h cols | W_h a_r_h cols]   (F, H*D + 2H)
#   z_h = x @ W_h ;  el_h = x @ (W_h a_l_h) ;  er_h = x @ (W_h a_r_h)
# ---------------------------------------------------------------------------
def _gat_proj_kernel(x_ref, w_ref, z_ref, el_ref, er_ref, *, heads, d):
    x = x_ref[...].astype(jnp.bfloat16)
    w = w_ref[...].astype(jnp.bfloat16)                              # (F, H*D+2H)
    zf = jnp.dot(x, w, preferred_element_type=jnp.float32)           # single MXU matmul
    for h in range(heads):
        z_ref[h] = zf[:, h * d:(h + 1) * d].astype(jnp.bfloat16)
    el_ref[...] = zf[:, heads * d:heads * d + heads]                 # src attn terms
    er_ref[...] = zf[:, heads * d + heads:heads * d + 2 * heads]     # dst attn terms


# ---------------------------------------------------------------------------
# Kernel 2b: fused multi-head GAT attention, flash-style over (dst, src) tiles
# with block-sparse tile skipping via a scalar-prefetched occupancy mask.
#   logits[dst, src] = LeakyReLU_{0.2}(er[dst] + el[src]) masked by adj (int8);
#   online softmax over src; output = mean over heads + mean head bias.
# ---------------------------------------------------------------------------
def _gat_attn_kernel(mask_ref, er_ref, elt_ref, z_ref, adj_ref, bm_ref, o_ref,
                     m_scr, l_scr, acc_scr, *, heads, d, t, n_src_tiles, z_resident):
    i = pl.program_id(0)
    j = pl.program_id(1)

    @pl.when(j == 0)
    def _():
        m_scr[...] = jnp.full_like(m_scr, -1e9)
        l_scr[...] = jnp.zeros_like(l_scr)
        acc_scr[...] = jnp.zeros_like(acc_scr)

    # Block-sparse skip: an all-zero adjacency tile contributes nothing (its masked
    # probs underflow to 0 and the running max is unchanged), so the whole per-head
    # body is skipped.  The adj tile is still DMA'd; a data-dependent src index_map
    # (TODO(synk)) could skip that stream too.
    @pl.when(mask_ref[i * n_src_tiles + j] > 0)
    def _():
        adj_ok = adj_ref[...] != 0                                   # (Td, Ts), 1 pass
        if z_resident:
            src0 = pl.multiple_of(j * t, 8)
        for h in range(heads):
            lg = er_ref[:, h:h + 1] + elt_ref[h:h + 1, :]            # (Td, Ts)
            lg = jnp.where(lg > 0, lg, 0.2 * lg)                     # LeakyReLU(0.2)
            s = jnp.where(adj_ok, lg, -1e9)                          # single select
            m_old = m_scr[:, h:h + 1]
            m_new = jnp.maximum(m_old, jnp.max(s, axis=-1, keepdims=True))
            corr = jnp.exp(m_old - m_new)
            # INVARIANT: the "no * adj after exp" shortcut relies on (a) every real
            # row having a self-loop and (b) the -1e9 mask penalty, so masked
            # exp(-1e9 - m_new) == 0 exactly once a real row max exists and earlier
            # spurious mass is killed by corr underflowing to 0.  Do not weaken the
            # penalty or drop self-loops without reinstating an explicit mask mult.
            # TODO(synk): on v6e/v7x compute the exponent in bf16 (2x EUP rate).
            p = jnp.exp(s - m_new)                                   # (Td, Ts) f32
            l_scr[:, h:h + 1] = corr * l_scr[:, h:h + 1] + jnp.sum(
                p, axis=-1, keepdims=True)
            z_h = z_ref[h, pl.ds(src0, t), :] if z_resident else z_ref[h]
            acc_scr[h] = corr * acc_scr[h] + jnp.dot(
                p.astype(jnp.bfloat16), z_h, preferred_element_type=jnp.float32)
            m_scr[:, h:h + 1] = m_new

    @pl.when(j == pl.num_programs(1) - 1)
    def _():
        out = jnp.zeros((m_scr.shape[0], d), jnp.float32)
        for h in range(heads):
            inv_l = pl.reciprocal(l_scr[:, h:h + 1], approx=True)    # EUP, ~free
            out = out + acc_scr[h] * inv_l
        o_ref[...] = out * (1.0 / heads) + bm_ref[...]               # head mean + bias


def _prepare_adj(adj_i8, tile_nodes):
    """Pad adjacency to a tile multiple and build the per-tile occupancy mask
    (done ONCE per forward; shared by every GAT layer)."""
    n = adj_i8.shape[0]
    t = min(tile_nodes, _round_up(n, 8))
    n_p = _round_up(n, t)
    if n_p != n:
        adj_i8 = jnp.pad(adj_i8, ((0, n_p - n), (0, n_p - n)))
    nt = n_p // t
    tile_mask = jnp.any(adj_i8.reshape(nt, t, nt, t) != 0, axis=(1, 3))
    return adj_i8, tile_mask.astype(jnp.int32).reshape(-1), t


def gat_layer(x, adj_p, tile_mask, t, w, a_l, a_r, b):
    heads, fin, d = w.shape
    n = x.shape[0]
    n_p = adj_p.shape[0]
    nt = n_p // t
    if n_p != n:
        # zero padding (not in-place garbage) keeps padded z rows finite so that
        # p == 0 masked contributions stay exactly 0 in the MXU accumulation.
        x = jnp.pad(x, ((0, n_p - n), (0, 0)))

    # pack all heads + attention-term columns into one (F, H*D + 2H) weight
    w_fused = jnp.transpose(w, (1, 0, 2)).reshape(fin, heads * d)
    v_l = jnp.einsum("hfd,hd->fh", w, a_l)                           # (F, H)
    v_r = jnp.einsum("hfd,hd->fh", w, a_r)                           # (F, H)
    w_ext = jnp.concatenate([w_fused, v_l, v_r], axis=1)             # (F, H*D + 2H)
    bmean = jnp.mean(b, axis=0, keepdims=True)                       # (1, D)

    z, el, er = pl.pallas_call(
        functools.partial(_gat_proj_kernel, heads=heads, d=d),
        out_shape=(
            jax.ShapeDtypeStruct((heads, n_p, d), jnp.bfloat16),     # z (bf16)
            jax.ShapeDtypeStruct((n_p, heads), jnp.float32),         # el (src term)
            jax.ShapeDtypeStruct((n_p, heads), jnp.float32),         # er (dst term)
        ),
        grid_spec=pltpu.PrefetchScalarGridSpec(
            num_scalar_prefetch=0,
            grid=(nt,),
            in_specs=[
                pl.BlockSpec((t, fin), lambda i: (i, 0)),
                pl.BlockSpec((fin, heads * d + 2 * heads), lambda i: (0, 0)),
            ],
            out_specs=[
                pl.BlockSpec((heads, t, d), lambda i: (0, i, 0)),
                pl.BlockSpec((t, heads), lambda i: (i, 0)),
                pl.BlockSpec((t, heads), lambda i: (i, 0)),
            ],
        ),
        compiler_params=pltpu.CompilerParams(dimension_semantics=("parallel",)),
    )(x, w_ext)

    el_t = jnp.transpose(el)                                         # (H, n_p), tiny

    # Pin z resident in VMEM across all dst tiles when it fits; else stream per
    # src tile (resident path removes the (N/t)x per-layer re-DMA of z).
    z_bytes = heads * n_p * d * 2
    z_resident = z_bytes <= min(_ATTN_VMEM_LIMIT // 4, 16 * 1024 * 1024)
    if z_resident:
        z_spec = pl.BlockSpec((heads, n_p, d), lambda i, j, m: (0, 0, 0))
    else:
        z_spec = pl.BlockSpec((heads, t, d), lambda i, j, m: (0, j, 0))

    out = pl.pallas_call(
        functools.partial(_gat_attn_kernel, heads=heads, d=d, t=t,
                          n_src_tiles=nt, z_resident=z_resident),
        out_shape=jax.ShapeDtypeStruct((n_p, d), jnp.float32),
        grid_spec=pltpu.PrefetchScalarGridSpec(
            num_scalar_prefetch=1,                                   # tile_mask -> SMEM
            grid=(nt, nt),                                           # (dst, src) tiles
            in_specs=[
                pl.BlockSpec((t, heads), lambda i, j, m: (i, 0)),    # er  (dst rows)
                pl.BlockSpec((heads, t), lambda i, j, m: (0, j)),    # el^T (src cols)
                z_spec,                                              # z   (src rows)
                pl.BlockSpec((t, t), lambda i, j, m: (i, j)),        # adj int8 tile
                pl.BlockSpec((1, d), lambda i, j, m: (0, 0)),        # mean head bias
            ],
            out_specs=pl.BlockSpec((t, d), lambda i, j, m: (i, 0)),
            scratch_shapes=[
                pltpu.VMEM((t, heads), jnp.float32),                 # running max
                pltpu.VMEM((t, heads), jnp.float32),                 # running denom
                pltpu.VMEM((heads, t, d), jnp.float32),              # running numerator
            ],
        ),
        # NOTE(v7x): the dst axis is the "parallel" axis feeding the 2nd TensorCore;
        # with the 512 tile default there, keep graphs with n_p//t >= 2 when possible.
        compiler_params=pltpu.CompilerParams(
            dimension_semantics=("parallel", "arbitrary"),
            vmem_limit_bytes=_ATTN_VMEM_LIMIT,
        ),
    )(tile_mask, er, el_t, z, adj_p, bmean)

    return out if n_p == n else out[:n]


# ---------------------------------------------------------------------------
# Parameter init (deterministic)
# ---------------------------------------------------------------------------
def _linear(key, fin, fout):
    kw, kb = jax.random.split(key)
    scale = 1.0 / jnp.sqrt(jnp.float32(fin))
    w = jax.random.normal(kw, (fin, fout), jnp.float32) * scale
    b = jax.random.normal(kb, (1, fout), jnp.float32) * 0.01
    return w, b


def init_params(key, node_features, edge_features, hidden_ne, hidden,
                num_layers, heads, hidden_edge_scores):
    keys = jax.random.split(key, 4 + num_layers)
    w1, b1 = _linear(keys[0], node_features, hidden_ne)
    w2, b2 = _linear(keys[1], hidden_ne, hidden)
    node_enc = (w1, b1, w2, b2)
    w1, b1 = _linear(keys[2], edge_features, hidden_ne)
    w2, b2 = _linear(keys[3], hidden_ne, hidden)
    edge_enc = (w1, b1, w2, b2)

    gat_layers = []
    for l in range(num_layers):
        kw, ka, kb = jax.random.split(keys[4 + l], 3)
        scale = 1.0 / jnp.sqrt(jnp.float32(hidden))
        w = jax.random.normal(kw, (heads, hidden, hidden), jnp.float32) * scale
        a = jax.random.normal(ka, (2, heads, hidden), jnp.float32) * scale
        b = jax.random.normal(kb, (heads, hidden), jnp.float32) * 0.01
        gat_layers.append({"w": w, "a_l": a[0], "a_r": a[1], "b": b})

    kp = jax.random.fold_in(key, 12345)
    kp1, kp2 = jax.random.split(kp)
    pw1, pb1 = _linear(kp1, 3 * hidden, hidden_edge_scores)
    pw2, pb2 = _linear(kp2, hidden_edge_scores, 1)
    pred = (pw1, pb1, pw2, pb2)

    return {"node_enc": node_enc, "edge_enc": edge_enc,
            "gat_layers": gat_layers, "pred": pred}


# ---------------------------------------------------------------------------
# Forward pass (glue in plain JAX, hot paths in Pallas)
# ---------------------------------------------------------------------------
def gat_model_forward(params, x, e, src, dst, num_nodes):
    # encoders
    x = mlp2(x, *params["node_enc"])
    e = mlp2(e, *params["edge_enc"])

    # directed=True -> add_self_loop(graph); adj[dst, src] = 1 ; stored as int8
    # TODO(synk): bit-pack adjacency (8 nodes/byte) if the adj stream is the
    # HBM roofline on v5e at very large N.
    adj = jnp.zeros((num_nodes, num_nodes), jnp.int8).at[dst, src].set(1)
    adj = jnp.maximum(adj, jnp.eye(num_nodes, dtype=jnp.int8))

    # adjacency padding + per-(dst,src)-tile occupancy mask built ONCE for all layers
    adj_p, tile_mask, t = _prepare_adj(adj, _DEFAULT_ATTN_TILE)

    # GAT processor (edge features pass through, see TODO at top)
    for lp in params["gat_layers"]:
        x = gat_layer(x, adj_p, tile_mask, t, lp["w"], lp["a_l"], lp["a_r"], lp["b"])

    # ScorePredictor over the ORIGINAL graph edges: MLP([x_src, x_dst, e])
    # TODO(synk): fuse the src/dst row gather + concat into the predictor kernel
    # (scalar-prefetch gather) and emit a lane-major (1, E) score block to avoid
    # the [E, 3*hidden] HBM intermediate and the masked out==1 stores.
    feats = jnp.concatenate([x[src], x[dst], e], axis=1)
    scores = mlp2(feats, *params["pred"])
    return scores


# pure-JAX reference (mirrors the kernel math, incl. bf16 matmul operands and the
# fused el/er-from-(W a) projection)
def _reference(params, x, e, src, dst, num_nodes):
    bf16 = jnp.bfloat16

    def mm(a, b):
        return jnp.dot(a.astype(bf16), b.astype(bf16),
                       preferred_element_type=jnp.float32)

    def mlp(x, w1, b1, w2, b2):
        h = jnp.maximum(mm(x, w1) + b1, 0.0)
        return mm(h, w2) + b2

    x = mlp(x, *params["node_enc"])
    e = mlp(e, *params["edge_enc"])
    adj = jnp.zeros((num_nodes, num_nodes), jnp.float32).at[dst, src].set(1.0)
    adj = jnp.maximum(adj, jnp.eye(num_nodes, dtype=jnp.float32))
    for lp in params["gat_layers"]:
        outs = []
        for h in range(lp["w"].shape[0]):
            z = mm(x, lp["w"][h])
            v_l = lp["w"][h] @ lp["a_l"][h]                      # (hidden,)
            v_r = lp["w"][h] @ lp["a_r"][h]
            el = mm(x, v_l[:, None])                             # (N, 1)
            er = mm(x, v_r[:, None])                             # (N, 1)
            lg = er + el.T
            lg = jnp.where(lg > 0, lg, 0.2 * lg)
            s = jnp.where(adj > 0, lg, -1e9)
            p = jnp.exp(s - jnp.max(s, -1, keepdims=True))
            acc = jnp.dot(p.astype(bf16), z.astype(bf16),
                          preferred_element_type=jnp.float32)
            outs.append(acc / jnp.sum(p, -1, keepdims=True) + lp["b"][h])
        x = jnp.mean(jnp.stack(outs, 0), 0)
    feats = jnp.concatenate([x[src], x[dst], e], axis=1)
    return mlp(feats, *params["pred"])


if __name__ == "__main__":
    key = jax.random.PRNGKey(0)

    # small, forward-consistent shapes
    NUM_NODES = 64
    NUM_EDGES = 128
    NODE_FEATURES = 8
    EDGE_FEATURES = 4
    HIDDEN_NE = 16
    HIDDEN = 32
    NUM_LAYERS = 2
    HEADS = 3
    HIDDEN_EDGE_SCORES = 16

    kx, ke, ks, kd, kp = jax.random.split(key, 5)
    x = jax.random.normal(kx, (NUM_NODES, NODE_FEATURES), jnp.float32)
    e = jax.random.normal(ke, (NUM_EDGES, EDGE_FEATURES), jnp.float32)
    src = jax.random.randint(ks, (NUM_EDGES,), 0, NUM_NODES)
    dst = jax.random.randint(kd, (NUM_EDGES,), 0, NUM_NODES)

    params = init_params(kp, NODE_FEATURES, EDGE_FEATURES, HIDDEN_NE, HIDDEN,
                         NUM_LAYERS, HEADS, HIDDEN_EDGE_SCORES)

    fwd = jax.jit(functools.partial(gat_model_forward, num_nodes=NUM_NODES))
    scores = fwd(params, x, e, src, dst)
    scores = jax.block_until_ready(scores)
    assert scores.shape == (NUM_EDGES, 1)

    ref = _reference(params, x, e, src, dst, NUM_NODES)
    assert jnp.allclose(scores, ref, rtol=1e-2, atol=1e-2), (
        "mismatch vs reference: max abs diff = %f" % float(jnp.max(jnp.abs(scores - ref))))

    print("KERNEL_OK")
</pallas_src>

<mosaic_0001>
module attributes {stable_mosaic.version = 11 : i64} {
  func.func @_gat_proj_kernel(%arg0: i32, %arg1: memref<64x32xf32, #tpu.memory_space<vmem>>, %arg2: memref<32x102xf32, #tpu.memory_space<vmem>>, %arg3: memref<3x64x32xbf16, #tpu.memory_space<vmem>>, %arg4: memref<64x3xf32, #tpu.memory_space<vmem>>, %arg5: memref<64x3xf32, #tpu.memory_space<vmem>>) attributes {dimension_semantics = [#tpu.dimension_semantics<parallel>], iteration_bounds = array<i64: 1>, scalar_prefetch = 0 : i64, scratch_operands = 0 : i64, tpu.core_type = #tpu.core_type<tc>, window_params = [{transform_indices = @transform_0, window_bounds = array<i64: 64, 32>}, {pipeline_mode = #tpu.pipeline_mode<synchronous>, transform_indices = @transform_1, window_bounds = array<i64: 32, 102>}, {transform_indices = @transform_2, window_bounds = array<i64: 3, 64, 32>}, {transform_indices = @transform_3, window_bounds = array<i64: 64, 3>}, {transform_indices = @transform_4, window_bounds = array<i64: 64, 3>}]} {
    %c0 = arith.constant 0 : index
    %c0_0 = arith.constant 0 : index
    %0 = vector.load %arg1[%c0, %c0_0] : memref<64x32xf32, #tpu.memory_space<vmem>>, vector<64x32xf32>
    %1 = arith.truncf %0 : vector<64x32xf32> to vector<64x32xbf16>
    %c0_1 = arith.constant 0 : index
    %c0_2 = arith.constant 0 : index
    %2 = vector.load %arg2[%c0_1, %c0_2] : memref<32x102xf32, #tpu.memory_space<vmem>>, vector<32x102xf32>
    %3 = arith.truncf %2 : vector<32x102xf32> to vector<32x102xbf16>
    %cst = arith.constant dense<0.000000e+00> : vector<64x102xf32>
    %4 = tpu.matmul %1, %3, %cst {dimension_numbers = #tpu.dot_dimension_numbers<[1], [0], [0], [1], [0, 0, 1, 1], [], []>} : vector<64x32xbf16>, vector<32x102xbf16>, vector<64x102xf32> -> vector<64x102xf32>
    %5 = vector.extract_strided_slice %4 {offsets = [0, 0], sizes = [64, 32], strides = [1, 1]} : vector<64x102xf32> to vector<64x32xf32>
    %6 = arith.truncf %5 : vector<64x32xf32> to vector<64x32xbf16>
    %c0_3 = arith.constant 0 : index
    %c0_4 = arith.constant 0 : index
    %c0_5 = arith.constant 0 : index
    %7 = vector.load %arg3[%c0_3, %c0_4, %c0_5] : memref<3x64x32xbf16, #tpu.memory_space<vmem>>, vector<1x64x32xbf16>
    %8 = vector.shape_cast %7 : vector<1x64x32xbf16> to vector<64x32xbf16>
    %9 = vector.shape_cast %6 : vector<64x32xbf16> to vector<1x64x32xbf16>
    tpu.vector_store %arg3[%c0_3, %c0_4, %c0_5], %9 {strides = array<i32>} : memref<3x64x32xbf16, #tpu.memory_space<vmem>>, vector<1x64x32xbf16>,
    %10 = vector.extract_strided_slice %4 {offsets = [0, 32], sizes = [64, 32], strides = [1, 1]} : vector<64x102xf32> to vector<64x32xf32>
    %11 = arith.truncf %10 : vector<64x32xf32> to vector<64x32xbf16>
    %c1 = arith.constant 1 : index
    %c0_6 = arith.constant 0 : index
    %c0_7 = arith.constant 0 : index
    %12 = vector.load %arg3[%c1, %c0_6, %c0_7] : memref<3x64x32xbf16, #tpu.memory_space<vmem>>, vector<1x64x32xbf16>
    %13 = vector.shape_cast %12 : vector<1x64x32xbf16> to vector<64x32xbf16>
    %14 = vector.shape_cast %11 : vector<64x32xbf16> to vector<1x64x32xbf16>
    tpu.vector_store %arg3[%c1, %c0_6, %c0_7], %14 {strides = array<i32>} : memref<3x64x32xbf16, #tpu.memory_space<vmem>>, vector<1x64x32xbf16>,
    %15 = vector.extract_strided_slice %4 {offsets = [0, 64], sizes = [64, 32], strides = [1, 1]} : vector<64x102xf32> to vector<64x32xf32>
    %16 = arith.truncf %15 : vector<64x32xf32> to vector<64x32xbf16>
    %c2 = arith.constant 2 : index
    %c0_8 = arith.constant 0 : index
    %c0_9 = arith.constant 0 : index
    %17 = vector.load %arg3[%c2, %c0_8, %c0_9] : memref<3x64x32xbf16, #tpu.memory_space<vmem>>, vector<1x64x32xbf16>
    %18 = vector.shape_cast %17 : vector<1x64x32xbf16> to vector<64x32xbf16>
    %19 = vector.shape_cast %16 : vector<64x32xbf16> to vector<1x64x32xbf16>
    tpu.vector_store %arg3[%c2, %c0_8, %c0_9], %19 {strides = array<i32>} : memref<3x64x32xbf16, #tpu.memory_space<vmem>>, vector<1x64x32xbf16>,
    %20 = vector.extract_strided_slice %4 {offsets = [0, 96], sizes = [64, 3], strides = [1, 1]} : vector<64x102xf32> to vector<64x3xf32>
    %c0_10 = arith.constant 0 : index
    %c0_11 = arith.constant 0 : index
    %21 = vector.load %arg4[%c0_10, %c0_11] : memref<64x3xf32, #tpu.memory_space<vmem>>, vector<64x3xf32>
    tpu.vector_store %arg4[%c0_10, %c0_11], %20 {strides = array<i32>} : memref<64x3xf32, #tpu.memory_space<vmem>>, vector<64x3xf32>,
    %22 = vector.extract_strided_slice %4 {offsets = [0, 99], sizes = [64, 3], strides = [1, 1]} : vector<64x102xf32> to vector<64x3xf32>
    %c0_12 = arith.constant 0 : index
    %c0_13 = arith.constant 0 : index
    %23 = vector.load %arg5[%c0_12, %c0_13] : memref<64x3xf32, #tpu.memory_space<vmem>>, vector<64x3xf32>
    tpu.vector_store %arg5[%c0_12, %c0_13], %22 {strides = array<i32>} : memref<64x3xf32, #tpu.memory_space<vmem>>, vector<64x3xf32>,
    return
  }
  func.func @transform_0(%arg0: i32) -> (i32, i32) {
    %c0_i32 = arith.constant 0 : i32
    %c0_i32_0 = arith.constant 0 : i32
    return %arg0, %c0_i32 : i32, i32
  }
  func.func @transform_1(%arg0: i32) -> (i32, i32) {
    %c0_i32 = arith.constant 0 : i32
    %c0_i32_0 = arith.constant 0 : i32
    %c0_i32_1 = arith.constant 0 : i32
    return %c0_i32, %c0_i32_0 : i32, i32
  }
  func.func @transform_2(%arg0: i32) -> (i32, i32, i32) {
    %c0_i32 = arith.constant 0 : i32
    %c0_i32_0 = arith.constant 0 : i32
    %c0_i32_1 = arith.constant 0 : i32
    return %c0_i32, %arg0, %c0_i32_0 : i32, i32, i32
  }
  func.func @transform_3(%arg0: i32) -> (i32, i32) {
    %c0_i32 = arith.constant 0 : i32
    %c0_i32_0 = arith.constant 0 : i32
    return %arg0, %c0_i32 : i32, i32
  }
  func.func @transform_4(%arg0: i32) -> (i32, i32) {
    %c0_i32 = arith.constant 0 : i32
    %c0_i32_0 = arith.constant 0 : i32
    return %arg0, %c0_i32 : i32, i32
  }
}

module attributes {stable_mosaic.version = 11 : i64} {
  func.func @_mlp_kernel(%arg0: i32, %arg1: memref<64x8xf32, #tpu.memory_space<vmem>>, %arg2: memref<8x16xf32, #tpu.memory_space<vmem>>, %arg3: memref<1x16xf32, #tpu.memory_space<vmem>>, %arg4: memref<16x32xf32, #tpu.memory_space<vmem>>, %arg5: memref<1x32xf32, #tpu.memory_space<vmem>>, %arg6: memref<64x32xf32, #tpu.memory_space<vmem>>) attributes {dimension_semantics = [#tpu.dimension_semantics<parallel>], iteration_bounds = array<i64: 1>, scalar_prefetch = 0 : i64, scratch_operands = 0 : i64, tpu.core_type = #tpu.core_type<tc>, window_params = [{transform_indices = @transform_0, window_bounds = array<i64: 64, 8>}, {pipeline_mode = #tpu.pipeline_mode<synchronous>, transform_indices = @transform_1, window_bounds = array<i64: 8, 16>}, {pipeline_mode = #tpu.pipeline_mode<synchronous>, transform_indices = @transform_2, window_bounds = array<i64: 1, 16>}, {pipeline_mode = #tpu.pipeline_mode<synchronous>, transform_indices = @transform_3, window_bounds = array<i64: 16, 32>}, {pipeline_mode = #tpu.pipeline_mode<synchronous>, transform_indices = @transform_4, window_bounds = array<i64: 1, 32>}, {transform_indices = @transform_5, window_bounds = array<i64: 64, 32>}]} {
    %c0 = arith.constant 0 : index
    %c0_0 = arith.constant 0 : index
    %0 = vector.load %arg1[%c0, %c0_0] : memref<64x8xf32, #tpu.memory_space<vmem>>, vector<64x8xf32>
    %1 = arith.truncf %0 : vector<64x8xf32> to vector<64x8xbf16>
    %c0_1 = arith.constant 0 : index
    %c0_2 = arith.constant 0 : index
    %2 = vector.load %arg2[%c0_1, %c0_2] : memref<8x16xf32, #tpu.memory_space<vmem>>, vector<8x16xf32>
    %3 = arith.truncf %2 : vector<8x16xf32> to vector<8x16xbf16>
    %cst = arith.constant dense<0.000000e+00> : vector<64x16xf32>
    %4 = tpu.matmul %1, %3, %cst {dimension_numbers = #tpu.dot_dimension_numbers<[1], [0], [0], [1], [0, 0, 1, 1], [], []>} : vector<64x8xbf16>, vector<8x16xbf16>, vector<64x16xf32> -> vector<64x16xf32>
    %c0_3 = arith.constant 0 : index
    %c0_4 = arith.constant 0 : index
    %5 = vector.load %arg3[%c0_3, %c0_4] : memref<1x16xf32, #tpu.memory_space<vmem>>, vector<1x16xf32>
    %6 = vector.broadcast %5 : vector<1x16xf32> to vector<64x16xf32>
    %7 = arith.addf %4, %6 : vector<64x16xf32>
    %cst_5 = arith.constant 0.000000e+00 : f32
    %8 = vector.broadcast %cst_5 : f32 to vector<64x16xf32>
    %9 = arith.maximumf %7, %8 : vector<64x16xf32>
    %10 = arith.truncf %9 : vector<64x16xf32> to vector<64x16xbf16>
    %c0_6 = arith.constant 0 : index
    %c0_7 = arith.constant 0 : index
    %11 = vector.load %arg4[%c0_6, %c0_7] : memref<16x32xf32, #tpu.memory_space<vmem>>, vector<16x32xf32>
    %12 = arith.truncf %11 : vector<16x32xf32> to vector<16x32xbf16>
    %cst_8 = arith.constant dense<0.000000e+00> : vector<64x32xf32>
    %13 = tpu.matmul %10, %12, %cst_8 {dimension_numbers = #tpu.dot_dimension_numbers<[1], [0], [0], [1], [0, 0, 1, 1], [], []>} : vector<64x16xbf16>, vector<16x32xbf16>, vector<64x32xf32> -> vector<64x32xf32>
    %c0_9 = arith.constant 0 : index
    %c0_10 = arith.constant 0 : index
    %14 = vector.load %arg5[%c0_9, %c0_10] : memref<1x32xf32, #tpu.memory_space<vmem>>, vector<1x32xf32>
    %15 = vector.broadcast %14 : vector<1x32xf32> to vector<64x32xf32>
    %16 = arith.addf %13, %15 : vector<64x32xf32>
    %c0_11 = arith.constant 0 : index
    %c0_12 = arith.constant 0 : index
    %17 = vector.load %arg6[%c0_11, %c0_12] : memref<64x32xf32, #tpu.memory_space<vmem>>, vector<64x32xf32>
    tpu.vector_store %arg6[%c0_11, %c0_12], %16 {strides = array<i32>} : memref<64x32xf32, #tpu.memory_space<vmem>>, vector<64x32xf32>,
    return
  }
  func.func @transform_0(%arg0: i32) -> (i32, i32) {
    %c0_i32 = arith.constant 0 : i32
    %c0_i32_0 = arith.constant 0 : i32
    return %arg0, %c0_i32 : i32, i32
  }
  func.func @transform_1(%arg0: i32) -> (i32, i32) {
    %c0_i32 = arith.constant 0 : i32
    %c0_i32_0 = arith.constant 0 : i32
    %c0_i32_1 = arith.constant 0 : i32
    return %c0_i32, %c0_i32_0 : i32, i32
  }
  func.func @transform_2(%arg0: i32) -> (i32, i32) {
    %c0_i32 = arith.constant 0 : i32
    %c0_i32_0 = arith.constant 0 : i32
    %c0_i32_1 = arith.constant 0 : i32
    return %c0_i32, %c0_i32_0 : i32, i32
  }
  func.func @transform_3(%arg0: i32) -> (i32, i32) {
    %c0_i32 = arith.constant 0 : i32
    %c0_i32_0 = arith.constant 0 : i32
    %c0_i32_1 = arith.constant 0 : i32
    return %c0_i32, %c0_i32_0 : i32, i32
  }
  func.func @transform_4(%arg0: i32) -> (i32, i32) {
    %c0_i32 = arith.constant 0 : i32
    %c0_i32_0 = arith.constant 0 : i32
    %c0_i32_1 = arith.constant 0 : i32
    return %c0_i32, %c0_i32_0 : i32, i32
  }
  func.func @transform_5(%arg0: i32) -> (i32, i32) {
    %c0_i32 = arith.constant 0 : i32
    %c0_i32_0 = arith.constant 0 : i32
    return %arg0, %c0_i32 : i32, i32
  }
}

module attributes {stable_mosaic.version = 11 : i64} {
  func.func @_gat_attn_kernel(%arg0: i32, %arg1: i32, %arg2: memref<1xi32, #tpu.memory_space<smem>>, %arg3: memref<64x3xf32, #tpu.memory_space<vmem>>, %arg4: memref<3x64xf32, #tpu.memory_space<vmem>>, %arg5: memref<3x64x32xbf16, #tpu.memory_space<vmem>>, %arg6: memref<64x64xi8, #tpu.memory_space<vmem>>, %arg7: memref<1x32xf32, #tpu.memory_space<vmem>>, %arg8: memref<64x32xf32, #tpu.memory_space<vmem>>, %arg9: memref<64x3xf32, #tpu.memory_space<vmem>>, %arg10: memref<64x3xf32, #tpu.memory_space<vmem>>, %arg11: memref<3x64x32xf32, #tpu.memory_space<vmem>>) attributes {dimension_semantics = [#tpu.dimension_semantics<parallel>, #tpu.dimension_semantics<arbitrary>], iteration_bounds = array<i64: 1, 1>, scalar_prefetch = 1 : i64, scratch_operands = 3 : i64, tpu.core_type = #tpu.core_type<tc>, window_params = [{transform_indices = @transform_0, window_bounds = array<i64: 64, 3>}, {transform_indices = @transform_1, window_bounds = array<i64: 3, 64>}, {pipeline_mode = #tpu.pipeline_mode<synchronous>, transform_indices = @transform_2, window_bounds = array<i64: 3, 64, 32>}, {transform_indices = @transform_3, window_bounds = array<i64: 64, 64>}, {pipeline_mode = #tpu.pipeline_mode<synchronous>, transform_indices = @transform_4, window_bounds = array<i64: 1, 32>}, {transform_indices = @transform_5, window_bounds = array<i64: 64, 32>}]} {
    %c0_i32 = arith.constant 0 : i32
    %0 = arith.cmpi eq, %arg1, %c0_i32 : i32
    %1 = arith.extui %0 : i1 to i32
    %c0_i32_0 = arith.constant 0 : i32
    %2 = arith.cmpi ne, %1, %c0_i32_0 : i32
    scf.if %2 {
      %cst = arith.constant -1.000000e+09 : f32
      %13 = vector.broadcast %cst : f32 to vector<64x3xf32>
      %c0 = arith.constant 0 : index
      %c0_5 = arith.constant 0 : index
      %14 = vector.load %arg9[%c0, %c0_5] : memref<64x3xf32, #tpu.memory_space<vmem>>, vector<64x3xf32>
      tpu.vector_store %arg9[%c0, %c0_5], %13 {strides = array<i32>} : memref<64x3xf32, #tpu.memory_space<vmem>>, vector<64x3xf32>,
      %cst_6 = arith.constant 0.000000e+00 : f32
      %15 = vector.broadcast %cst_6 : f32 to vector<64x3xf32>
      %c0_7 = arith.constant 0 : index
      %c0_8 = arith.constant 0 : index
      %16 = vector.load %arg10[%c0_7, %c0_8] : memref<64x3xf32, #tpu.memory_space<vmem>>, vector<64x3xf32>
      tpu.vector_store %arg10[%c0_7, %c0_8], %15 {strides = array<i32>} : memref<64x3xf32, #tpu.memory_space<vmem>>, vector<64x3xf32>,
      %cst_9 = arith.constant 0.000000e+00 : f32
      %17 = vector.broadcast %cst_9 : f32 to vector<3x64x32xf32>
      %c0_10 = arith.constant 0 : index
      %c0_11 = arith.constant 0 : index
      %c0_12 = arith.constant 0 : index
      %18 = vector.load %arg11[%c0_10, %c0_11, %c0_12] : memref<3x64x32xf32, #tpu.memory_space<vmem>>, vector<3x64x32xf32>
      tpu.vector_store %arg11[%c0_10, %c0_11, %c0_12], %17 {strides = array<i32>} : memref<3x64x32xf32, #tpu.memory_space<vmem>>, vector<3x64x32xf32>,
    } else {
    }
    %c1_i32 = arith.constant 1 : i32
    %3 = arith.muli %arg0, %c1_i32 : i32
    %4 = arith.addi %3, %arg1 : i32
    %5 = arith.index_cast %4 : i32 to index
    %6 = memref.load %arg2[%5] : memref<1xi32, #tpu.memory_space<smem>>
    %c0_i32_1 = arith.constant 0 : i32
    %7 = arith.cmpi sgt, %6, %c0_i32_1 : i32
    %8 = arith.extui %7 : i1 to i32
    %c0_i32_2 = arith.constant 0 : i32
    %9 = arith.cmpi ne, %8, %c0_i32_2 : i32
    scf.if %9 {
      %c0 = arith.constant 0 : index
      %c0_5 = arith.constant 0 : index
      %13 = vector.load %arg6[%c0, %c0_5] : memref<64x64xi8, #tpu.memory_space<vmem>>, vector<64x64xi8>
      %c0_i8 = arith.constant 0 : i8
      %14 = vector.broadcast %c0_i8 : i8 to vector<64x64xi8>
      %15 = arith.cmpi ne, %13, %14 : vector<64x64xi8>
      %c64_i32 = arith.constant 64 : i32
      %16 = arith.muli %arg1, %c64_i32 : i32
      %17 = tpu.assume_multiple %16, 8 : i32
      %c0_6 = arith.constant 0 : index
      %c0_7 = arith.constant 0 : index
      %18 = vector.load %arg3[%c0_6, %c0_7] : memref<64x3xf32, #tpu.memory_space<vmem>>, vector<64x1xf32>
      %c0_8 = arith.constant 0 : index
      %c0_9 = arith.constant 0 : index
      %19 = vector.load %arg4[%c0_8, %c0_9] : memref<3x64xf32, #tpu.memory_space<vmem>>, vector<1x64xf32>
      %20 = vector.broadcast %18 : vector<64x1xf32> to vector<64x64xf32>
      %21 = vector.broadcast %19 : vector<1x64xf32> to vector<64x64xf32>
      %22 = arith.addf %20, %21 : vector<64x64xf32>
      %cst = arith.constant 0.000000e+00 : f32
      %23 = vector.broadcast %cst : f32 to vector<64x64xf32>
      %24 = arith.cmpf ogt, %22, %23 : vector<64x64xf32>
      %cst_10 = arith.constant 2.000000e-01 : f32
      %25 = vector.broadcast %cst_10 : f32 to vector<64x64xf32>
      %26 = arith.mulf %25, %22 : vector<64x64xf32>
      %27 = arith.select %24, %22, %26 : vector<64x64xi1>, vector<64x64xf32>
      %cst_11 = arith.constant -1.000000e+09 : f32
      %28 = vector.broadcast %cst_11 : f32 to vector<64x64xf32>
      %29 = arith.select %15, %27, %28 : vector<64x64xi1>, vector<64x64xf32>
      %c0_12 = arith.constant 0 : index
      %c0_13 = arith.constant 0 : index
      %30 = vector.load %arg9[%c0_12, %c0_13] : memref<64x3xf32, #tpu.memory_space<vmem>>, vector<64x1xf32>
      %cst_14 = arith.constant dense<0xFF800000> : vector<64xf32>
      %31 = vector.multi_reduction <maximumf>, %29, %cst_14 [1] : vector<64x64xf32> to vector<64xf32>
      %32 = vector.shape_cast %31 : vector<64xf32> to vector<64x1xf32>
      %33 = arith.maximumf %30, %32 : vector<64x1xf32>
      %34 = arith.subf %30, %33 : vector<64x1xf32>
      %35 = math.exp %34 : vector<64x1xf32>
      %36 = vector.broadcast %33 : vector<64x1xf32> to vector<64x64xf32>
      %37 = arith.subf %29, %36 : vector<64x64xf32>
      %38 = math.exp %37 : vector<64x64xf32>
      %c0_15 = arith.constant 0 : index
      %c0_16 = arith.constant 0 : index
      %39 = vector.load %arg10[%c0_15, %c0_16] : memref<64x3xf32, #tpu.memory_space<vmem>>, vector<64x1xf32>
      %40 = arith.mulf %35, %39 : vector<64x1xf32>
      %cst_17 = arith.constant dense<0.000000e+00> : vector<64xf32>
      %41 = vector.multi_reduction <add>, %38, %cst_17 [1] : vector<64x64xf32> to vector<64xf32>
      %42 = vector.shape_cast %41 : vector<64xf32> to vector<64x1xf32>
      %43 = arith.addf %40, %42 : vector<64x1xf32>
      %c0_18 = arith.constant 0 : index
      %c0_19 = arith.constant 0 : index
      %44 = vector.load %arg10[%c0_18, %c0_19] : memref<64x3xf32, #tpu.memory_space<vmem>>, vector<64x1xf32>
      tpu.vector_store %arg10[%c0_18, %c0_19], %43 {strides = array<i32>} : memref<64x3xf32, #tpu.memory_space<vmem>>, vector<64x1xf32>,
      %c0_20 = arith.constant 0 : index
      %45 = arith.index_cast %17 : i32 to index
      %c0_21 = arith.constant 0 : index
      %46 = vector.load %arg5[%c0_20, %45, %c0_21] : memref<3x64x32xbf16, #tpu.memory_space<vmem>>, vector<1x64x32xbf16>
      %47 = vector.shape_cast %46 : vector<1x64x32xbf16> to vector<64x32xbf16>
      %c0_22 = arith.constant 0 : index
      %c0_23 = arith.constant 0 : index
      %c0_24 = arith.constant 0 : index
      %48 = vector.load %arg11[%c0_22, %c0_23, %c0_24] : memref<3x64x32xf32, #tpu.memory_space<vmem>>, vector<1x64x32xf32>
      %49 = vector.shape_cast %48 : vector<1x64x32xf32> to vector<64x32xf32>
      %50 = vector.broadcast %35 : vector<64x1xf32> to vector<64x32xf32>
      %51 = arith.mulf %50, %49 : vector<64x32xf32>
      %52 = arith.truncf %38 : vector<64x64xf32> to vector<64x64xbf16>
      %cst_25 = arith.constant dense<0.000000e+00> : vector<64x32xf32>
      %53 = tpu.matmul %52, %47, %cst_25 {dimension_numbers = #tpu.dot_dimension_numbers<[1], [0], [0], [1], [0, 0, 1, 1], [], []>} : vector<64x64xbf16>, vector<64x32xbf16>, vector<64x32xf32> -> vector<64x32xf32>
      %54 = arith.addf %51, %53 : vector<64x32xf32>
      %c0_26 = arith.constant 0 : index
      %c0_27 = arith.constant 0 : index
      %c0_28 = arith.constant 0 : index
      %55 = vector.load %arg11[%c0_26, %c0_27, %c0_28] : memref<3x64x32xf32, #tpu.memory_space<vmem>>, vector<1x64x32xf32>
      %56 = vector.shape_cast %55 : vector<1x64x32xf32> to vector<64x32xf32>
      %57 = vector.shape_cast %54 : vector<64x32xf32> to vector<1x64x32xf32>
      tpu.vector_store %arg11[%c0_26, %c0_27, %c0_28], %57 {strides = array<i32>} : memref<3x64x32xf32, #tpu.memory_space<vmem>>, vector<1x64x32xf32>,
      %c0_29 = arith.constant 0 : index
      %c0_30 = arith.constant 0 : index
      %58 = vector.load %arg9[%c0_29, %c0_30] : memref<64x3xf32, #tpu.memory_space<vmem>>, vector<64x1xf32>
      tpu.vector_store %arg9[%c0_29, %c0_30], %33 {strides = array<i32>} : memref<64x3xf32, #tpu.memory_space<vmem>>, vector<64x1xf32>,
      %c0_31 = arith.constant 0 : index
      %c1 = arith.constant 1 : index
      %59 = vector.load %arg3[%c0_31, %c1] : memref<64x3xf32, #tpu.memory_space<vmem>>, vector<64x1xf32>
      %c1_32 = arith.constant 1 : index
      %c0_33 = arith.constant 0 : index
      %60 = vector.load %arg4[%c1_32, %c0_33] : memref<3x64xf32, #tpu.memory_space<vmem>>, vector<1x64xf32>
      %61 = vector.broadcast %59 : vector<64x1xf32> to vector<64x64xf32>
      %62 = vector.broadcast %60 : vector<1x64xf32> to vector<64x64xf32>
      %63 = arith.addf %61, %62 : vector<64x64xf32>
      %cst_34 = arith.constant 0.000000e+00 : f32
      %64 = vector.broadcast %cst_34 : f32 to vector<64x64xf32>
      %65 = arith.cmpf ogt, %63, %64 : vector<64x64xf32>
      %cst_35 = arith.constant 2.000000e-01 : f32
      %66 = vector.broadcast %cst_35 : f32 to vector<64x64xf32>
      %67 = arith.mulf %66, %63 : vector<64x64xf32>
      %68 = arith.select %65, %63, %67 : vector<64x64xi1>, vector<64x64xf32>
      %cst_36 = arith.constant -1.000000e+09 : f32
      %69 = vector.broadcast %cst_36 : f32 to vector<64x64xf32>
      %70 = arith.select %15, %68, %69 : vector<64x64xi1>, vector<64x64xf32>
      %c0_37 = arith.constant 0 : index
      %c1_38 = arith.constant 1 : index
      %71 = vector.load %arg9[%c0_37, %c1_38] : memref<64x3xf32, #tpu.memory_space<vmem>>, vector<64x1xf32>
      %cst_39 = arith.constant dense<0xFF800000> : vector<64xf32>
      %72 = vector.multi_reduction <maximumf>, %70, %cst_39 [1] : vector<64x64xf32> to vector<64xf32>
      %73 = vector.shape_cast %72 : vector<64xf32> to vector<64x1xf32>
      %74 = arith.maximumf %71, %73 : vector<64x1xf32>
      %75 = arith.subf %71, %74 : vector<64x1xf32>
      %76 = math.exp %75 : vector<64x1xf32>
      %77 = vector.broadcast %74 : vector<64x1xf32> to vector<64x64xf32>
      %78 = arith.subf %70, %77 : vector<64x64xf32>
      %79 = math.exp %78 : vector<64x64xf32>
      %c0_40 = arith.constant 0 : index
      %c1_41 = arith.constant 1 : index
      %80 = vector.load %arg10[%c0_40, %c1_41] : memref<64x3xf32, #tpu.memory_space<vmem>>, vector<64x1xf32>
      %81 = arith.mulf %76, %80 : vector<64x1xf32>
      %cst_42 = arith.constant dense<0.000000e+00> : vector<64xf32>
      %82 = vector.multi_reduction <add>, %79, %cst_42 [1] : vector<64x64xf32> to vector<64xf32>
      %83 = vector.shape_cast %82 : vector<64xf32> to vector<64x1xf32>
      %84 = arith.addf %81, %83 : vector<64x1xf32>
      %c0_43 = arith.constant 0 : index
      %c1_44 = arith.constant 1 : index
      %85 = vector.load %arg10[%c0_43, %c1_44] : memref<64x3xf32, #tpu.memory_space<vmem>>, vector<64x1xf32>
      tpu.vector_store %arg10[%c0_43, %c1_44], %84 {strides = array<i32>} : memref<64x3xf32, #tpu.memory_space<vmem>>, vector<64x1xf32>,
      %c1_45 = arith.constant 1 : index
      %86 = arith.index_cast %17 : i32 to index
      %c0_46 = arith.constant 0 : index
      %87 = vector.load %arg5[%c1_45, %86, %c0_46] : memref<3x64x32xbf16, #tpu.memory_space<vmem>>, vector<1x64x32xbf16>
      %88 = vector.shape_cast %87 : vector<1x64x32xbf16> to vector<64x32xbf16>
      %c1_47 = arith.constant 1 : index
      %c0_48 = arith.constant 0 : index
      %c0_49 = arith.constant 0 : index
      %89 = vector.load %arg11[%c1_47, %c0_48, %c0_49] : memref<3x64x32xf32, #tpu.memory_space<vmem>>, vector<1x64x32xf32>
      %90 = vector.shape_cast %89 : vector<1x64x32xf32> to vector<64x32xf32>
      %91 = vector.broadcast %76 : vector<64x1xf32> to vector<64x32xf32>
      %92 = arith.mulf %91, %90 : vector<64x32xf32>
      %93 = arith.truncf %79 : vector<64x64xf32> to vector<64x64xbf16>
      %cst_50 = arith.constant dense<0.000000e+00> : vector<64x32xf32>
      %94 = tpu.matmul %93, %88, %cst_50 {dimension_numbers = #tpu.dot_dimension_numbers<[1], [0], [0], [1], [0, 0, 1, 1], [], []>} : vector<64x64xbf16>, vector<64x32xbf16>, vector<64x32xf32> -> vector<64x32xf32>
      %95 = arith.addf %92, %94 : vector<64x32xf32>
      %c1_51 = arith.constant 1 : index
      %c0_52 = arith.constant 0 : index
      %c0_53 = arith.constant 0 : index
      %96 = vector.load %arg11[%c1_51, %c0_52, %c0_53] : memref<3x64x32xf32, #tpu.memory_space<vmem>>, vector<1x64x32xf32>
      %97 = vector.shape_cast %96 : vector<1x64x32xf32> to vector<64x32xf32>
      %98 = vector.shape_cast %95 : vector<64x32xf32> to vector<1x64x32xf32>
      tpu.vector_store %arg11[%c1_51, %c0_52, %c0_53], %98 {strides = array<i32>} : memref<3x64x32xf32, #tpu.memory_space<vmem>>, vector<1x64x32xf32>,
      %c0_54 = arith.constant 0 : index
      %c1_55 = arith.constant 1 : index
      %99 = vector.load %arg9[%c0_54, %c1_55] : memref<64x3xf32, #tpu.memory_space<vmem>>, vector<64x1xf32>
      tpu.vector_store %arg9[%c0_54, %c1_55], %74 {strides = array<i32>} : memref<64x3xf32, #tpu.memory_space<vmem>>, vector<64x1xf32>,
      %c0_56 = arith.constant 0 : index
      %c2 = arith.constant 2 : index
      %100 = vector.load %arg3[%c0_56, %c2] : memref<64x3xf32, #tpu.memory_space<vmem>>, vector<64x1xf32>
      %c2_57 = arith.constant 2 : index
      %c0_58 = arith.constant 0 : index
      %101 = vector.load %arg4[%c2_57, %c0_58] : memref<3x64xf32, #tpu.memory_space<vmem>>, vector<1x64xf32>
      %102 = vector.broadcast %100 : vector<64x1xf32> to vector<64x64xf32>
      %103 = vector.broadcast %101 : vector<1x64xf32> to vector<64x64xf32>
      %104 = arith.addf %102, %103 : vector<64x64xf32>
      %cst_59 = arith.constant 0.000000e+00 : f32
      %105 = vector.broadcast %cst_59 : f32 to vector<64x64xf32>
      %106 = arith.cmpf ogt, %104, %105 : vector<64x64xf32>
      %cst_60 = arith.constant 2.000000e-01 : f32
      %107 = vector.broadcast %cst_60 : f32 to vector<64x64xf32>
      %108 = arith.mulf %107, %104 : vector<64x64xf32>
      %109 = arith.select %106, %104, %108 : vector<64x64xi1>, vector<64x64xf32>
      %cst_61 = arith.constant -1.000000e+09 : f32
      %110 = vector.broadcast %cst_61 : f32 to vector<64x64xf32>
      %111 = arith.select %15, %109, %110 : vector<64x64xi1>, vector<64x64xf32>
      %c0_62 = arith.constant 0 : index
      %c2_63 = arith.constant 2 : index
      %112 = vector.load %arg9[%c0_62, %c2_63] : memref<64x3xf32, #tpu.memory_space<vmem>>, vector<64x1xf32>
      %cst_64 = arith.constant dense<0xFF800000> : vector<64xf32>
      %113 = vector.multi_reduction <maximumf>, %111, %cst_64 [1] : vector<64x64xf32> to vector<64xf32>
      %114 = vector.shape_cast %113 : vector<64xf32> to vector<64x1xf32>
      %115 = arith.maximumf %112, %114 : vector<64x1xf32>
      %116 = arith.subf %112, %115 : vector<64x1xf32>
      %117 = math.exp %116 : vector<64x1xf32>
      %118 = vector.broadcast %115 : vector<64x1xf32> to vector<64x64xf32>
      %119 = arith.subf %111, %118 : vector<64x64xf32>
      %120 = math.exp %119 : vector<64x64xf32>
      %c0_65 = arith.constant 0 : index
      %c2_66 = arith.constant 2 : index
      %121 = vector.load %arg10[%c0_65, %c2_66] : memref<64x3xf32, #tpu.memory_space<vmem>>, vector<64x1xf32>
      %122 = arith.mulf %117, %121 : vector<64x1xf32>
      %cst_67 = arith.constant dense<0.000000e+00> : vector<64xf32>
      %123 = vector.multi_reduction <add>, %120, %cst_67 [1] : vector<64x64xf32> to vector<64xf32>
      %124 = vector.shape_cast %123 : vector<64xf32> to vector<64x1xf32>
      %125 = arith.addf %122, %124 : vector<64x1xf32>
      %c0_68 = arith.constant 0 : index
      %c2_69 = arith.constant 2 : index
      %126 = vector.load %arg10[%c0_68, %c2_69] : memref<64x3xf32, #tpu.memory_space<vmem>>, vector<64x1xf32>
      tpu.vector_store %arg10[%c0_68, %c2_69], %125 {strides = array<i32>} : memref<64x3xf32, #tpu.memory_space<vmem>>, vector<64x1xf32>,
      %c2_70 = arith.constant 2 : index
      %127 = arith.index_cast %17 : i32 to index
      %c0_71 = arith.constant 0 : index
      %128 = vector.load %arg5[%c2_70, %127, %c0_71] : memref<3x64x32xbf16, #tpu.memory_space<vmem>>, vector<1x64x32xbf16>
      %129 = vector.shape_cast %128 : vector<1x64x32xbf16> to vector<64x32xbf16>
      %c2_72 = arith.constant 2 : index
      %c0_73 = arith.constant 0 : index
      %c0_74 = arith.constant 0 : index
      %130 = vector.load %arg11[%c2_72, %c0_73, %c0_74] : memref<3x64x32xf32, #tpu.memory_space<vmem>>, vector<1x64x32xf32>
      %131 = vector.shape_cast %130 : vector<1x64x32xf32> to vector<64x32xf32>
      %132 = vector.broadcast %117 : vector<64x1xf32> to vector<64x32xf32>
      %133 = arith.mulf %132, %131 : vector<64x32xf32>
      %134 = arith.truncf %120 : vector<64x64xf32> to vector<64x64xbf16>
      %cst_75 = arith.constant dense<0.000000e+00> : vector<64x32xf32>
      %135 = tpu.matmul %134, %129, %cst_75 {dimension_numbers = #tpu.dot_dimension_numbers<[1], [0], [0], [1], [0, 0, 1, 1], [], []>} : vector<64x64xbf16>, vector<64x32xbf16>, vector<64x32xf32> -> vector<64x32xf32>
      %136 = arith.addf %133, %135 : vector<64x32xf32>
      %c2_76 = arith.constant 2 : index
      %c0_77 = arith.constant 0 : index
      %c0_78 = arith.constant 0 : index
      %137 = vector.load %arg11[%c2_76, %c0_77, %c0_78] : memref<3x64x32xf32, #tpu.memory_space<vmem>>, vector<1x64x32xf32>
      %138 = vector.shape_cast %137 : vector<1x64x32xf32> to vector<64x32xf32>
      %139 = vector.shape_cast %136 : vector<64x32xf32> to vector<1x64x32xf32>
      tpu.vector_store %arg11[%c2_76, %c0_77, %c0_78], %139 {strides = array<i32>} : memref<3x64x32xf32, #tpu.memory_space<vmem>>, vector<1x64x32xf32>,
      %c0_79 = arith.constant 0 : index
      %c2_80 = arith.constant 2 : index
      %140 = vector.load %arg9[%c0_79, %c2_80] : memref<64x3xf32, #tpu.memory_space<vmem>>, vector<64x1xf32>
      tpu.vector_store %arg9[%c0_79, %c2_80], %115 {strides = array<i32>} : memref<64x3xf32, #tpu.memory_space<vmem>>, vector<64x1xf32>,
    } else {
    }
    %c0_i32_3 = arith.constant 0 : i32
    %10 = arith.cmpi eq, %arg1, %c0_i32_3 : i32
    %11 = arith.extui %10 : i1 to i32
    %c0_i32_4 = arith.constant 0 : i32
    %12 = arith.cmpi ne, %11, %c0_i32_4 : i32
    scf.if %12 {
      %cst = arith.constant 0.000000e+00 : f32
      %13 = vector.broadcast %cst : f32 to vector<64x32xf32>
      %c0 = arith.constant 0 : index
      %c0_5 = arith.constant 0 : index
      %14 = vector.load %arg10[%c0, %c0_5] : memref<64x3xf32, #tpu.memory_space<vmem>>, vector<64x1xf32>
      %15 = tpu.reciprocal %14 {approx = true} : vector<64x1xf32> -> vector<64x1xf32>
      %c0_6 = arith.constant 0 : index
      %c0_7 = arith.constant 0 : index
      %c0_8 = arith.constant 0 : index
      %16 = vector.load %arg11[%c0_6, %c0_7, %c0_8] : memref<3x64x32xf32, #tpu.memory_space<vmem>>, vector<1x64x32xf32>
      %17 = vector.shape_cast %16 : vector<1x64x32xf32> to vector<64x32xf32>
      %18 = vector.broadcast %15 : vector<64x1xf32> to vector<64x32xf32>
      %19 = arith.mulf %17, %18 : vector<64x32xf32>
      %20 = arith.addf %13, %19 : vector<64x32xf32>
      %c0_9 = arith.constant 0 : index
      %c1 = arith.constant 1 : index
      %21 = vector.load %arg10[%c0_9, %c1] : memref<64x3xf32, #tpu.memory_space<vmem>>, vector<64x1xf32>
      %22 = tpu.reciprocal %21 {approx = true} : vector<64x1xf32> -> vector<64x1xf32>
      %c1_10 = arith.constant 1 : index
      %c0_11 = arith.constant 0 : index
      %c0_12 = arith.constant 0 : index
      %23 = vector.load %arg11[%c1_10, %c0_11, %c0_12] : memref<3x64x32xf32, #tpu.memory_space<vmem>>, vector<1x64x32xf32>
      %24 = vector.shape_cast %23 : vector<1x64x32xf32> to vector<64x32xf32>
      %25 = vector.broadcast %22 : vector<64x1xf32> to vector<64x32xf32>
      %26 = arith.mulf %24, %25 : vector<64x32xf32>
      %27 = arith.addf %20, %26 : vector<64x32xf32>
      %c0_13 = arith.constant 0 : index
      %c2 = arith.constant 2 : index
      %28 = vector.load %arg10[%c0_13, %c2] : memref<64x3xf32, #tpu.memory_space<vmem>>, vector<64x1xf32>
      %29 = tpu.reciprocal %28 {approx = true} : vector<64x1xf32> -> vector<64x1xf32>
      %c2_14 = arith.constant 2 : index
      %c0_15 = arith.constant 0 : index
      %c0_16 = arith.constant 0 : index
      %30 = vector.load %arg11[%c2_14, %c0_15, %c0_16] : memref<3x64x32xf32, #tpu.memory_space<vmem>>, vector<1x64x32xf32>
      %31 = vector.shape_cast %30 : vector<1x64x32xf32> to vector<64x32xf32>
      %32 = vector.broadcast %29 : vector<64x1xf32> to vector<64x32xf32>
      %33 = arith.mulf %31, %32 : vector<64x32xf32>
      %34 = arith.addf %27, %33 : vector<64x32xf32>
      %cst_17 = arith.constant 0.333333343 : f32
      %35 = vector.broadcast %cst_17 : f32 to vector<64x32xf32>
      %36 = arith.mulf %34, %35 : vector<64x32xf32>
      %c0_18 = arith.constant 0 : index
      %c0_19 = arith.constant 0 : index
      %37 = vector.load %arg7[%c0_18, %c0_19] : memref<1x32xf32, #tpu.memory_space<vmem>>, vector<1x32xf32>
      %38 = vector.broadcast %37 : vector<1x32xf32> to vector<64x32xf32>
      %39 = arith.addf %36, %38 : vector<64x32xf32>
      %c0_20 = arith.constant 0 : index
      %c0_21 = arith.constant 0 : index
      %40 = vector.load %arg8[%c0_20, %c0_21] : memref<64x32xf32, #tpu.memory_space<vmem>>, vector<64x32xf32>
      tpu.vector_store %arg8[%c0_20, %c0_21], %39 {strides = array<i32>} : memref<64x32xf32, #tpu.memory_space<vmem>>, vector<64x32xf32>,
    } else {
    }
    return
  }
  func.func @transform_0(%arg0: i32, %arg1: i32, %arg2: memref<1xi32, #tpu.memory_space<smem>>) -> (i32, i32) {
    %c0_i32 = arith.constant 0 : i32
    %c0_i32_0 = arith.constant 0 : i32
    return %arg0, %c0_i32 : i32, i32
  }
  func.func @transform_1(%arg0: i32, %arg1: i32, %arg2: memref<1xi32, #tpu.memory_space<smem>>) -> (i32, i32) {
    %c0_i32 = arith.constant 0 : i32
    %c0_i32_0 = arith.constant 0 : i32
    return %c0_i32, %arg1 : i32, i32
  }
  func.func @transform_2(%arg0: i32, %arg1: i32, %arg2: memref<1xi32, #tpu.memory_space<smem>>) -> (i32, i32, i32) {
    %c0_i32 = arith.constant 0 : i32
    %c0_i32_0 = arith.constant 0 : i32
    %c0_i32_1 = arith.constant 0 : i32
    %c0_i32_2 = arith.constant 0 : i32
    return %c0_i32, %c0_i32_0, %c0_i32_1 : i32, i32, i32
  }
  func.func @transform_3(%arg0: i32, %arg1: i32, %arg2: memref<1xi32, #tpu.memory_space<smem>>) -> (i32, i32) {
    %c0_i32 = arith.constant 0 : i32
    return %arg0, %arg1 : i32, i32
  }
  func.func @transform_4(%arg0: i32, %arg1: i32, %arg2: memref<1xi32, #tpu.memory_space<smem>>) -> (i32, i32) {
    %c0_i32 = arith.constant 0 : i32
    %c0_i32_0 = arith.constant 0 : i32
    %c0_i32_1 = arith.constant 0 : i32
    return %c0_i32, %c0_i32_0 : i32, i32
  }
  func.func @transform_5(%arg0: i32, %arg1: i32, %arg2: memref<1xi32, #tpu.memory_space<smem>>) -> (i32, i32) {
    %c0_i32 = arith.constant 0 : i32
    %c0_i32_0 = arith.constant 0 : i32
    return %arg0, %c0_i32 : i32, i32
  }
}

module attributes {stable_mosaic.version = 11 : i64} {
  func.func @_mlp_kernel(%arg0: i32, %arg1: memref<128x4xf32, #tpu.memory_space<vmem>>, %arg2: memref<4x16xf32, #tpu.memory_space<vmem>>, %arg3: memref<1x16xf32, #tpu.memory_space<vmem>>, %arg4: memref<16x32xf32, #tpu.memory_space<vmem>>, %arg5: memref<1x32xf32, #tpu.memory_space<vmem>>, %arg6: memref<128x32xf32, #tpu.memory_space<vmem>>) attributes {dimension_semantics = [#tpu.dimension_semantics<parallel>], iteration_bounds = array<i64: 1>, scalar_prefetch = 0 : i64, scratch_operands = 0 : i64, tpu.core_type = #tpu.core_type<tc>, window_params = [{transform_indices = @transform_0, window_bounds = array<i64: 128, 4>}, {pipeline_mode = #tpu.pipeline_mode<synchronous>, transform_indices = @transform_1, window_bounds = array<i64: 4, 16>}, {pipeline_mode = #tpu.pipeline_mode<synchronous>, transform_indices = @transform_2, window_bounds = array<i64: 1, 16>}, {pipeline_mode = #tpu.pipeline_mode<synchronous>, transform_indices = @transform_3, window_bounds = array<i64: 16, 32>}, {pipeline_mode = #tpu.pipeline_mode<synchronous>, transform_indices = @transform_4, window_bounds = array<i64: 1, 32>}, {transform_indices = @transform_5, window_bounds = array<i64: 128, 32>}]} {
    %c0 = arith.constant 0 : index
    %c0_0 = arith.constant 0 : index
    %0 = vector.load %arg1[%c0, %c0_0] : memref<128x4xf32, #tpu.memory_space<vmem>>, vector<128x4xf32>
    %1 = arith.truncf %0 : vector<128x4xf32> to vector<128x4xbf16>
    %c0_1 = arith.constant 0 : index
    %c0_2 = arith.constant 0 : index
    %2 = vector.load %arg2[%c0_1, %c0_2] : memref<4x16xf32, #tpu.memory_space<vmem>>, vector<4x16xf32>
    %3 = arith.truncf %2 : vector<4x16xf32> to vector<4x16xbf16>
    %cst = arith.constant dense<0.000000e+00> : vector<128x16xf32>
    %4 = tpu.matmul %1, %3, %cst {dimension_numbers = #tpu.dot_dimension_numbers<[1], [0], [0], [1], [0, 0, 1, 1], [], []>} : vector<128x4xbf16>, vector<4x16xbf16>, vector<128x16xf32> -> vector<128x16xf32>
    %c0_3 = arith.constant 0 : index
    %c0_4 = arith.constant 0 : index
    %5 = vector.load %arg3[%c0_3, %c0_4] : memref<1x16xf32, #tpu.memory_space<vmem>>, vector<1x16xf32>
    %6 = vector.broadcast %5 : vector<1x16xf32> to vector<128x16xf32>
    %7 = arith.addf %4, %6 : vector<128x16xf32>
    %cst_5 = arith.constant 0.000000e+00 : f32
    %8 = vector.broadcast %cst_5 : f32 to vector<128x16xf32>
    %9 = arith.maximumf %7, %8 : vector<128x16xf32>
    %10 = arith.truncf %9 : vector<128x16xf32> to vector<128x16xbf16>
    %c0_6 = arith.constant 0 : index
    %c0_7 = arith.constant 0 : index
    %11 = vector.load %arg4[%c0_6, %c0_7] : memref<16x32xf32, #tpu.memory_space<vmem>>, vector<16x32xf32>
    %12 = arith.truncf %11 : vector<16x32xf32> to vector<16x32xbf16>
    %cst_8 = arith.constant dense<0.000000e+00> : vector<128x32xf32>
    %13 = tpu.matmul %10, %12, %cst_8 {dimension_numbers = #tpu.dot_dimension_numbers<[1], [0], [0], [1], [0, 0, 1, 1], [], []>} : vector<128x16xbf16>, vector<16x32xbf16>, vector<128x32xf32> -> vector<128x32xf32>
    %c0_9 = arith.constant 0 : index
    %c0_10 = arith.constant 0 : index
    %14 = vector.load %arg5[%c0_9, %c0_10] : memref<1x32xf32, #tpu.memory_space<vmem>>, vector<1x32xf32>
    %15 = vector.broadcast %14 : vector<1x32xf32> to vector<128x32xf32>
    %16 = arith.addf %13, %15 : vector<128x32xf32>
    %c0_11 = arith.constant 0 : index
    %c0_12 = arith.constant 0 : index
    %17 = vector.load %arg6[%c0_11, %c0_12] : memref<128x32xf32, #tpu.memory_space<vmem>>, vector<128x32xf32>
    tpu.vector_store %arg6[%c0_11, %c0_12], %16 {strides = array<i32>} : memref<128x32xf32, #tpu.memory_space<vmem>>, vector<128x32xf32>,
    return
  }
  func.func @transform_0(%arg0: i32) -> (i32, i32) {
    %c0_i32 = arith.constant 0 : i32
    %c0_i32_0 = arith.constant 0 : i32
    return %arg0, %c0_i32 : i32, i32
  }
  func.func @transform_1(%arg0: i32) -> (i32, i32) {
    %c0_i32 = arith.constant 0 : i32
    %c0_i32_0 = arith.constant 0 : i32
    %c0_i32_1 = arith.constant 0 : i32
    return %c0_i32, %c0_i32_0 : i32, i32
  }
  func.func @transform_2(%arg0: i32) -> (i32, i32) {
    %c0_i32 = arith.constant 0 : i32
    %c0_i32_0 = arith.constant 0 : i32
    %c0_i32_1 = arith.constant 0 : i32
    return %c0_i32, %c0_i32_0 : i32, i32
  }
  func.func @transform_3(%arg0: i32) -> (i32, i32) {
    %c0_i32 = arith.constant 0 : i32
    %c0_i32_0 = arith.constant 0 : i32
    %c0_i32_1 = arith.constant 0 : i32
    return %c0_i32, %c0_i32_0 : i32, i32
  }
  func.func @transform_4(%arg0: i32) -> (i32, i32) {
    %c0_i32 = arith.constant 0 : i32
    %c0_i32_0 = arith.constant 0 : i32
    %c0_i32_1 = arith.constant 0 : i32
    return %c0_i32, %c0_i32_0 : i32, i32
  }
  func.func @transform_5(%arg0: i32) -> (i32, i32) {
    %c0_i32 = arith.constant 0 : i32
    %c0_i32_0 = arith.constant 0 : i32
    return %arg0, %c0_i32 : i32, i32
  }
}

module attributes {stable_mosaic.version = 11 : i64} {
  func.func @_mlp_kernel(%arg0: i32, %arg1: memref<128x96xf32, #tpu.memory_space<vmem>>, %arg2: memref<96x16xf32, #tpu.memory_space<vmem>>, %arg3: memref<1x16xf32, #tpu.memory_space<vmem>>, %arg4: memref<16x1xf32, #tpu.memory_space<vmem>>, %arg5: memref<1x1xf32, #tpu.memory_space<vmem>>, %arg6: memref<128x1xf32, #tpu.memory_space<vmem>>) attributes {dimension_semantics = [#tpu.dimension_semantics<parallel>], iteration_bounds = array<i64: 1>, scalar_prefetch = 0 : i64, scratch_operands = 0 : i64, tpu.core_type = #tpu.core_type<tc>, window_params = [{transform_indices = @transform_0, window_bounds = array<i64: 128, 96>}, {pipeline_mode = #tpu.pipeline_mode<synchronous>, transform_indices = @transform_1, window_bounds = array<i64: 96, 16>}, {pipeline_mode = #tpu.pipeline_mode<synchronous>, transform_indices = @transform_2, window_bounds = array<i64: 1, 16>}, {pipeline_mode = #tpu.pipeline_mode<synchronous>, transform_indices = @transform_3, window_bounds = array<i64: 16, 1>}, {pipeline_mode = #tpu.pipeline_mode<synchronous>, transform_indices = @transform_4, window_bounds = array<i64: 1, 1>}, {transform_indices = @transform_5, window_bounds = array<i64: 128, 1>}]} {
    %c0 = arith.constant 0 : index
    %c0_0 = arith.constant 0 : index
    %0 = vector.load %arg1[%c0, %c0_0] : memref<128x96xf32, #tpu.memory_space<vmem>>, vector<128x96xf32>
    %1 = arith.truncf %0 : vector<128x96xf32> to vector<128x96xbf16>
    %c0_1 = arith.constant 0 : index
    %c0_2 = arith.constant 0 : index
    %2 = vector.load %arg2[%c0_1, %c0_2] : memref<96x16xf32, #tpu.memory_space<vmem>>, vector<96x16xf32>
    %3 = arith.truncf %2 : vector<96x16xf32> to vector<96x16xbf16>
    %cst = arith.constant dense<0.000000e+00> : vector<128x16xf32>
    %4 = tpu.matmul %1, %3, %cst {dimension_numbers = #tpu.dot_dimension_numbers<[1], [0], [0], [1], [0, 0, 1, 1], [], []>} : vector<128x96xbf16>, vector<96x16xbf16>, vector<128x16xf32> -> vector<128x16xf32>
    %c0_3 = arith.constant 0 : index
    %c0_4 = arith.constant 0 : index
    %5 = vector.load %arg3[%c0_3, %c0_4] : memref<1x16xf32, #tpu.memory_space<vmem>>, vector<1x16xf32>
    %6 = vector.broadcast %5 : vector<1x16xf32> to vector<128x16xf32>
    %7 = arith.addf %4, %6 : vector<128x16xf32>
    %cst_5 = arith.constant 0.000000e+00 : f32
    %8 = vector.broadcast %cst_5 : f32 to vector<128x16xf32>
    %9 = arith.maximumf %7, %8 : vector<128x16xf32>
    %10 = arith.truncf %9 : vector<128x16xf32> to vector<128x16xbf16>
    %c0_6 = arith.constant 0 : index
    %c0_7 = arith.constant 0 : index
    %11 = vector.load %arg4[%c0_6, %c0_7] : memref<16x1xf32, #tpu.memory_space<vmem>>, vector<16x1xf32>
    %12 = arith.truncf %11 : vector<16x1xf32> to vector<16x1xbf16>
    %cst_8 = arith.constant dense<0.000000e+00> : vector<128x1xf32>
    %13 = tpu.matmul %10, %12, %cst_8 {dimension_numbers = #tpu.dot_dimension_numbers<[1], [0], [0], [1], [0, 0, 1, 1], [], []>} : vector<128x16xbf16>, vector<16x1xbf16>, vector<128x1xf32> -> vector<128x1xf32>
    %c0_9 = arith.constant 0 : index
    %c0_10 = arith.constant 0 : index
    %14 = vector.load %arg5[%c0_9, %c0_10] : memref<1x1xf32, #tpu.memory_space<vmem>>, vector<1x1xf32>
    %15 = vector.broadcast %14 : vector<1x1xf32> to vector<128x1xf32>
    %16 = arith.addf %13, %15 : vector<128x1xf32>
    %c0_11 = arith.constant 0 : index
    %c0_12 = arith.constant 0 : index
    %17 = vector.load %arg6[%c0_11, %c0_12] : memref<128x1xf32, #tpu.memory_space<vmem>>, vector<128x1xf32>
    tpu.vector_store %arg6[%c0_11, %c0_12], %16 {strides = array<i32>} : memref<128x1xf32, #tpu.memory_space<vmem>>, vector<128x1xf32>,
    return
  }
  func.func @transform_0(%arg0: i32) -> (i32, i32) {
    %c0_i32 = arith.constant 0 : i32
    %c0_i32_0 = arith.constant 0 : i32
    return %arg0, %c0_i32 : i32, i32
  }
  func.func @transform_1(%arg0: i32) -> (i32, i32) {
    %c0_i32 = arith.constant 0 : i32
    %c0_i32_0 = arith.constant 0 : i32
    %c0_i32_1 = arith.constant 0 : i32
    return %c0_i32, %c0_i32_0 : i32, i32
  }
  func.func @transform_2(%arg0: i32) -> (i32, i32) {
    %c0_i32 = arith.constant 0 : i32
    %c0_i32_0 = arith.constant 0 : i32
    %c0_i32_1 = arith.constant 0 : i32
    return %c0_i32, %c0_i32_0 : i32, i32
  }
  func.func @transform_3(%arg0: i32) -> (i32, i32) {
    %c0_i32 = arith.constant 0 : i32
    %c0_i32_0 = arith.constant 0 : i32
    %c0_i32_1 = arith.constant 0 : i32
    return %c0_i32, %c0_i32_0 : i32, i32
  }
  func.func @transform_4(%arg0: i32) -> (i32, i32) {
    %c0_i32 = arith.constant 0 : i32
    %c0_i32_0 = arith.constant 0 : i32
    %c0_i32_1 = arith.constant 0 : i32
    return %c0_i32, %c0_i32_0 : i32, i32
  }
  func.func @transform_5(%arg0: i32) -> (i32, i32) {
    %c0_i32 = arith.constant 0 : i32
    %c0_i32_0 = arith.constant 0 : i32
    return %arg0, %c0_i32 : i32, i32
  }
}

</mosaic_0001>

<llo_original>
// kernel: gat_model_forward.9
$region0: #{gat_model_forward.9}
  #allocation0 [shape = 'u32[]', space=smem, size = 0x4, offset = 0x4, fixed_abs, tag = 'smem constant byte address 0x4 - core index']
  #allocation1 [shape = 'u32[72,128]{1,0:T(1,128)}', space=vmem, size = 0x9000, scoped, tag = 'internal scratch']
  %s0 = inlined_call_operand.vmem [shape: f32[64,32], index: 0, kind: input, shape index: {}]
  %s1 = inlined_call_operand.vmem [shape: f32[32,102], index: 1, kind: input, shape index: {}]
  %s2 = inlined_call_operand.vmem [shape: bf16[3,64,32], index: 2, kind: output, shape index: {0}]
  %s3 = inlined_call_operand.vmem [shape: f32[64,3], index: 3, kind: output, shape index: {1}]
  %s4 = inlined_call_operand.vmem [shape: f32[64,3], index: 4, kind: output, shape index: {2}]
  %5 = xla_tuple %s2, %s3, %s4
  %s6 = sld [smem:[#allocation0]]
  $region34: #{gat_model_forward.9} parent=0
    _
  %s8 = ssub.s32 1, %s6
  %s9 = scalar_select 0, %s8, %s6
  // Predicated region
  $region2: #{gat_model_forward.9} parent=0 // pred_check
    _
  $region3: #{gat_model_forward.9} parent=0 // pred_check_branch
    %11 = sbr.rel (0) target = $region5
  $region4: #{gat_model_forward.9} parent=0 // pred_region
    _
  $region5: #{gat_model_forward.9} parent=0 // pred_fallthru
    _
  // Predicated region
  $region6: #{gat_model_forward.9} parent=0 // pred_check
    _
  $region7: #{gat_model_forward.9} parent=0 // pred_check_branch
    %13 = sbr.rel (0) target = $region9
  $region8: #{gat_model_forward.9} parent=0 // pred_region
    _
  $region9: #{gat_model_forward.9} parent=0 // pred_fallthru
    _
  %v15 = vld [vmem:[%s0] sm:$0xff]
  %v16 = vld [vmem:[%s0 + $0x8] sm:$0xff]
  %v17 = vld [vmem:[%s0 + $0x10] sm:$0xff]
  %v18 = vld [vmem:[%s0 + $0x18] sm:$0xff]
  %v19 = vld [vmem:[%s0 + $0x20] sm:$0xff]
  %v20 = vld [vmem:[%s0 + $0x28] sm:$0xff]
  %v21 = vld [vmem:[%s0 + $0x30] sm:$0xff]
  %v22 = vld [vmem:[%s0 + $0x38] sm:$0xff]
  %v23 = vpack.c.bf16 %v16, %v15
  %v24 = vpack.c.bf16 %v18, %v17
  %v25 = vpack.c.bf16 %v20, %v19
  %v26 = vpack.c.bf16 %v22, %v21
  %v27 = vld [vmem:[%s1] sm:$0xff]
  %v28 = vld [vmem:[%s1 + $0x8] sm:$0xff]
  %v29 = vld [vmem:[%s1 + $0x10] sm:$0xff]
  %v30 = vld [vmem:[%s1 + $0x18] sm:$0xff]
  %v31 = vpack.c.bf16 %v28, %v27
  %v32 = vpack.c.bf16 %v30, %v29
  %vm33 = vcmask 261120
  %v35 = vsel %vm33, %v23, 0
  %v38 = vsel %vm33, %v24, 0
  %v41 = vsel %vm33, %v25, 0
  %v44 = vsel %vm33, %v26, 0
  %46 = vmatpush.bf16.msra.mxu0 0
  %47 = vmatpush.bf16.msra.mxu0 0
  %48 = vmatpush.bf16.msra.mxu0 0
  %49 = vmatpush.bf16.msra.mxu0 0
  %50 = vmatpush.bf16.msra.mxu0 0
  %51 = vmatpush.bf16.msra.mxu0 0
  %52 = vmatpush.bf16.msra.mxu0 %v32
  %53 = vmatpush.bf16.msra.mxu0 %v31
  %54 = vmatmul.bf16.gmra.mxu0 %v35
  %v55 = vpop.f32.mrf.mxu0
  %v56 = vadd.f32 0.0, %v55
  %v57 = vpop.f32.mrf.mxu0
  %v58 = vadd.f32 0.0, %v57
  %59 = vmatmul.bf16.gmra.mxu0 %v38
  %v60 = vpop.f32.mrf.mxu0
  %v61 = vadd.f32 0.0, %v60
  %v62 = vpop.f32.mrf.mxu0
  %v63 = vadd.f32 0.0, %v62
  %64 = vmatmul.bf16.gmra.mxu0 %v41
  %v65 = vpop.f32.mrf.mxu0
  %v66 = vadd.f32 0.0, %v65
  %v67 = vpop.f32.mrf.mxu0
  %v68 = vadd.f32 0.0, %v67
  %69 = vmatmul.bf16.gmra.mxu0 %v44
  %v70 = vpop.f32.mrf.mxu0
  %v71 = vadd.f32 0.0, %v70
  %v72 = vpop.f32.mrf.mxu0
  %v73 = vadd.f32 0.0, %v72
  %74 = vdwg.mxu0
  %v75 = vpack.c.bf16 %v56, %v56
  %v76 = vpack.c.bf16 %v58, %v58
  %v77 = vpack.c.bf16 %v61, %v61
  %v78 = vpack.c.bf16 %v63, %v63
  %v79 = vpack.c.bf16 %v66, %v66
  %v80 = vpack.c.bf16 %v68, %v68
  %v81 = vpack.c.bf16 %v71, %v71
  %v82 = vpack.c.bf16 %v73, %v73
  %vm83 = vcmask 257024
  %84 = vst.msk [vmem:[%s2] sm:$0xf] %vm83, %v75
  %85 = vst.msk [vmem:[%s2 + $0x4] sm:$0xf] %vm83, %v76
  %86 = vst.msk [vmem:[%s2 + $0x8] sm:$0xf] %vm83, %v77
  %87 = vst.msk [vmem:[%s2 + $0xc] sm:$0xf] %vm83, %v78
  %88 = vst.msk [vmem:[%s2 + $0x10] sm:$0xf] %vm83, %v79
  %89 = vst.msk [vmem:[%s2 + $0x14] sm:$0xf] %vm83, %v80
  %90 = vst.msk [vmem:[%s2 + $0x18] sm:$0xf] %vm83, %v81
  %91 = vst.msk [vmem:[%s2 + $0x1c] sm:$0xf] %vm83, %v82
  %100 = vrot.lane.b32.xlu0 %v75, 96
  %v101 = vpop.permute.xlu0 %100
  %102 = vrot.lane.b32.xlu0 %v76, 96
  %v103 = vpop.permute.xlu0 %102
  %104 = vrot.lane.b32.xlu0 %v77, 96
  %v105 = vpop.permute.xlu0 %104
  %106 = vrot.lane.b32.xlu0 %v78, 96
  %v107 = vpop.permute.xlu0 %106
  %108 = vrot.lane.b32.xlu0 %v79, 96
  %v109 = vpop.permute.xlu0 %108
  %110 = vrot.lane.b32.xlu0 %v80, 96
  %v111 = vpop.permute.xlu0 %110
  %112 = vrot.lane.b32.xlu0 %v81, 96
  %v113 = vpop.permute.xlu0 %112
  %114 = vrot.lane.b32.xlu0 %v82, 96
  %v115 = vpop.permute.xlu0 %114
  %s124 = scalar_lea.vmem %s2, 32
  %125 = vst.msk [vmem:[%s124] sm:$0xf] %vm83, %v101
  %126 = vst.msk [vmem:[%s124 + $0x4] sm:$0xf] %vm83, %v103
  %127 = vst.msk [vmem:[%s124 + $0x8] sm:$0xf] %vm83, %v105
  %128 = vst.msk [vmem:[%s124 + $0xc] sm:$0xf] %vm83, %v107
  %129 = vst.msk [vmem:[%s124 + $0x10] sm:$0xf] %vm83, %v109
  %130 = vst.msk [vmem:[%s124 + $0x14] sm:$0xf] %vm83, %v111
  %131 = vst.msk [vmem:[%s124 + $0x18] sm:$0xf] %vm83, %v113
  %132 = vst.msk [vmem:[%s124 + $0x1c] sm:$0xf] %vm83, %v115
  %133 = vrot.lane.b32.xlu0 %v75, 64
  %v134 = vpop.permute.xlu0 %133
  %135 = vrot.lane.b32.xlu0 %v76, 64
  %v136 = vpop.permute.xlu0 %135
  %137 = vrot.lane.b32.xlu0 %v77, 64
  %v138 = vpop.permute.xlu0 %137
  %139 = vrot.lane.b32.xlu0 %v78, 64
  %v140 = vpop.permute.xlu0 %139
  %141 = vrot.lane.b32.xlu0 %v79, 64
  %v142 = vpop.permute.xlu0 %141
  %143 = vrot.lane.b32.xlu0 %v80, 64
  %v144 = vpop.permute.xlu0 %143
  %145 = vrot.lane.b32.xlu0 %v81, 64
  %v146 = vpop.permute.xlu0 %145
  %147 = vrot.lane.b32.xlu0 %v82, 64
  %v148 = vpop.permute.xlu0 %147
  %s157 = scalar_lea.vmem %s2, 64
  %158 = vst.msk [vmem:[%s157] sm:$0xf] %vm83, %v134
  %159 = vst.msk [vmem:[%s157 + $0x4] sm:$0xf] %vm83, %v136
  %160 = vst.msk [vmem:[%s157 + $0x8] sm:$0xf] %vm83, %v138
  %161 = vst.msk [vmem:[%s157 + $0xc] sm:$0xf] %vm83, %v140
  %162 = vst.msk [vmem:[%s157 + $0x10] sm:$0xf] %vm83, %v142
  %163 = vst.msk [vmem:[%s157 + $0x14] sm:$0xf] %vm83, %v144
  %164 = vst.msk [vmem:[%s157 + $0x18] sm:$0xf] %vm83, %v146
  %165 = vst.msk [vmem:[%s157 + $0x1c] sm:$0xf] %vm83, %v148
  %174 = vrot.lane.b32.xlu0 %v56, 32
  %v175 = vpop.permute.xlu0 %174
  %176 = vrot.lane.b32.xlu0 %v58, 32
  %v177 = vpop.permute.xlu0 %176
  %178 = vrot.lane.b32.xlu0 %v61, 32
  %v179 = vpop.permute.xlu0 %178
  %180 = vrot.lane.b32.xlu0 %v63, 32
  %v181 = vpop.permute.xlu0 %180
  %182 = vrot.lane.b32.xlu0 %v66, 32
  %v183 = vpop.permute.xlu0 %182
  %184 = vrot.lane.b32.xlu0 %v68, 32
  %v185 = vpop.permute.xlu0 %184
  %186 = vrot.lane.b32.xlu0 %v71, 32
  %v187 = vpop.permute.xlu0 %186
  %188 = vrot.lane.b32.xlu0 %v73, 32
  %v189 = vpop.permute.xlu0 %188
  %vm198 = vcmask 23552
  %199 = vst.msk [vmem:[%s3] sm:$0xff] %vm198, %v175
  %200 = vst.msk [vmem:[%s3 + $0x8] sm:$0xff] %vm198, %v177
  %201 = vst.msk [vmem:[%s3 + $0x10] sm:$0xff] %vm198, %v179
  %202 = vst.msk [vmem:[%s3 + $0x18] sm:$0xff] %vm198, %v181
  %203 = vst.msk [vmem:[%s3 + $0x20] sm:$0xff] %vm198, %v183
  %204 = vst.msk [vmem:[%s3 + $0x28] sm:$0xff] %vm198, %v185
  %205 = vst.msk [vmem:[%s3 + $0x30] sm:$0xff] %vm198, %v187
  %206 = vst.msk [vmem:[%s3 + $0x38] sm:$0xff] %vm198, %v189
  %207 = vrot.lane.b32.xlu0 %v56, 29
  %v208 = vpop.permute.xlu0 %207
  %209 = vrot.lane.b32.xlu0 %v58, 29
  %v210 = vpop.permute.xlu0 %209
  %211 = vrot.lane.b32.xlu0 %v61, 29
  %v212 = vpop.permute.xlu0 %211
  %213 = vrot.lane.b32.xlu0 %v63, 29
  %v214 = vpop.permute.xlu0 %213
  %215 = vrot.lane.b32.xlu0 %v66, 29
  %v216 = vpop.permute.xlu0 %215
  %217 = vrot.lane.b32.xlu0 %v68, 29
  %v218 = vpop.permute.xlu0 %217
  %219 = vrot.lane.b32.xlu0 %v71, 29
  %v220 = vpop.permute.xlu0 %219
  %221 = vrot.lane.b32.xlu0 %v73, 29
  %v222 = vpop.permute.xlu0 %221
  %231 = vst.msk [vmem:[%s4] sm:$0xff] %vm198, %v208
  %232 = vst.msk [vmem:[%s4 + $0x8] sm:$0xff] %vm198, %v210
  %233 = vst.msk [vmem:[%s4 + $0x10] sm:$0xff] %vm198, %v212
  %234 = vst.msk [vmem:[%s4 + $0x18] sm:$0xff] %vm198, %v214
  %235 = vst.msk [vmem:[%s4 + $0x20] sm:$0xff] %vm198, %v216
  %236 = vst.msk [vmem:[%s4 + $0x28] sm:$0xff] %vm198, %v218
  %237 = vst.msk [vmem:[%s4 + $0x30] sm:$0xff] %vm198, %v220
  %238 = vst.msk [vmem:[%s4 + $0x38] sm:$0xff] %vm198, %v222
  // Predicated region
  $region10: #{gat_model_forward.9} parent=0 // pred_check
    _
  $region11: #{gat_model_forward.9} parent=0 // pred_check_branch
    %240 = sbr.rel (0) target = $region13
  $region12: #{gat_model_forward.9} parent=0 // pred_region
    _
  $region13: #{gat_model_forward.9} parent=0 // pred_fallthru
    _
  // Predicated region
  $region14: #{gat_model_forward.9} parent=0 // pred_check
    _
  $region15: #{gat_model_forward.9} parent=0 // pred_check_branch
    %242 = sbr.rel (0) target = $region17
  $region16: #{gat_model_forward.9} parent=0 // pred_region
    _
  $region17: #{gat_model_forward.9} parent=0 // pred_fallthru
    _
  // Predicated region
  $region18: #{gat_model_forward.9} parent=0 // pred_check
    _
  $region19: #{gat_model_forward.9} parent=0 // pred_check_branch
    %244 = sbr.rel (0) target = $region21
  $region20: #{gat_model_forward.9} parent=0 // pred_region
    _
  $region21: #{gat_model_forward.9} parent=0 // pred_fallthru
    _
  // Predicated region
  $region22: #{gat_model_forward.9} parent=0 // pred_check
    _
  $region23: #{gat_model_forward.9} parent=0 // pred_check_branch
    %246 = sbr.rel (0) target = $region25
  $region24: #{gat_model_forward.9} parent=0 // pred_region
    _
  $region25: #{gat_model_forward.9} parent=0 // pred_fallthru
    _
  // Predicated region
  $region26: #{gat_model_forward.9} parent=0 // pred_check
    _
  $region27: #{gat_model_forward.9} parent=0 // pred_check_branch
    %248 = sbr.rel (0) target = $region29
  $region28: #{gat_model_forward.9} parent=0 // pred_region
    _
  $region29: #{gat_model_forward.9} parent=0 // pred_fallthru
    _
  // Predicated region
  $region30: #{gat_model_forward.9} parent=0 // pred_check
    _
  $region31: #{gat_model_forward.9} parent=0 // pred_check_branch
    %250 = sbr.rel (0) target = $region33
  $region32: #{gat_model_forward.9} parent=0 // pred_region
    _
  $region33: #{gat_model_forward.9} parent=0 // pred_fallthru
    _

// kernel: gat_model_forward.7
$region0: #{gat_model_forward.7}
  #allocation0 [shape = 'u32[]', space=smem, size = 0x4, offset = 0x4, fixed_abs, tag = 'smem constant byte address 0x4 - core index']
  #allocation1 [shape = 'u32[72,128]{1,0:T(1,128)}', space=vmem, size = 0x9000, scoped, tag = 'internal scratch']
  %s0 = inlined_call_operand.vmem [shape: f32[64,8], index: 0, kind: input, shape index: {}]
  %s1 = inlined_call_operand.vmem [shape: f32[8,16], index: 1, kind: input, shape index: {}]
  %s2 = inlined_call_operand.vmem [shape: f32[1,16], index: 2, kind: input, shape index: {}]
  %s3 = inlined_call_operand.vmem [shape: f32[16,32], index: 3, kind: input, shape index: {}]
  %s4 = inlined_call_operand.vmem [shape: f32[1,32], index: 4, kind: input, shape index: {}]
  %s5 = inlined_call_operand.vmem [shape: f32[64,32], index: 5, kind: output, shape index: {}]
  %s6 = sld [smem:[#allocation0]]
  $region30: #{gat_model_forward.7} parent=0
    _
  %s8 = ssub.s32 1, %s6
  %s9 = scalar_select 0, %s8, %s6
  // Predicated region
  $region2: #{gat_model_forward.7} parent=0 // pred_check
    _
  $region3: #{gat_model_forward.7} parent=0 // pred_check_branch
    %11 = sbr.rel (0) target = $region5
  $region4: #{gat_model_forward.7} parent=0 // pred_region
    _
  $region5: #{gat_model_forward.7} parent=0 // pred_fallthru
    _
  // Predicated region
  $region6: #{gat_model_forward.7} parent=0 // pred_check
    _
  $region7: #{gat_model_forward.7} parent=0 // pred_check_branch
    %13 = sbr.rel (0) target = $region9
  $region8: #{gat_model_forward.7} parent=0 // pred_region
    _
  $region9: #{gat_model_forward.7} parent=0 // pred_fallthru
    _
  // Predicated region
  $region10: #{gat_model_forward.7} parent=0 // pred_check
    _
  $region11: #{gat_model_forward.7} parent=0 // pred_check_branch
    %15 = sbr.rel (0) target = $region13
  $region12: #{gat_model_forward.7} parent=0 // pred_region
    _
  $region13: #{gat_model_forward.7} parent=0 // pred_fallthru
    _
  // Predicated region
  $region14: #{gat_model_forward.7} parent=0 // pred_check
    _
  $region15: #{gat_model_forward.7} parent=0 // pred_check_branch
    %17 = sbr.rel (0) target = $region17
  $region16: #{gat_model_forward.7} parent=0 // pred_region
    _
  $region17: #{gat_model_forward.7} parent=0 // pred_fallthru
    _
  // Predicated region
  $region18: #{gat_model_forward.7} parent=0 // pred_check
    _
  $region19: #{gat_model_forward.7} parent=0 // pred_check_branch
    %19 = sbr.rel (0) target = $region21
  $region20: #{gat_model_forward.7} parent=0 // pred_region
    _
  $region21: #{gat_model_forward.7} parent=0 // pred_fallthru
    _
  %v21 = vld [vmem:[%s0] sm:$0xff]
  %v22 = vld [vmem:[%s0 + $0x8] sm:$0xff]
  %v23 = vld [vmem:[%s0 + $0x10] sm:$0xff]
  %v24 = vld [vmem:[%s0 + $0x18] sm:$0xff]
  %v25 = vld [vmem:[%s0 + $0x20] sm:$0xff]
  %v26 = vld [vmem:[%s0 + $0x28] sm:$0xff]
  %v27 = vld [vmem:[%s0 + $0x30] sm:$0xff]
  %v28 = vld [vmem:[%s0 + $0x38] sm:$0xff]
  %v29 = vpack.c.bf16 %v22, %v21
  %v30 = vpack.c.bf16 %v24, %v23
  %v31 = vpack.c.bf16 %v26, %v25
  %v32 = vpack.c.bf16 %v28, %v27
  %v33 = vld [vmem:[%s1] sm:$0xff]
  %v34 = vpack.c.bf16 %v33, %v33
  %v35 = vld [vmem:[%s2] sm:$0x1]
  %v37 = vperm.slane %v35, 0
  %vm39 = vcmask 64512
  %v41 = vsel %vm39, %v29, 0
  %v44 = vsel %vm39, %v30, 0
  %v47 = vsel %vm39, %v31, 0
  %v50 = vsel %vm39, %v32, 0
  %vm52 = vcmask 1043456
  %v54 = vsel %vm52, %v34, 0
  %56 = vmatpush.bf16.msra.mxu0 0
  %57 = vmatpush.bf16.msra.mxu0 0
  %58 = vmatpush.bf16.msra.mxu0 0
  %59 = vmatpush.bf16.msra.mxu0 0
  %60 = vmatpush.bf16.msra.mxu0 0
  %61 = vmatpush.bf16.msra.mxu0 0
  %62 = vmatpush.bf16.msra.mxu0 0
  %63 = vmatpush.bf16.msra.mxu0 %v54
  %64 = vmatmul.bf16.gmra.mxu0 %v41
  %v65 = vpop.f32.mrf.mxu0
  %v66 = vadd.f32 %v37, %v65
  %v67 = vpop.f32.mrf.mxu0
  %v68 = vadd.f32 %v37, %v67
  %69 = vmatmul.bf16.gmra.mxu0 %v44
  %v70 = vpop.f32.mrf.mxu0
  %v71 = vadd.f32 %v37, %v70
  %v72 = vpop.f32.mrf.mxu0
  %v73 = vadd.f32 %v37, %v72
  %74 = vmatmul.bf16.gmra.mxu0 %v47
  %v75 = vpop.f32.mrf.mxu0
  %v76 = vadd.f32 %v37, %v75
  %v77 = vpop.f32.mrf.mxu0
  %v78 = vadd.f32 %v37, %v77
  %79 = vmatmul.bf16.gmra.mxu0 %v50
  %v80 = vpop.f32.mrf.mxu0
  %v81 = vadd.f32 %v37, %v80
  %v82 = vpop.f32.mrf.mxu0
  %v83 = vadd.f32 %v37, %v82
  %84 = vdwg.mxu0
  %v85 = vmax.f32 %v66, 0.0
  %v86 = vmax.f32 %v68, 0.0
  %v87 = vmax.f32 %v71, 0.0
  %v88 = vmax.f32 %v73, 0.0
  %v89 = vmax.f32 %v76, 0.0
  %v90 = vmax.f32 %v78, 0.0
  %v91 = vmax.f32 %v81, 0.0
  %v92 = vmax.f32 %v83, 0.0
  %v93 = vpack.c.bf16 %v86, %v85
  %v94 = vpack.c.bf16 %v88, %v87
  %v95 = vpack.c.bf16 %v90, %v89
  %v96 = vpack.c.bf16 %v92, %v91
  %v97 = vld [vmem:[%s3] sm:$0xff]
  %v98 = vld [vmem:[%s3 + $0x8] sm:$0xff]
  %v99 = vpack.c.bf16 %v98, %v97
  %v100 = vld [vmem:[%s4] sm:$0x1]
  %v102 = vperm.slane %v100, 0
  %vm104 = vcmask 130048
  %v106 = vsel %vm104, %v93, 0
  %v109 = vsel %vm104, %v94, 0
  %v112 = vsel %vm104, %v95, 0
  %v115 = vsel %vm104, %v96, 0
  %117 = vmatpush.bf16.msra.mxu0 0
  %118 = vmatpush.bf16.msra.mxu0 0
  %119 = vmatpush.bf16.msra.mxu0 0
  %120 = vmatpush.bf16.msra.mxu0 0
  %121 = vmatpush.bf16.msra.mxu0 0
  %122 = vmatpush.bf16.msra.mxu0 0
  %123 = vmatpush.bf16.msra.mxu0 0
  %124 = vmatpush.bf16.msra.mxu0 %v99
  %125 = vmatmul.bf16.gmra.mxu0 %v106
  %v126 = vpop.f32.mrf.mxu0
  %v127 = vadd.f32 %v102, %v126
  %v128 = vpop.f32.mrf.mxu0
  %v129 = vadd.f32 %v102, %v128
  %130 = vmatmul.bf16.gmra.mxu0 %v109
  %v131 = vpop.f32.mrf.mxu0
  %v132 = vadd.f32 %v102, %v131
  %v133 = vpop.f32.mrf.mxu0
  %v134 = vadd.f32 %v102, %v133
  %135 = vmatmul.bf16.gmra.mxu0 %v112
  %v136 = vpop.f32.mrf.mxu0
  %v137 = vadd.f32 %v102, %v136
  %v138 = vpop.f32.mrf.mxu0
  %v139 = vadd.f32 %v102, %v138
  %140 = vmatmul.bf16.gmra.mxu0 %v115
  %v141 = vpop.f32.mrf.mxu0
  %v142 = vadd.f32 %v102, %v141
  %v143 = vpop.f32.mrf.mxu0
  %v144 = vadd.f32 %v102, %v143
  %145 = vdwg.mxu0
  %vm146 = vcmask 261120
  %147 = vst.msk [vmem:[%s5] sm:$0xff] %vm146, %v127
  %148 = vst.msk [vmem:[%s5 + $0x8] sm:$0xff] %vm146, %v129
  %149 = vst.msk [vmem:[%s5 + $0x10] sm:$0xff] %vm146, %v132
  %150 = vst.msk [vmem:[%s5 + $0x18] sm:$0xff] %vm146, %v134
  %151 = vst.msk [vmem:[%s5 + $0x20] sm:$0xff] %vm146, %v137
  %152 = vst.msk [vmem:[%s5 + $0x28] sm:$0xff] %vm146, %v139
  %153 = vst.msk [vmem:[%s5 + $0x30] sm:$0xff] %vm146, %v142
  %154 = vst.msk [vmem:[%s5 + $0x38] sm:$0xff] %vm146, %v144
  // Predicated region
  $region22: #{gat_model_forward.7} parent=0 // pred_check
    _
  $region23: #{gat_model_forward.7} parent=0 // pred_check_branch
    %156 = sbr.rel (0) target = $region25
  $region24: #{gat_model_forward.7} parent=0 // pred_region
    _
  $region25: #{gat_model_forward.7} parent=0 // pred_fallthru
    _
  // Predicated region
  $region26: #{gat_model_forward.7} parent=0 // pred_check
    _
  $region27: #{gat_model_forward.7} parent=0 // pred_check_branch
    %158 = sbr.rel (0) target = $region29
  $region28: #{gat_model_forward.7} parent=0 // pred_region
    _
  $region29: #{gat_model_forward.7} parent=0 // pred_fallthru
    _

// kernel: gat_model_forward.10
$region0: #{gat_model_forward.10}
  #allocation0 [shape = 'u32[]', space=smem, size = 0x4, offset = 0x4, fixed_abs, tag = 'smem constant byte address 0x4 - core index']
  #allocation1 [shape = 'u32[72,128]{1,0:T(1,128)}', space=vmem, size = 0x9000, scoped, tag = 'internal scratch']
  #allocation2 [shape = 'f32[64,3]{1,0:T(8,128)}', space=vmem, size = 0x8000, scoped, tag = 'scratch operand']
  #allocation3 [shape = 'f32[64,3]{1,0:T(8,128)}', space=vmem, size = 0x8000, scoped, tag = 'scratch operand']
  #allocation4 [shape = 'f32[3,64,32]{2,1,0:T(8,128)}', space=vmem, size = 0x18000, scoped, tag = 'scratch operand']
  #allocation5 [shape = 's32[1]{0}', space=sflag, size = 0x4, scoped, tag = 'scoped memory for gat_model_forward.10']
  #allocation6 [shape = 's32[1]{0:T(128)S(6)}', space=smem, size = 0x200, scoped, tag = 'prefetched SMEM operand 0']
  %s0 = inlined_call_operand.<no memory space> [shape: s32[1], index: 0, kind: input, shape index: {}]
  %s1 = inlined_call_operand.vmem [shape: f32[64,3], index: 1, kind: input, shape index: {}]
  %s2 = inlined_call_operand.vmem [shape: f32[3,64], index: 2, kind: input, shape index: {}]
  %s3 = inlined_call_operand.vmem [shape: bf16[3,64,32], index: 3, kind: input, shape index: {}]
  %s4 = inlined_call_operand.vmem [shape: s8[64,64], index: 4, kind: input, shape index: {}]
  %s5 = inlined_call_operand.vmem [shape: f32[1,32], index: 5, kind: input, shape index: {}]
  %s6 = inlined_call_operand.vmem [shape: f32[64,32], index: 6, kind: output, shape index: {}]
  %s7 = sld [smem:[#allocation0]]
  $region42: #{gat_model_forward.10} parent=0
    _
  %s9 = ssub.s32 1, %s7
  %s10 = scalar_select 0, %s9, %s7
  %11 = sst [smem:[#allocation6]] %s0
  // Predicated region
  $region2: #{gat_model_forward.10} parent=0 // pred_check
    _
  $region3: #{gat_model_forward.10} parent=0 // pred_check_branch
    %13 = sbr.rel (0) target = $region5
  $region4: #{gat_model_forward.10} parent=0 // pred_region
    _
  $region5: #{gat_model_forward.10} parent=0 // pred_fallthru
    _
  // Predicated region
  $region6: #{gat_model_forward.10} parent=0 // pred_check
    _
  $region7: #{gat_model_forward.10} parent=0 // pred_check_branch
    %15 = sbr.rel (0) target = $region9
  $region8: #{gat_model_forward.10} parent=0 // pred_region
    _
  $region9: #{gat_model_forward.10} parent=0 // pred_fallthru
    _
  // Predicated region
  $region10: #{gat_model_forward.10} parent=0 // pred_check
    _
  $region11: #{gat_model_forward.10} parent=0 // pred_check_branch
    %17 = sbr.rel (0) target = $region13
  $region12: #{gat_model_forward.10} parent=0 // pred_region
    _
  $region13: #{gat_model_forward.10} parent=0 // pred_fallthru
    _
  // Predicated region
  $region14: #{gat_model_forward.10} parent=0 // pred_check
    _
  $region15: #{gat_model_forward.10} parent=0 // pred_check_branch
    %19 = sbr.rel (0) target = $region17
  $region16: #{gat_model_forward.10} parent=0 // pred_region
    _
  $region17: #{gat_model_forward.10} parent=0 // pred_fallthru
    _
  // Predicated region
  $region18: #{gat_model_forward.10} parent=0 // pred_check
    _
  $region19: #{gat_model_forward.10} parent=0 // pred_check_branch
    %21 = sbr.rel (0) target = $region21
  $region20: #{gat_model_forward.10} parent=0 // pred_region
    _
  $region21: #{gat_model_forward.10} parent=0 // pred_fallthru
    _
  %p25 = scmp.eq.s32.totalorder 0, 0
  // Predicated region
  $region22: #{gat_model_forward.10} parent=0 // pred_check
    %p26 = pneg %p25
  $region23: #{gat_model_forward.10} parent=0 // pred_check_branch
    %28 = sbr.rel (%p26) target = $region25
  $region24: #{gat_model_forward.10} parent=0 // pred_region
    %vm29 = vcmask 23552
    %30 = vst.msk [vmem:[#allocation2] sm:$0xff] %vm29, -1e+09
    %31 = vst.msk [vmem:[#allocation2 + $0x8] sm:$0xff] %vm29, -1e+09
    %32 = vst.msk [vmem:[#allocation2 + $0x10] sm:$0xff] %vm29, -1e+09
    %33 = vst.msk [vmem:[#allocation2 + $0x18] sm:$0xff] %vm29, -1e+09
    %34 = vst.msk [vmem:[#allocation2 + $0x20] sm:$0xff] %vm29, -1e+09
    %35 = vst.msk [vmem:[#allocation2 + $0x28] sm:$0xff] %vm29, -1e+09
    %36 = vst.msk [vmem:[#allocation2 + $0x30] sm:$0xff] %vm29, -1e+09
    %37 = vst.msk [vmem:[#allocation2 + $0x38] sm:$0xff] %vm29, -1e+09
    %38 = vst.msk [vmem:[#allocation3] sm:$0xff] %vm29, 0.0
    %39 = vst.msk [vmem:[#allocation3 + $0x8] sm:$0xff] %vm29, 0.0
    %40 = vst.msk [vmem:[#allocation3 + $0x10] sm:$0xff] %vm29, 0.0
    %41 = vst.msk [vmem:[#allocation3 + $0x18] sm:$0xff] %vm29, 0.0
    %42 = vst.msk [vmem:[#allocation3 + $0x20] sm:$0xff] %vm29, 0.0
    %43 = vst.msk [vmem:[#allocation3 + $0x28] sm:$0xff] %vm29, 0.0
    %44 = vst.msk [vmem:[#allocation3 + $0x30] sm:$0xff] %vm29, 0.0
    %45 = vst.msk [vmem:[#allocation3 + $0x38] sm:$0xff] %vm29, 0.0
    %vm46 = vcmask 261120
    %47 = vst.msk [vmem:[#allocation4] sm:$0xff] %vm46, 0.0
    %48 = vst.msk [vmem:[#allocation4 + $0x8] sm:$0xff] %vm46, 0.0
    %49 = vst.msk [vmem:[#allocation4 + $0x10] sm:$0xff] %vm46, 0.0
    %50 = vst.msk [vmem:[#allocation4 + $0x18] sm:$0xff] %vm46, 0.0
    %51 = vst.msk [vmem:[#allocation4 + $0x20] sm:$0xff] %vm46, 0.0
    %52 = vst.msk [vmem:[#allocation4 + $0x28] sm:$0xff] %vm46, 0.0
    %53 = vst.msk [vmem:[#allocation4 + $0x30] sm:$0xff] %vm46, 0.0
    %54 = vst.msk [vmem:[#allocation4 + $0x38] sm:$0xff] %vm46, 0.0
    %55 = vst.msk [vmem:[#allocation4 + $0x40] sm:$0xff] %vm46, 0.0
    %56 = vst.msk [vmem:[#allocation4 + $0x48] sm:$0xff] %vm46, 0.0
    %57 = vst.msk [vmem:[#allocation4 + $0x50] sm:$0xff] %vm46, 0.0
    %58 = vst.msk [vmem:[#allocation4 + $0x58] sm:$0xff] %vm46, 0.0
    %59 = vst.msk [vmem:[#allocation4 + $0x60] sm:$0xff] %vm46, 0.0
    %60 = vst.msk [vmem:[#allocation4 + $0x68] sm:$0xff] %vm46, 0.0
    %61 = vst.msk [vmem:[#allocation4 + $0x70] sm:$0xff] %vm46, 0.0
    %62 = vst.msk [vmem:[#allocation4 + $0x78] sm:$0xff] %vm46, 0.0
    %63 = vst.msk [vmem:[#allocation4 + $0x80] sm:$0xff] %vm46, 0.0
    %64 = vst.msk [vmem:[#allocation4 + $0x88] sm:$0xff] %vm46, 0.0
    %65 = vst.msk [vmem:[#allocation4 + $0x90] sm:$0xff] %vm46, 0.0
    %66 = vst.msk [vmem:[#allocation4 + $0x98] sm:$0xff] %vm46, 0.0
    %67 = vst.msk [vmem:[#allocation4 + $0xa0] sm:$0xff] %vm46, 0.0
    %68 = vst.msk [vmem:[#allocation4 + $0xa8] sm:$0xff] %vm46, 0.0
    %69 = vst.msk [vmem:[#allocation4 + $0xb0] sm:$0xff] %vm46, 0.0
    %70 = vst.msk [vmem:[#allocation4 + $0xb8] sm:$0xff] %vm46, 0.0
  $region25: #{gat_model_forward.10} parent=0 // pred_fallthru
    _
  %s71 = sadd.s32 0, 0
  %s72 = sld [smem:[#allocation6 + %s71]]
  %p73 = scmp.gt.s32.totalorder %s72, 0
  // Predicated region
  $region26: #{gat_model_forward.10} parent=0 // pred_check
    %p74 = pneg %p73
  $region27: #{gat_model_forward.10} parent=0 // pred_check_branch
    %76 = sbr.rel (%p74) target = $region29
  $region28: #{gat_model_forward.10} parent=0 // pred_region
    %v77 = vld [vmem:[%s4] sm:$0xff]
    %v78 = vld [vmem:[%s4 + $0x8] sm:$0xff]
    %vm79 = vnez %v77
    %vm80 = vnez %v78
    %s81 = smul.u32 0, 64
    %v82 = vld [vmem:[%s1] sm:$0xff]
    %v83 = vld [vmem:[%s1 + $0x8] sm:$0xff]
    %v84 = vld [vmem:[%s1 + $0x10] sm:$0xff]
    %v85 = vld [vmem:[%s1 + $0x18] sm:$0xff]
    %v86 = vld [vmem:[%s1 + $0x20] sm:$0xff]
    %v87 = vld [vmem:[%s1 + $0x28] sm:$0xff]
    %v88 = vld [vmem:[%s1 + $0x30] sm:$0xff]
    %v89 = vld [vmem:[%s1 + $0x38] sm:$0xff]
    %v90 = vld [vmem:[%s2] sm:$0x1]
    %92 = vset.pattern.permute.xlu0 0
    %93 = vperm.xlu0 %92, %v82
    %v94 = vpop.permute.xlu0 %93
    %97 = vset.pattern.permute.xlu0 0
    %98 = vperm.xlu0 %97, %v83
    %v99 = vpop.permute.xlu0 %98
    %102 = vset.pattern.permute.xlu0 0
    %103 = vperm.xlu0 %102, %v84
    %v104 = vpop.permute.xlu0 %103
    %107 = vset.pattern.permute.xlu0 0
    %108 = vperm.xlu0 %107, %v85
    %v109 = vpop.permute.xlu0 %108
    %112 = vset.pattern.permute.xlu0 0
    %113 = vperm.xlu0 %112, %v86
    %v114 = vpop.permute.xlu0 %113
    %117 = vset.pattern.permute.xlu0 0
    %118 = vperm.xlu0 %117, %v87
    %v119 = vpop.permute.xlu0 %118
    %122 = vset.pattern.permute.xlu0 0
    %123 = vperm.xlu0 %122, %v88
    %v124 = vpop.permute.xlu0 %123
    %127 = vset.pattern.permute.xlu0 0
    %128 = vperm.xlu0 %127, %v89
    %v129 = vpop.permute.xlu0 %128
    %v131 = vperm.slane %v90, 0
    %v132 = vadd.f32 %v94, %v131
    %v133 = vadd.f32 %v99, %v131
    %v134 = vadd.f32 %v104, %v131
    %v135 = vadd.f32 %v109, %v131
    %v136 = vadd.f32 %v114, %v131
    %v137 = vadd.f32 %v119, %v131
    %v138 = vadd.f32 %v124, %v131
    %v139 = vadd.f32 %v129, %v131
    %vm140 = vcmp.gt.f32.partialorder %v132, 0.0
    %vm141 = vcmp.gt.f32.partialorder %v133, 0.0
    %vm142 = vcmp.gt.f32.partialorder %v134, 0.0
    %vm143 = vcmp.gt.f32.partialorder %v135, 0.0
    %vm144 = vcmp.gt.f32.partialorder %v136, 0.0
    %vm145 = vcmp.gt.f32.partialorder %v137, 0.0
    %vm146 = vcmp.gt.f32.partialorder %v138, 0.0
    %vm147 = vcmp.gt.f32.partialorder %v139, 0.0
    %v148 = vmul.f32 %v132, 0.2
    %v149 = vmul.f32 %v133, 0.2
    %v150 = vmul.f32 %v134, 0.2
    %v151 = vmul.f32 %v135, 0.2
    %v152 = vmul.f32 %v136, 0.2
    %v153 = vmul.f32 %v137, 0.2
    %v154 = vmul.f32 %v138, 0.2
    %v155 = vmul.f32 %v139, 0.2
    %v156 = vsel %vm140, %v132, %v148
    %v157 = vsel %vm141, %v133, %v149
    %v158 = vsel %vm142, %v134, %v150
    %v159 = vsel %vm143, %v135, %v151
    %v160 = vsel %vm144, %v136, %v152
    %v161 = vsel %vm145, %v137, %v153
    %v162 = vsel %vm146, %v138, %v154
    %v163 = vsel %vm147, %v139, %v155
    %v164 = vsel %vm79, 16843009, 0
    %v165 = vsel %vm80, 16843009, 0
    %v166 = vunpack.c.0.s8 %v164
    %v167 = vunpack.c.1.s8 %v164
    %v168 = vunpack.c.2.s8 %v164
    %v169 = vunpack.c.3.s8 %v164
    %v170 = vunpack.c.0.s8 %v165
    %v171 = vunpack.c.1.s8 %v165
    %v172 = vunpack.c.2.s8 %v165
    %v173 = vunpack.c.3.s8 %v165
    %v174 = vpack.c.b16 %v166, %v166
    %v175 = vpack.c.b8 %v174, %v174
    %v176 = vpack.c.b16 %v167, %v167
    %v177 = vpack.c.b8 %v176, %v176
    %v178 = vpack.c.b16 %v168, %v168
    %v179 = vpack.c.b8 %v178, %v178
    %v180 = vpack.c.b16 %v169, %v169
    %v181 = vpack.c.b8 %v180, %v180
    %v182 = vpack.c.b16 %v170, %v170
    %v183 = vpack.c.b8 %v182, %v182
    %v184 = vpack.c.b16 %v171, %v171
    %v185 = vpack.c.b8 %v184, %v184
    %v186 = vpack.c.b16 %v172, %v172
    %v187 = vpack.c.b8 %v186, %v186
    %v188 = vpack.c.b16 %v173, %v173
    %v189 = vpack.c.b8 %v188, %v188
    %vm190 = vnez %v175
    %vm191 = vnez %v177
    %vm192 = vnez %v179
    %vm193 = vnez %v181
    %vm194 = vnez %v183
    %vm195 = vnez %v185
    %vm196 = vnez %v187
    %vm197 = vnez %v189
    %v198 = vsel %vm190, 16843009, 0
    %v199 = vsel %vm191, 16843009, 0
    %v200 = vsel %vm192, 16843009, 0
    %v201 = vsel %vm193, 16843009, 0
    %v202 = vsel %vm194, 16843009, 0
    %v203 = vsel %vm195, 16843009, 0
    %v204 = vsel %vm196, 16843009, 0
    %v205 = vsel %vm197, 16843009, 0
    %v206 = vunpack.c.0.s8 %v198
    %v207 = vunpack.c.0.s8 %v199
    %v208 = vunpack.c.0.s8 %v200
    %v209 = vunpack.c.0.s8 %v201
    %v210 = vunpack.c.0.s8 %v202
    %v211 = vunpack.c.0.s8 %v203
    %v212 = vunpack.c.0.s8 %v204
    %v213 = vunpack.c.0.s8 %v205
    %vm214 = vcmp.ne.s32.totalorder %v206, 0
    %vm215 = vcmp.ne.s32.totalorder %v207, 0
    %vm216 = vcmp.ne.s32.totalorder %v208, 0
    %vm217 = vcmp.ne.s32.totalorder %v209, 0
    %vm218 = vcmp.ne.s32.totalorder %v210, 0
    %vm219 = vcmp.ne.s32.totalorder %v211, 0
    %vm220 = vcmp.ne.s32.totalorder %v212, 0
    %vm221 = vcmp.ne.s32.totalorder %v213, 0
    %v222 = vsel %vm214, %v156, -1e+09
    %v223 = vsel %vm215, %v157, -1e+09
    %v224 = vsel %vm216, %v158, -1e+09
    %v225 = vsel %vm217, %v159, -1e+09
    %v226 = vsel %vm218, %v160, -1e+09
    %v227 = vsel %vm219, %v161, -1e+09
    %v228 = vsel %vm220, %v162, -1e+09
    %v229 = vsel %vm221, %v163, -1e+09
    %v230 = vld [vmem:[#allocation2] sm:$0xff]
    %v231 = vld [vmem:[#allocation2 + $0x8] sm:$0xff]
    %v232 = vld [vmem:[#allocation2 + $0x10] sm:$0xff]
    %v233 = vld [vmem:[#allocation2 + $0x18] sm:$0xff]
    %v234 = vld [vmem:[#allocation2 + $0x20] sm:$0xff]
    %v235 = vld [vmem:[#allocation2 + $0x28] sm:$0xff]
    %v236 = vld [vmem:[#allocation2 + $0x30] sm:$0xff]
    %v237 = vld [vmem:[#allocation2 + $0x38] sm:$0xff]
    %vm238 = vcmask 523264
    %v239 = vsel %vm238, %v222, -inf
    %240 = vmax.xlane.f32.xlu0 %v239
    %v241 = vpop.xlane.xlu0 %240
    %v242 = vsel %vm238, %v223, -inf
    %243 = vmax.xlane.f32.xlu0 %v242
    %v244 = vpop.xlane.xlu0 %243
    %v245 = vsel %vm238, %v224, -inf
    %246 = vmax.xlane.f32.xlu0 %v245
    %v247 = vpop.xlane.xlu0 %246
    %v248 = vsel %vm238, %v225, -inf
    %249 = vmax.xlane.f32.xlu0 %v248
    %v250 = vpop.xlane.xlu0 %249
    %v251 = vsel %vm238, %v226, -inf
    %252 = vmax.xlane.f32.xlu0 %v251
    %v253 = vpop.xlane.xlu0 %252
    %v254 = vsel %vm238, %v227, -inf
    %255 = vmax.xlane.f32.xlu0 %v254
    %v256 = vpop.xlane.xlu0 %255
    %v257 = vsel %vm238, %v228, -inf
    %258 = vmax.xlane.f32.xlu0 %v257
    %v259 = vpop.xlane.xlu0 %258
    %v260 = vsel %vm238, %v229, -inf
    %261 = vmax.xlane.f32.xlu0 %v260
    %v262 = vpop.xlane.xlu0 %261
    %v263 = vmax.f32 %v230, %v241
    %v264 = vmax.f32 %v231, %v244
    %v265 = vmax.f32 %v232, %v247
    %v266 = vmax.f32 %v233, %v250
    %v267 = vmax.f32 %v234, %v253
    %v268 = vmax.f32 %v235, %v256
    %v269 = vmax.f32 %v236, %v259
    %v270 = vmax.f32 %v237, %v262
    %v271 = vsub.f32 %v230, %v263
    %v272 = vsub.f32 %v231, %v264
    %v273 = vsub.f32 %v232, %v265
    %v274 = vsub.f32 %v233, %v266
    %v275 = vsub.f32 %v234, %v267
    %v276 = vsub.f32 %v235, %v268
    %v277 = vsub.f32 %v236, %v269
    %v278 = vsub.f32 %v237, %v270
    %v279 = vmul.f32 %v271, 1.442695
    %v280 = vpow.pop %v279
    %v281 = vmul.f32 %v272, 1.442695
    %v282 = vpow.pop %v281
    %v283 = vmul.f32 %v273, 1.442695
    %v284 = vpow.pop %v283
    %v285 = vmul.f32 %v274, 1.442695
    %v286 = vpow.pop %v285
    %v287 = vmul.f32 %v275, 1.442695
    %v288 = vpow.pop %v287
    %v289 = vmul.f32 %v276, 1.442695
    %v290 = vpow.pop %v289
    %v291 = vmul.f32 %v277, 1.442695
    %v292 = vpow.pop %v291
    %v293 = vmul.f32 %v278, 1.442695
    %v294 = vpow.pop %v293
    %296 = vset.pattern.permute.xlu0 0
    %297 = vperm.xlu0 %296, %v263
    %v298 = vpop.permute.xlu0 %297
    %301 = vset.pattern.permute.xlu0 0
    %302 = vperm.xlu0 %301, %v264
    %v303 = vpop.permute.xlu0 %302
    %306 = vset.pattern.permute.xlu0 0
    %307 = vperm.xlu0 %306, %v265
    %v308 = vpop.permute.xlu0 %307
    %311 = vset.pattern.permute.xlu0 0
    %312 = vperm.xlu0 %311, %v266
    %v313 = vpop.permute.xlu0 %312
    %316 = vset.pattern.permute.xlu0 0
    %317 = vperm.xlu0 %316, %v267
    %v318 = vpop.permute.xlu0 %317
    %321 = vset.pattern.permute.xlu0 0
    %322 = vperm.xlu0 %321, %v268
    %v323 = vpop.permute.xlu0 %322
    %326 = vset.pattern.permute.xlu0 0
    %327 = vperm.xlu0 %326, %v269
    %v328 = vpop.permute.xlu0 %327
    %331 = vset.pattern.permute.xlu0 0
    %332 = vperm.xlu0 %331, %v270
    %v333 = vpop.permute.xlu0 %332
    %v335 = vsub.f32 %v222, %v298
    %v336 = vsub.f32 %v223, %v303
    %v337 = vsub.f32 %v224, %v308
    %v338 = vsub.f32 %v225, %v313
    %v339 = vsub.f32 %v226, %v318
    %v340 = vsub.f32 %v227, %v323
    %v341 = vsub.f32 %v228, %v328
    %v342 = vsub.f32 %v229, %v333
    %v343 = vmul.f32 %v335, 1.442695
    %v344 = vpow.pop %v343
    %v345 = vmul.f32 %v336, 1.442695
    %v346 = vpow.pop %v345
    %v347 = vmul.f32 %v337, 1.442695
    %v348 = vpow.pop %v347
    %v349 = vmul.f32 %v338, 1.442695
    %v350 = vpow.pop %v349
    %v351 = vmul.f32 %v339, 1.442695
    %v352 = vpow.pop %v351
    %v353 = vmul.f32 %v340, 1.442695
    %v354 = vpow.pop %v353
    %v355 = vmul.f32 %v341, 1.442695
    %v356 = vpow.pop %v355
    %v357 = vmul.f32 %v342, 1.442695
    %v358 = vpow.pop %v357
    %v359 = vld [vmem:[#allocation3] sm:$0xff]
    %v360 = vld [vmem:[#allocation3 + $0x8] sm:$0xff]
    %v361 = vld [vmem:[#allocation3 + $0x10] sm:$0xff]
    %v362 = vld [vmem:[#allocation3 + $0x18] sm:$0xff]
    %v363 = vld [vmem:[#allocation3 + $0x20] sm:$0xff]
    %v364 = vld [vmem:[#allocation3 + $0x28] sm:$0xff]
    %v365 = vld [vmem:[#allocation3 + $0x30] sm:$0xff]
    %v366 = vld [vmem:[#allocation3 + $0x38] sm:$0xff]
    %v367 = vmul.f32 %v280, %v359
    %v368 = vmul.f32 %v282, %v360
    %v369 = vmul.f32 %v284, %v361
    %v370 = vmul.f32 %v286, %v362
    %v371 = vmul.f32 %v288, %v363
    %v372 = vmul.f32 %v290, %v364
    %v373 = vmul.f32 %v292, %v365
    %v374 = vmul.f32 %v294, %v366
    %v375 = vsel %vm238, %v344, 0.0
    %376 = vadd.xlane.f32.xlu0 %v375
    %v377 = vpop.xlane.xlu0 %376
    %v378 = vsel %vm238, %v346, 0.0
    %379 = vadd.xlane.f32.xlu0 %v378
    %v380 = vpop.xlane.xlu0 %379
    %v381 = vsel %vm238, %v348, 0.0
    %382 = vadd.xlane.f32.xlu0 %v381
    %v383 = vpop.xlane.xlu0 %382
    %v384 = vsel %vm238, %v350, 0.0
    %385 = vadd.xlane.f32.xlu0 %v384
    %v386 = vpop.xlane.xlu0 %385
    %v387 = vsel %vm238, %v352, 0.0
    %388 = vadd.xlane.f32.xlu0 %v387
    %v389 = vpop.xlane.xlu0 %388
    %v390 = vsel %vm238, %v354, 0.0
    %391 = vadd.xlane.f32.xlu0 %v390
    %v392 = vpop.xlane.xlu0 %391
    %v393 = vsel %vm238, %v356, 0.0
    %394 = vadd.xlane.f32.xlu0 %v393
    %v395 = vpop.xlane.xlu0 %394
    %v396 = vsel %vm238, %v358, 0.0
    %397 = vadd.xlane.f32.xlu0 %v396
    %v398 = vpop.xlane.xlu0 %397
    %v399 = vadd.f32 %v367, %v377
    %v400 = vadd.f32 %v368, %v380
    %v401 = vadd.f32 %v369, %v383
    %v402 = vadd.f32 %v370, %v386
    %v403 = vadd.f32 %v371, %v389
    %v404 = vadd.f32 %v372, %v392
    %v405 = vadd.f32 %v373, %v395
    %v406 = vadd.f32 %v374, %v398
    %vm407 = vcmask 7168
    %408 = vst.msk [vmem:[#allocation3] sm:$0xff] %vm407, %v399
    %409 = vst.msk [vmem:[#allocation3 + $0x8] sm:$0xff] %vm407, %v400
    %410 = vst.msk [vmem:[#allocation3 + $0x10] sm:$0xff] %vm407, %v401
    %411 = vst.msk [vmem:[#allocation3 + $0x18] sm:$0xff] %vm407, %v402
    %412 = vst.msk [vmem:[#allocation3 + $0x20] sm:$0xff] %vm407, %v403
    %413 = vst.msk [vmem:[#allocation3 + $0x28] sm:$0xff] %vm407, %v404
    %414 = vst.msk [vmem:[#allocation3 + $0x30] sm:$0xff] %vm407, %v405
    %415 = vst.msk [vmem:[#allocation3 + $0x38] sm:$0xff] %vm407, %v406
    %s416 = sshra.s32 %s81, 3
    %s417 = sand.u32 %s81, 7
    %s418 = smul.addr %s416, 4
    %s419 = scalar_lea.vmem %s3, %s418
    %v420 = vld [vmem:[%s419] sm:$0xf]
    %v421 = vld [vmem:[%s419 + $0x4] sm:$0xf]
    %v422 = vld [vmem:[%s419 + $0x8] sm:$0xf]
    %v423 = vld [vmem:[%s419 + $0xc] sm:$0xf]
    %v424 = vld [vmem:[%s419 + $0x10] sm:$0xf]
    %v425 = vld [vmem:[%s419 + $0x14] sm:$0xf]
    %v426 = vld [vmem:[%s419 + $0x18] sm:$0xf]
    %v427 = vld [vmem:[%s419 + $0x1c] sm:$0xf]
    %v428 = vld [vmem:[#allocation4] sm:$0xff]
    %v429 = vld [vmem:[#allocation4 + $0x8] sm:$0xff]
    %v430 = vld [vmem:[#allocation4 + $0x10] sm:$0xff]
    %v431 = vld [vmem:[#allocation4 + $0x18] sm:$0xff]
    %v432 = vld [vmem:[#allocation4 + $0x20] sm:$0xff]
    %v433 = vld [vmem:[#allocation4 + $0x28] sm:$0xff]
    %v434 = vld [vmem:[#allocation4 + $0x30] sm:$0xff]
    %v435 = vld [vmem:[#allocation4 + $0x38] sm:$0xff]
    %437 = vset.pattern.permute.xlu0 0
    %438 = vperm.xlu0 %437, %v280
    %v439 = vpop.permute.xlu0 %438
    %442 = vset.pattern.permute.xlu0 0
    %443 = vperm.xlu0 %442, %v282
    %v444 = vpop.permute.xlu0 %443
    %447 = vset.pattern.permute.xlu0 0
    %448 = vperm.xlu0 %447, %v284
    %v449 = vpop.permute.xlu0 %448
    %452 = vset.pattern.permute.xlu0 0
    %453 = vperm.xlu0 %452, %v286
    %v454 = vpop.permute.xlu0 %453
    %457 = vset.pattern.permute.xlu0 0
    %458 = vperm.xlu0 %457, %v288
    %v459 = vpop.permute.xlu0 %458
    %462 = vset.pattern.permute.xlu0 0
    %463 = vperm.xlu0 %462, %v290
    %v464 = vpop.permute.xlu0 %463
    %467 = vset.pattern.permute.xlu0 0
    %468 = vperm.xlu0 %467, %v292
    %v469 = vpop.permute.xlu0 %468
    %472 = vset.pattern.permute.xlu0 0
    %473 = vperm.xlu0 %472, %v294
    %v474 = vpop.permute.xlu0 %473
    %v476 = vmul.f32 %v439, %v428
    %v477 = vmul.f32 %v444, %v429
    %v478 = vmul.f32 %v449, %v430
    %v479 = vmul.f32 %v454, %v431
    %v480 = vmul.f32 %v459, %v432
    %v481 = vmul.f32 %v464, %v433
    %v482 = vmul.f32 %v469, %v434
    %v483 = vmul.f32 %v474, %v435
    %v484 = vpack.c.bf16 %v346, %v344
    %v485 = vpack.c.bf16 %v350, %v348
    %v486 = vpack.c.bf16 %v354, %v352
    %v487 = vpack.c.bf16 %v358, %v356
    %v496 = vunpack.c.l.b16 %v420
    %v497 = vunpack.c.l.b16 %v421
    %v498 = vunpack.c.l.b16 %v422
    %v499 = vunpack.c.l.b16 %v423
    %v500 = vunpack.c.l.b16 %v424
    %v501 = vunpack.c.l.b16 %v425
    %v502 = vunpack.c.l.b16 %v426
    %v503 = vunpack.c.l.b16 %v427
    %v504 = vpack.c.b16 %v497, %v496
    %v505 = vpack.c.b16 %v499, %v498
    %v506 = vpack.c.b16 %v501, %v500
    %v507 = vpack.c.b16 %v503, %v502
    %v513 = vsel %vm238, %v484, 0
    %v516 = vsel %vm238, %v485, 0
    %v519 = vsel %vm238, %v486, 0
    %v522 = vsel %vm238, %v487, 0
    %524 = vmatpush.bf16.msra.mxu0 0
    %525 = vmatpush.bf16.msra.mxu0 0
    %526 = vmatpush.bf16.msra.mxu0 0
    %527 = vmatpush.bf16.msra.mxu0 0
    %528 = vmatpush.bf16.msra.mxu0 %v507
    %529 = vmatpush.bf16.msra.mxu0 %v506
    %530 = vmatpush.bf16.msra.mxu0 %v505
    %531 = vmatpush.bf16.msra.mxu0 %v504
    %532 = vmatmul.bf16.gmra.mxu0 %v513
    %v533 = vpop.f32.mrf.mxu0
    %v534 = vadd.f32 0.0, %v533
    %v535 = vpop.f32.mrf.mxu0
    %v536 = vadd.f32 0.0, %v535
    %537 = vmatmul.bf16.gmra.mxu0 %v516
    %v538 = vpop.f32.mrf.mxu0
    %v539 = vadd.f32 0.0, %v538
    %v540 = vpop.f32.mrf.mxu0
    %v541 = vadd.f32 0.0, %v540
    %542 = vmatmul.bf16.gmra.mxu0 %v519
    %v543 = vpop.f32.mrf.mxu0
    %v544 = vadd.f32 0.0, %v543
    %v545 = vpop.f32.mrf.mxu0
    %v546 = vadd.f32 0.0, %v545
    %547 = vmatmul.bf16.gmra.mxu0 %v522
    %v548 = vpop.f32.mrf.mxu0
    %v549 = vadd.f32 0.0, %v548
    %v550 = vpop.f32.mrf.mxu0
    %v551 = vadd.f32 0.0, %v550
    %552 = vdwg.mxu0
    %v553 = vadd.f32 %v476, %v534
    %v554 = vadd.f32 %v477, %v536
    %v555 = vadd.f32 %v478, %v539
    %v556 = vadd.f32 %v479, %v541
    %v557 = vadd.f32 %v480, %v544
    %v558 = vadd.f32 %v481, %v546
    %v559 = vadd.f32 %v482, %v549
    %v560 = vadd.f32 %v483, %v551
    %vm561 = vcmask 261120
    %562 = vst.msk [vmem:[#allocation4] sm:$0xff] %vm561, %v553
    %563 = vst.msk [vmem:[#allocation4 + $0x8] sm:$0xff] %vm561, %v554
    %564 = vst.msk [vmem:[#allocation4 + $0x10] sm:$0xff] %vm561, %v555
    %565 = vst.msk [vmem:[#allocation4 + $0x18] sm:$0xff] %vm561, %v556
    %566 = vst.msk [vmem:[#allocation4 + $0x20] sm:$0xff] %vm561, %v557
    %567 = vst.msk [vmem:[#allocation4 + $0x28] sm:$0xff] %vm561, %v558
    %568 = vst.msk [vmem:[#allocation4 + $0x30] sm:$0xff] %vm561, %v559
    %569 = vst.msk [vmem:[#allocation4 + $0x38] sm:$0xff] %vm561, %v560
    %570 = vst.msk [vmem:[#allocation2] sm:$0xff] %vm407, %v263
    %571 = vst.msk [vmem:[#allocation2 + $0x8] sm:$0xff] %vm407, %v264
    %572 = vst.msk [vmem:[#allocation2 + $0x10] sm:$0xff] %vm407, %v265
    %573 = vst.msk [vmem:[#allocation2 + $0x18] sm:$0xff] %vm407, %v266
    %574 = vst.msk [vmem:[#allocation2 + $0x20] sm:$0xff] %vm407, %v267
    %575 = vst.msk [vmem:[#allocation2 + $0x28] sm:$0xff] %vm407, %v268
    %576 = vst.msk [vmem:[#allocation2 + $0x30] sm:$0xff] %vm407, %v269
    %577 = vst.msk [vmem:[#allocation2 + $0x38] sm:$0xff] %vm407, %v270
    %v578 = vld [vmem:[%s1] sm:$0xff]
    %v579 = vld [vmem:[%s1 + $0x8] sm:$0xff]
    %v580 = vld [vmem:[%s1 + $0x10] sm:$0xff]
    %v581 = vld [vmem:[%s1 + $0x18] sm:$0xff]
    %v582 = vld [vmem:[%s1 + $0x20] sm:$0xff]
    %v583 = vld [vmem:[%s1 + $0x28] sm:$0xff]
    %v584 = vld [vmem:[%s1 + $0x30] sm:$0xff]
    %v585 = vld [vmem:[%s1 + $0x38] sm:$0xff]
    %v586 = vld [vmem:[%s2 + $0x1] sm:$0x1]
    %588 = vset.pattern.permute.xlu0 1
    %589 = vperm.xlu0 %588, %v578
    %v590 = vpop.permute.xlu0 %589
    %593 = vset.pattern.permute.xlu0 1
    %594 = vperm.xlu0 %593, %v579
    %v595 = vpop.permute.xlu0 %594
    %598 = vset.pattern.permute.xlu0 1
    %599 = vperm.xlu0 %598, %v580
    %v600 = vpop.permute.xlu0 %599
    %603 = vset.pattern.permute.xlu0 1
    %604 = vperm.xlu0 %603, %v581
    %v605 = vpop.permute.xlu0 %604
    %608 = vset.pattern.permute.xlu0 1
    %609 = vperm.xlu0 %608, %v582
    %v610 = vpop.permute.xlu0 %609
    %613 = vset.pattern.permute.xlu0 1
    %614 = vperm.xlu0 %613, %v583
    %v615 = vpop.permute.xlu0 %614
    %618 = vset.pattern.permute.xlu0 1
    %619 = vperm.xlu0 %618, %v584
    %v620 = vpop.permute.xlu0 %619
    %623 = vset.pattern.permute.xlu0 1
    %624 = vperm.xlu0 %623, %v585
    %v625 = vpop.permute.xlu0 %624
    %v627 = vperm.slane %v586, 0
    %v628 = vadd.f32 %v590, %v627
    %v629 = vadd.f32 %v595, %v627
    %v630 = vadd.f32 %v600, %v627
    %v631 = vadd.f32 %v605, %v627
    %v632 = vadd.f32 %v610, %v627
    %v633 = vadd.f32 %v615, %v627
    %v634 = vadd.f32 %v620, %v627
    %v635 = vadd.f32 %v625, %v627
    %vm636 = vcmp.gt.f32.partialorder %v628, 0.0
    %vm637 = vcmp.gt.f32.partialorder %v629, 0.0
    %vm638 = vcmp.gt.f32.partialorder %v630, 0.0
    %vm639 = vcmp.gt.f32.partialorder %v631, 0.0
    %vm640 = vcmp.gt.f32.partialorder %v632, 0.0
    %vm641 = vcmp.gt.f32.partialorder %v633, 0.0
    %vm642 = vcmp.gt.f32.partialorder %v634, 0.0
    %vm643 = vcmp.gt.f32.partialorder %v635, 0.0
    %v644 = vmul.f32 %v628, 0.2
    %v645 = vmul.f32 %v629, 0.2
    %v646 = vmul.f32 %v630, 0.2
    %v647 = vmul.f32 %v631, 0.2
    %v648 = vmul.f32 %v632, 0.2
    %v649 = vmul.f32 %v633, 0.2
    %v650 = vmul.f32 %v634, 0.2
    %v651 = vmul.f32 %v635, 0.2
    %v652 = vsel %vm636, %v628, %v644
    %v653 = vsel %vm637, %v629, %v645
    %v654 = vsel %vm638, %v630, %v646
    %v655 = vsel %vm639, %v631, %v647
    %v656 = vsel %vm640, %v632, %v648
    %v657 = vsel %vm641, %v633, %v649
    %v658 = vsel %vm642, %v634, %v650
    %v659 = vsel %vm643, %v635, %v651
    %v660 = vsel %vm214, %v652, -1e+09
    %v661 = vsel %vm215, %v653, -1e+09
    %v662 = vsel %vm216, %v654, -1e+09
    %v663 = vsel %vm217, %v655, -1e+09
    %v664 = vsel %vm218, %v656, -1e+09
    %v665 = vsel %vm219, %v657, -1e+09
    %v666 = vsel %vm220, %v658, -1e+09
    %v667 = vsel %vm221, %v659, -1e+09
    %v668 = vld [vmem:[#allocation2] sm:$0xff]
    %v669 = vld [vmem:[#allocation2 + $0x8] sm:$0xff]
    %v670 = vld [vmem:[#allocation2 + $0x10] sm:$0xff]
    %v671 = vld [vmem:[#allocation2 + $0x18] sm:$0xff]
    %v672 = vld [vmem:[#allocation2 + $0x20] sm:$0xff]
    %v673 = vld [vmem:[#allocation2 + $0x28] sm:$0xff]
    %v674 = vld [vmem:[#allocation2 + $0x30] sm:$0xff]
    %v675 = vld [vmem:[#allocation2 + $0x38] sm:$0xff]
    %v676 = vsel %vm238, %v660, -inf
    %677 = vmax.xlane.f32.xlu0 %v676
    %v678 = vpop.xlane.xlu0 %677
    %v679 = vsel %vm238, %v661, -inf
    %680 = vmax.xlane.f32.xlu0 %v679
    %v681 = vpop.xlane.xlu0 %680
    %v682 = vsel %vm238, %v662, -inf
    %683 = vmax.xlane.f32.xlu0 %v682
    %v684 = vpop.xlane.xlu0 %683
    %v685 = vsel %vm238, %v663, -inf
    %686 = vmax.xlane.f32.xlu0 %v685
    %v687 = vpop.xlane.xlu0 %686
    %v688 = vsel %vm238, %v664, -inf
    %689 = vmax.xlane.f32.xlu0 %v688
    %v690 = vpop.xlane.xlu0 %689
    %v691 = vsel %vm238, %v665, -inf
    %692 = vmax.xlane.f32.xlu0 %v691
    %v693 = vpop.xlane.xlu0 %692
    %v694 = vsel %vm238, %v666, -inf
    %695 = vmax.xlane.f32.xlu0 %v694
    %v696 = vpop.xlane.xlu0 %695
    %v697 = vsel %vm238, %v667, -inf
    %698 = vmax.xlane.f32.xlu0 %v697
    %v699 = vpop.xlane.xlu0 %698
    %v700 = vmax.f32 %v668, %v678
    %v701 = vmax.f32 %v669, %v681
    %v702 = vmax.f32 %v670, %v684
    %v703 = vmax.f32 %v671, %v687
    %v704 = vmax.f32 %v672, %v690
    %v705 = vmax.f32 %v673, %v693
    %v706 = vmax.f32 %v674, %v696
    %v707 = vmax.f32 %v675, %v699
    %v708 = vsub.f32 %v668, %v700
    %v709 = vsub.f32 %v669, %v701
    %v710 = vsub.f32 %v670, %v702
    %v711 = vsub.f32 %v671, %v703
    %v712 = vsub.f32 %v672, %v704
    %v713 = vsub.f32 %v673, %v705
    %v714 = vsub.f32 %v674, %v706
    %v715 = vsub.f32 %v675, %v707
    %v716 = vmul.f32 %v708, 1.442695
    %v717 = vpow.pop %v716
    %v718 = vmul.f32 %v709, 1.442695
    %v719 = vpow.pop %v718
    %v720 = vmul.f32 %v710, 1.442695
    %v721 = vpow.pop %v720
    %v722 = vmul.f32 %v711, 1.442695
    %v723 = vpow.pop %v722
    %v724 = vmul.f32 %v712, 1.442695
    %v725 = vpow.pop %v724
    %v726 = vmul.f32 %v713, 1.442695
    %v727 = vpow.pop %v726
    %v728 = vmul.f32 %v714, 1.442695
    %v729 = vpow.pop %v728
    %v730 = vmul.f32 %v715, 1.442695
    %v731 = vpow.pop %v730
    %733 = vset.pattern.permute.xlu0 1
    %734 = vperm.xlu0 %733, %v700
    %v735 = vpop.permute.xlu0 %734
    %738 = vset.pattern.permute.xlu0 1
    %739 = vperm.xlu0 %738, %v701
    %v740 = vpop.permute.xlu0 %739
    %743 = vset.pattern.permute.xlu0 1
    %744 = vperm.xlu0 %743, %v702
    %v745 = vpop.permute.xlu0 %744
    %748 = vset.pattern.permute.xlu0 1
    %749 = vperm.xlu0 %748, %v703
    %v750 = vpop.permute.xlu0 %749
    %753 = vset.pattern.permute.xlu0 1
    %754 = vperm.xlu0 %753, %v704
    %v755 = vpop.permute.xlu0 %754
    %758 = vset.pattern.permute.xlu0 1
    %759 = vperm.xlu0 %758, %v705
    %v760 = vpop.permute.xlu0 %759
    %763 = vset.pattern.permute.xlu0 1
    %764 = vperm.xlu0 %763, %v706
    %v765 = vpop.permute.xlu0 %764
    %768 = vset.pattern.permute.xlu0 1
    %769 = vperm.xlu0 %768, %v707
    %v770 = vpop.permute.xlu0 %769
    %v772 = vsub.f32 %v660, %v735
    %v773 = vsub.f32 %v661, %v740
    %v774 = vsub.f32 %v662, %v745
    %v775 = vsub.f32 %v663, %v750
    %v776 = vsub.f32 %v664, %v755
    %v777 = vsub.f32 %v665, %v760
    %v778 = vsub.f32 %v666, %v765
    %v779 = vsub.f32 %v667, %v770
    %v780 = vmul.f32 %v772, 1.442695
    %v781 = vpow.pop %v780
    %v782 = vmul.f32 %v773, 1.442695
    %v783 = vpow.pop %v782
    %v784 = vmul.f32 %v774, 1.442695
    %v785 = vpow.pop %v784
    %v786 = vmul.f32 %v775, 1.442695
    %v787 = vpow.pop %v786
    %v788 = vmul.f32 %v776, 1.442695
    %v789 = vpow.pop %v788
    %v790 = vmul.f32 %v777, 1.442695
    %v791 = vpow.pop %v790
    %v792 = vmul.f32 %v778, 1.442695
    %v793 = vpow.pop %v792
    %v794 = vmul.f32 %v779, 1.442695
    %v795 = vpow.pop %v794
    %v796 = vld [vmem:[#allocation3] sm:$0xff]
    %v797 = vld [vmem:[#allocation3 + $0x8] sm:$0xff]
    %v798 = vld [vmem:[#allocation3 + $0x10] sm:$0xff]
    %v799 = vld [vmem:[#allocation3 + $0x18] sm:$0xff]
    %v800 = vld [vmem:[#allocation3 + $0x20] sm:$0xff]
    %v801 = vld [vmem:[#allocation3 + $0x28] sm:$0xff]
    %v802 = vld [vmem:[#allocation3 + $0x30] sm:$0xff]
    %v803 = vld [vmem:[#allocation3 + $0x38] sm:$0xff]
    %v804 = vmul.f32 %v717, %v796
    %v805 = vmul.f32 %v719, %v797
    %v806 = vmul.f32 %v721, %v798
    %v807 = vmul.f32 %v723, %v799
    %v808 = vmul.f32 %v725, %v800
    %v809 = vmul.f32 %v727, %v801
    %v810 = vmul.f32 %v729, %v802
    %v811 = vmul.f32 %v731, %v803
    %v812 = vsel %vm238, %v781, 0.0
    %813 = vadd.xlane.f32.xlu0 %v812
    %v814 = vpop.xlane.xlu0 %813
    %v815 = vsel %vm238, %v783, 0.0
    %816 = vadd.xlane.f32.xlu0 %v815
    %v817 = vpop.xlane.xlu0 %816
    %v818 = vsel %vm238, %v785, 0.0
    %819 = vadd.xlane.f32.xlu0 %v818
    %v820 = vpop.xlane.xlu0 %819
    %v821 = vsel %vm238, %v787, 0.0
    %822 = vadd.xlane.f32.xlu0 %v821
    %v823 = vpop.xlane.xlu0 %822
    %v824 = vsel %vm238, %v789, 0.0
    %825 = vadd.xlane.f32.xlu0 %v824
    %v826 = vpop.xlane.xlu0 %825
    %v827 = vsel %vm238, %v791, 0.0
    %828 = vadd.xlane.f32.xlu0 %v827
    %v829 = vpop.xlane.xlu0 %828
    %v830 = vsel %vm238, %v793, 0.0
    %831 = vadd.xlane.f32.xlu0 %v830
    %v832 = vpop.xlane.xlu0 %831
    %v833 = vsel %vm238, %v795, 0.0
    %834 = vadd.xlane.f32.xlu0 %v833
    %v835 = vpop.xlane.xlu0 %834
    %v836 = vadd.f32 %v804, %v814
    %v837 = vadd.f32 %v805, %v817
    %v838 = vadd.f32 %v806, %v820
    %v839 = vadd.f32 %v807, %v823
    %v840 = vadd.f32 %v808, %v826
    %v841 = vadd.f32 %v809, %v829
    %v842 = vadd.f32 %v810, %v832
    %v843 = vadd.f32 %v811, %v835
    %vm844 = vcmask 15368
    %845 = vst.msk [vmem:[#allocation3] sm:$0xff] %vm844, %v836
    %846 = vst.msk [vmem:[#allocation3 + $0x8] sm:$0xff] %vm844, %v837
    %847 = vst.msk [vmem:[#allocation3 + $0x10] sm:$0xff] %vm844, %v838
    %848 = vst.msk [vmem:[#allocation3 + $0x18] sm:$0xff] %vm844, %v839
    %849 = vst.msk [vmem:[#allocation3 + $0x20] sm:$0xff] %vm844, %v840
    %850 = vst.msk [vmem:[#allocation3 + $0x28] sm:$0xff] %vm844, %v841
    %851 = vst.msk [vmem:[#allocation3 + $0x30] sm:$0xff] %vm844, %v842
    %852 = vst.msk [vmem:[#allocation3 + $0x38] sm:$0xff] %vm844, %v843
    %s853 = sadd.s32 %s416, 8
    %s854 = smul.addr %s853, 4
    %s855 = scalar_lea.vmem %s3, %s854
    %v856 = vld [vmem:[%s855] sm:$0xf]
    %v857 = vld [vmem:[%s855 + $0x4] sm:$0xf]
    %v858 = vld [vmem:[%s855 + $0x8] sm:$0xf]
    %v859 = vld [vmem:[%s855 + $0xc] sm:$0xf]
    %v860 = vld [vmem:[%s855 + $0x10] sm:$0xf]
    %v861 = vld [vmem:[%s855 + $0x14] sm:$0xf]
    %v862 = vld [vmem:[%s855 + $0x18] sm:$0xf]
    %v863 = vld [vmem:[%s855 + $0x1c] sm:$0xf]
    %s864 = scalar_lea.vmem [#allocation4], 64
    %v865 = vld [vmem:[%s864] sm:$0xff]
    %v866 = vld [vmem:[%s864 + $0x8] sm:$0xff]
    %v867 = vld [vmem:[%s864 + $0x10] sm:$0xff]
    %v868 = vld [vmem:[%s864 + $0x18] sm:$0xff]
    %v869 = vld [vmem:[%s864 + $0x20] sm:$0xff]
    %v870 = vld [vmem:[%s864 + $0x28] sm:$0xff]
    %v871 = vld [vmem:[%s864 + $0x30] sm:$0xff]
    %v872 = vld [vmem:[%s864 + $0x38] sm:$0xff]
    %874 = vset.pattern.permute.xlu0 1
    %875 = vperm.xlu0 %874, %v717
    %v876 = vpop.permute.xlu0 %875
    %879 = vset.pattern.permute.xlu0 1
    %880 = vperm.xlu0 %879, %v719
    %v881 = vpop.permute.xlu0 %880
    %884 = vset.pattern.permute.xlu0 1
    %885 = vperm.xlu0 %884, %v721
    %v886 = vpop.permute.xlu0 %885
    %889 = vset.pattern.permute.xlu0 1
    %890 = vperm.xlu0 %889, %v723
    %v891 = vpop.permute.xlu0 %890
    %894 = vset.pattern.permute.xlu0 1
    %895 = vperm.xlu0 %894, %v725
    %v896 = vpop.permute.xlu0 %895
    %899 = vset.pattern.permute.xlu0 1
    %900 = vperm.xlu0 %899, %v727
    %v901 = vpop.permute.xlu0 %900
    %904 = vset.pattern.permute.xlu0 1
    %905 = vperm.xlu0 %904, %v729
    %v906 = vpop.permute.xlu0 %905
    %909 = vset.pattern.permute.xlu0 1
    %910 = vperm.xlu0 %909, %v731
    %v911 = vpop.permute.xlu0 %910
    %v913 = vmul.f32 %v876, %v865
    %v914 = vmul.f32 %v881, %v866
    %v915 = vmul.f32 %v886, %v867
    %v916 = vmul.f32 %v891, %v868
    %v917 = vmul.f32 %v896, %v869
    %v918 = vmul.f32 %v901, %v870
    %v919 = vmul.f32 %v906, %v871
    %v920 = vmul.f32 %v911, %v872
    %v921 = vpack.c.bf16 %v783, %v781
    %v922 = vpack.c.bf16 %v787, %v785
    %v923 = vpack.c.bf16 %v791, %v789
    %v924 = vpack.c.bf16 %v795, %v793
    %v933 = vunpack.c.l.b16 %v856
    %v934 = vunpack.c.l.b16 %v857
    %v935 = vunpack.c.l.b16 %v858
    %v936 = vunpack.c.l.b16 %v859
    %v937 = vunpack.c.l.b16 %v860
    %v938 = vunpack.c.l.b16 %v861
    %v939 = vunpack.c.l.b16 %v862
    %v940 = vunpack.c.l.b16 %v863
    %v941 = vpack.c.b16 %v934, %v933
    %v942 = vpack.c.b16 %v936, %v935
    %v943 = vpack.c.b16 %v938, %v937
    %v944 = vpack.c.b16 %v940, %v939
    %v950 = vsel %vm238, %v921, 0
    %v953 = vsel %vm238, %v922, 0
    %v956 = vsel %vm238, %v923, 0
    %v959 = vsel %vm238, %v924, 0
    %961 = vmatpush.bf16.msra.mxu0 0
    %962 = vmatpush.bf16.msra.mxu0 0
    %963 = vmatpush.bf16.msra.mxu0 0
    %964 = vmatpush.bf16.msra.mxu0 0
    %965 = vmatpush.bf16.msra.mxu0 %v944
    %966 = vmatpush.bf16.msra.mxu0 %v943
    %967 = vmatpush.bf16.msra.mxu0 %v942
    %968 = vmatpush.bf16.msra.mxu0 %v941
    %969 = vmatmul.bf16.gmra.mxu0 %v950
    %v970 = vpop.f32.mrf.mxu0
    %v971 = vadd.f32 0.0, %v970
    %v972 = vpop.f32.mrf.mxu0
    %v973 = vadd.f32 0.0, %v972
    %974 = vmatmul.bf16.gmra.mxu0 %v953
    %v975 = vpop.f32.mrf.mxu0
    %v976 = vadd.f32 0.0, %v975
    %v977 = vpop.f32.mrf.mxu0
    %v978 = vadd.f32 0.0, %v977
    %979 = vmatmul.bf16.gmra.mxu0 %v956
    %v980 = vpop.f32.mrf.mxu0
    %v981 = vadd.f32 0.0, %v980
    %v982 = vpop.f32.mrf.mxu0
    %v983 = vadd.f32 0.0, %v982
    %984 = vmatmul.bf16.gmra.mxu0 %v959
    %v985 = vpop.f32.mrf.mxu0
    %v986 = vadd.f32 0.0, %v985
    %v987 = vpop.f32.mrf.mxu0
    %v988 = vadd.f32 0.0, %v987
    %989 = vdwg.mxu0
    %v990 = vadd.f32 %v913, %v971
    %v991 = vadd.f32 %v914, %v973
    %v992 = vadd.f32 %v915, %v976
    %v993 = vadd.f32 %v916, %v978
    %v994 = vadd.f32 %v917, %v981
    %v995 = vadd.f32 %v918, %v983
    %v996 = vadd.f32 %v919, %v986
    %v997 = vadd.f32 %v920, %v988
    %998 = vst.msk [vmem:[%s864] sm:$0xff] %vm561, %v990
    %999 = vst.msk [vmem:[%s864 + $0x8] sm:$0xff] %vm561, %v991
    %1000 = vst.msk [vmem:[%s864 + $0x10] sm:$0xff] %vm561, %v992
    %1001 = vst.msk [vmem:[%s864 + $0x18] sm:$0xff] %vm561, %v993
    %1002 = vst.msk [vmem:[%s864 + $0x20] sm:$0xff] %vm561, %v994
    %1003 = vst.msk [vmem:[%s864 + $0x28] sm:$0xff] %vm561, %v995
    %1004 = vst.msk [vmem:[%s864 + $0x30] sm:$0xff] %vm561, %v996
    %1005 = vst.msk [vmem:[%s864 + $0x38] sm:$0xff] %vm561, %v997
    %1006 = vst.msk [vmem:[#allocation2] sm:$0xff] %vm844, %v700
    %1007 = vst.msk [vmem:[#allocation2 + $0x8] sm:$0xff] %vm844, %v701
    %1008 = vst.msk [vmem:[#allocation2 + $0x10] sm:$0xff] %vm844, %v702
    %1009 = vst.msk [vmem:[#allocation2 + $0x18] sm:$0xff] %vm844, %v703
    %1010 = vst.msk [vmem:[#allocation2 + $0x20] sm:$0xff] %vm844, %v704
    %1011 = vst.msk [vmem:[#allocation2 + $0x28] sm:$0xff] %vm844, %v705
    %1012 = vst.msk [vmem:[#allocation2 + $0x30] sm:$0xff] %vm844, %v706
    %1013 = vst.msk [vmem:[#allocation2 + $0x38] sm:$0xff] %vm844, %v707
    %v1014 = vld [vmem:[%s1] sm:$0xff]
    %v1015 = vld [vmem:[%s1 + $0x8] sm:$0xff]
    %v1016 = vld [vmem:[%s1 + $0x10] sm:$0xff]
    %v1017 = vld [vmem:[%s1 + $0x18] sm:$0xff]
    %v1018 = vld [vmem:[%s1 + $0x20] sm:$0xff]
    %v1019 = vld [vmem:[%s1 + $0x28] sm:$0xff]
    %v1020 = vld [vmem:[%s1 + $0x30] sm:$0xff]
    %v1021 = vld [vmem:[%s1 + $0x38] sm:$0xff]
    %v1022 = vld [vmem:[%s2 + $0x2] sm:$0x1]
    %1024 = vset.pattern.permute.xlu0 2
    %1025 = vperm.xlu0 %1024, %v1014
    %v1026 = vpop.permute.xlu0 %1025
    %1029 = vset.pattern.permute.xlu0 2
    %1030 = vperm.xlu0 %1029, %v1015
    %v1031 = vpop.permute.xlu0 %1030
    %1034 = vset.pattern.permute.xlu0 2
    %1035 = vperm.xlu0 %1034, %v1016
    %v1036 = vpop.permute.xlu0 %1035
    %1039 = vset.pattern.permute.xlu0 2
    %1040 = vperm.xlu0 %1039, %v1017
    %v1041 = vpop.permute.xlu0 %1040
    %1044 = vset.pattern.permute.xlu0 2
    %1045 = vperm.xlu0 %1044, %v1018
    %v1046 = vpop.permute.xlu0 %1045
    %1049 = vset.pattern.permute.xlu0 2
    %1050 = vperm.xlu0 %1049, %v1019
    %v1051 = vpop.permute.xlu0 %1050
    %1054 = vset.pattern.permute.xlu0 2
    %1055 = vperm.xlu0 %1054, %v1020
    %v1056 = vpop.permute.xlu0 %1055
    %1059 = vset.pattern.permute.xlu0 2
    %1060 = vperm.xlu0 %1059, %v1021
    %v1061 = vpop.permute.xlu0 %1060
    %v1063 = vperm.slane %v1022, 0
    %v1064 = vadd.f32 %v1026, %v1063
    %v1065 = vadd.f32 %v1031, %v1063
    %v1066 = vadd.f32 %v1036, %v1063
    %v1067 = vadd.f32 %v1041, %v1063
    %v1068 = vadd.f32 %v1046, %v1063
    %v1069 = vadd.f32 %v1051, %v1063
    %v1070 = vadd.f32 %v1056, %v1063
    %v1071 = vadd.f32 %v1061, %v1063
    %vm1072 = vcmp.gt.f32.partialorder %v1064, 0.0
    %vm1073 = vcmp.gt.f32.partialorder %v1065, 0.0
    %vm1074 = vcmp.gt.f32.partialorder %v1066, 0.0
    %vm1075 = vcmp.gt.f32.partialorder %v1067, 0.0
    %vm1076 = vcmp.gt.f32.partialorder %v1068, 0.0
    %vm1077 = vcmp.gt.f32.partialorder %v1069, 0.0
    %vm1078 = vcmp.gt.f32.partialorder %v1070, 0.0
    %vm1079 = vcmp.gt.f32.partialorder %v1071, 0.0
    %v1080 = vmul.f32 %v1064, 0.2
    %v1081 = vmul.f32 %v1065, 0.2
    %v1082 = vmul.f32 %v1066, 0.2
    %v1083 = vmul.f32 %v1067, 0.2
    %v1084 = vmul.f32 %v1068, 0.2
    %v1085 = vmul.f32 %v1069, 0.2
    %v1086 = vmul.f32 %v1070, 0.2
    %v1087 = vmul.f32 %v1071, 0.2
    %v1088 = vsel %vm1072, %v1064, %v1080
    %v1089 = vsel %vm1073, %v1065, %v1081
    %v1090 = vsel %vm1074, %v1066, %v1082
    %v1091 = vsel %vm1075, %v1067, %v1083
    %v1092 = vsel %vm1076, %v1068, %v1084
    %v1093 = vsel %vm1077, %v1069, %v1085
    %v1094 = vsel %vm1078, %v1070, %v1086
    %v1095 = vsel %vm1079, %v1071, %v1087
    %v1096 = vsel %vm214, %v1088, -1e+09
    %v1097 = vsel %vm215, %v1089, -1e+09
    %v1098 = vsel %vm216, %v1090, -1e+09
    %v1099 = vsel %vm217, %v1091, -1e+09
    %v1100 = vsel %vm218, %v1092, -1e+09
    %v1101 = vsel %vm219, %v1093, -1e+09
    %v1102 = vsel %vm220, %v1094, -1e+09
    %v1103 = vsel %vm221, %v1095, -1e+09
    %v1104 = vld [vmem:[#allocation2] sm:$0xff]
    %v1105 = vld [vmem:[#allocation2 + $0x8] sm:$0xff]
    %v1106 = vld [vmem:[#allocation2 + $0x10] sm:$0xff]
    %v1107 = vld [vmem:[#allocation2 + $0x18] sm:$0xff]
    %v1108 = vld [vmem:[#allocation2 + $0x20] sm:$0xff]
    %v1109 = vld [vmem:[#allocation2 + $0x28] sm:$0xff]
    %v1110 = vld [vmem:[#allocation2 + $0x30] sm:$0xff]
    %v1111 = vld [vmem:[#allocation2 + $0x38] sm:$0xff]
    %v1112 = vsel %vm238, %v1096, -inf
    %1113 = vmax.xlane.f32.xlu0 %v1112
    %v1114 = vpop.xlane.xlu0 %1113
    %v1115 = vsel %vm238, %v1097, -inf
    %1116 = vmax.xlane.f32.xlu0 %v1115
    %v1117 = vpop.xlane.xlu0 %1116
    %v1118 = vsel %vm238, %v1098, -inf
    %1119 = vmax.xlane.f32.xlu0 %v1118
    %v1120 = vpop.xlane.xlu0 %1119
    %v1121 = vsel %vm238, %v1099, -inf
    %1122 = vmax.xlane.f32.xlu0 %v1121
    %v1123 = vpop.xlane.xlu0 %1122
    %v1124 = vsel %vm238, %v1100, -inf
    %1125 = vmax.xlane.f32.xlu0 %v1124
    %v1126 = vpop.xlane.xlu0 %1125
    %v1127 = vsel %vm238, %v1101, -inf
    %1128 = vmax.xlane.f32.xlu0 %v1127
    %v1129 = vpop.xlane.xlu0 %1128
    %v1130 = vsel %vm238, %v1102, -inf
    %1131 = vmax.xlane.f32.xlu0 %v1130
    %v1132 = vpop.xlane.xlu0 %1131
    %v1133 = vsel %vm238, %v1103, -inf
    %1134 = vmax.xlane.f32.xlu0 %v1133
    %v1135 = vpop.xlane.xlu0 %1134
    %v1136 = vmax.f32 %v1104, %v1114
    %v1137 = vmax.f32 %v1105, %v1117
    %v1138 = vmax.f32 %v1106, %v1120
    %v1139 = vmax.f32 %v1107, %v1123
    %v1140 = vmax.f32 %v1108, %v1126
    %v1141 = vmax.f32 %v1109, %v1129
    %v1142 = vmax.f32 %v1110, %v1132
    %v1143 = vmax.f32 %v1111, %v1135
    %v1144 = vsub.f32 %v1104, %v1136
    %v1145 = vsub.f32 %v1105, %v1137
    %v1146 = vsub.f32 %v1106, %v1138
    %v1147 = vsub.f32 %v1107, %v1139
    %v1148 = vsub.f32 %v1108, %v1140
    %v1149 = vsub.f32 %v1109, %v1141
    %v1150 = vsub.f32 %v1110, %v1142
    %v1151 = vsub.f32 %v1111, %v1143
    %v1152 = vmul.f32 %v1144, 1.442695
    %v1153 = vpow.pop %v1152
    %v1154 = vmul.f32 %v1145, 1.442695
    %v1155 = vpow.pop %v1154
    %v1156 = vmul.f32 %v1146, 1.442695
    %v1157 = vpow.pop %v1156
    %v1158 = vmul.f32 %v1147, 1.442695
    %v1159 = vpow.pop %v1158
    %v1160 = vmul.f32 %v1148, 1.442695
    %v1161 = vpow.pop %v1160
    %v1162 = vmul.f32 %v1149, 1.442695
    %v1163 = vpow.pop %v1162
    %v1164 = vmul.f32 %v1150, 1.442695
    %v1165 = vpow.pop %v1164
    %v1166 = vmul.f32 %v1151, 1.442695
    %v1167 = vpow.pop %v1166
    %1169 = vset.pattern.permute.xlu0 2
    %1170 = vperm.xlu0 %1169, %v1136
    %v1171 = vpop.permute.xlu0 %1170
    %1174 = vset.pattern.permute.xlu0 2
    %1175 = vperm.xlu0 %1174, %v1137
    %v1176 = vpop.permute.xlu0 %1175
    %1179 = vset.pattern.permute.xlu0 2
    %1180 = vperm.xlu0 %1179, %v1138
    %v1181 = vpop.permute.xlu0 %1180
    %1184 = vset.pattern.permute.xlu0 2
    %1185 = vperm.xlu0 %1184, %v1139
    %v1186 = vpop.permute.xlu0 %1185
    %1189 = vset.pattern.permute.xlu0 2
    %1190 = vperm.xlu0 %1189, %v1140
    %v1191 = vpop.permute.xlu0 %1190
    %1194 = vset.pattern.permute.xlu0 2
    %1195 = vperm.xlu0 %1194, %v1141
    %v1196 = vpop.permute.xlu0 %1195
    %1199 = vset.pattern.permute.xlu0 2
    %1200 = vperm.xlu0 %1199, %v1142
    %v1201 = vpop.permute.xlu0 %1200
    %1204 = vset.pattern.permute.xlu0 2
    %1205 = vperm.xlu0 %1204, %v1143
    %v1206 = vpop.permute.xlu0 %1205
    %v1208 = vsub.f32 %v1096, %v1171
    %v1209 = vsub.f32 %v1097, %v1176
    %v1210 = vsub.f32 %v1098, %v1181
    %v1211 = vsub.f32 %v1099, %v1186
    %v1212 = vsub.f32 %v1100, %v1191
    %v1213 = vsub.f32 %v1101, %v1196
    %v1214 = vsub.f32 %v1102, %v1201
    %v1215 = vsub.f32 %v1103, %v1206
    %v1216 = vmul.f32 %v1208, 1.442695
    %v1217 = vpow.pop %v1216
    %v1218 = vmul.f32 %v1209, 1.442695
    %v1219 = vpow.pop %v1218
    %v1220 = vmul.f32 %v1210, 1.442695
    %v1221 = vpow.pop %v1220
    %v1222 = vmul.f32 %v1211, 1.442695
    %v1223 = vpow.pop %v1222
    %v1224 = vmul.f32 %v1212, 1.442695
    %v1225 = vpow.pop %v1224
    %v1226 = vmul.f32 %v1213, 1.442695
    %v1227 = vpow.pop %v1226
    %v1228 = vmul.f32 %v1214, 1.442695
    %v1229 = vpow.pop %v1228
    %v1230 = vmul.f32 %v1215, 1.442695
    %v1231 = vpow.pop %v1230
    %v1232 = vld [vmem:[#allocation3] sm:$0xff]
    %v1233 = vld [vmem:[#allocation3 + $0x8] sm:$0xff]
    %v1234 = vld [vmem:[#allocation3 + $0x10] sm:$0xff]
    %v1235 = vld [vmem:[#allocation3 + $0x18] sm:$0xff]
    %v1236 = vld [vmem:[#allocation3 + $0x20] sm:$0xff]
    %v1237 = vld [vmem:[#allocation3 + $0x28] sm:$0xff]
    %v1238 = vld [vmem:[#allocation3 + $0x30] sm:$0xff]
    %v1239 = vld [vmem:[#allocation3 + $0x38] sm:$0xff]
    %v1240 = vmul.f32 %v1153, %v1232
    %v1241 = vmul.f32 %v1155, %v1233
    %v1242 = vmul.f32 %v1157, %v1234
    %v1243 = vmul.f32 %v1159, %v1235
    %v1244 = vmul.f32 %v1161, %v1236
    %v1245 = vmul.f32 %v1163, %v1237
    %v1246 = vmul.f32 %v1165, %v1238
    %v1247 = vmul.f32 %v1167, %v1239
    %v1248 = vsel %vm238, %v1217, 0.0
    %1249 = vadd.xlane.f32.xlu0 %v1248
    %v1250 = vpop.xlane.xlu0 %1249
    %v1251 = vsel %vm238, %v1219, 0.0
    %1252 = vadd.xlane.f32.xlu0 %v1251
    %v1253 = vpop.xlane.xlu0 %1252
    %v1254 = vsel %vm238, %v1221, 0.0
    %1255 = vadd.xlane.f32.xlu0 %v1254
    %v1256 = vpop.xlane.xlu0 %1255
    %v1257 = vsel %vm238, %v1223, 0.0
    %1258 = vadd.xlane.f32.xlu0 %v1257
    %v1259 = vpop.xlane.xlu0 %1258
    %v1260 = vsel %vm238, %v1225, 0.0
    %1261 = vadd.xlane.f32.xlu0 %v1260
    %v1262 = vpop.xlane.xlu0 %1261
    %v1263 = vsel %vm238, %v1227, 0.0
    %1264 = vadd.xlane.f32.xlu0 %v1263
    %v1265 = vpop.xlane.xlu0 %1264
    %v1266 = vsel %vm238, %v1229, 0.0
    %1267 = vadd.xlane.f32.xlu0 %v1266
    %v1268 = vpop.xlane.xlu0 %1267
    %v1269 = vsel %vm238, %v1231, 0.0
    %1270 = vadd.xlane.f32.xlu0 %v1269
    %v1271 = vpop.xlane.xlu0 %1270
    %v1272 = vadd.f32 %v1240, %v1250
    %v1273 = vadd.f32 %v1241, %v1253
    %v1274 = vadd.f32 %v1242, %v1256
    %v1275 = vadd.f32 %v1243, %v1259
    %v1276 = vadd.f32 %v1244, %v1262
    %v1277 = vadd.f32 %v1245, %v1265
    %v1278 = vadd.f32 %v1246, %v1268
    %v1279 = vadd.f32 %v1247, %v1271
    %vm1280 = vcmask 23568
    %1281 = vst.msk [vmem:[#allocation3] sm:$0xff] %vm1280, %v1272
    %1282 = vst.msk [vmem:[#allocation3 + $0x8] sm:$0xff] %vm1280, %v1273
    %1283 = vst.msk [vmem:[#allocation3 + $0x10] sm:$0xff] %vm1280, %v1274
    %1284 = vst.msk [vmem:[#allocation3 + $0x18] sm:$0xff] %vm1280, %v1275
    %1285 = vst.msk [vmem:[#allocation3 + $0x20] sm:$0xff] %vm1280, %v1276
    %1286 = vst.msk [vmem:[#allocation3 + $0x28] sm:$0xff] %vm1280, %v1277
    %1287 = vst.msk [vmem:[#allocation3 + $0x30] sm:$0xff] %vm1280, %v1278
    %1288 = vst.msk [vmem:[#allocation3 + $0x38] sm:$0xff] %vm1280, %v1279
    %s1289 = sadd.s32 %s416, 16
    %s1290 = smul.addr %s1289, 4
    %s1291 = scalar_lea.vmem %s3, %s1290
    %v1292 = vld [vmem:[%s1291] sm:$0xf]
    %v1293 = vld [vmem:[%s1291 + $0x4] sm:$0xf]
    %v1294 = vld [vmem:[%s1291 + $0x8] sm:$0xf]
    %v1295 = vld [vmem:[%s1291 + $0xc] sm:$0xf]
    %v1296 = vld [vmem:[%s1291 + $0x10] sm:$0xf]
    %v1297 = vld [vmem:[%s1291 + $0x14] sm:$0xf]
    %v1298 = vld [vmem:[%s1291 + $0x18] sm:$0xf]
    %v1299 = vld [vmem:[%s1291 + $0x1c] sm:$0xf]
    %s1300 = scalar_lea.vmem [#allocation4], 128
    %v1301 = vld [vmem:[%s1300] sm:$0xff]
    %v1302 = vld [vmem:[%s1300 + $0x8] sm:$0xff]
    %v1303 = vld [vmem:[%s1300 + $0x10] sm:$0xff]
    %v1304 = vld [vmem:[%s1300 + $0x18] sm:$0xff]
    %v1305 = vld [vmem:[%s1300 + $0x20] sm:$0xff]
    %v1306 = vld [vmem:[%s1300 + $0x28] sm:$0xff]
    %v1307 = vld [vmem:[%s1300 + $0x30] sm:$0xff]
    %v1308 = vld [vmem:[%s1300 + $0x38] sm:$0xff]
    %1310 = vset.pattern.permute.xlu0 2
    %1311 = vperm.xlu0 %1310, %v1153
    %v1312 = vpop.permute.xlu0 %1311
    %1315 = vset.pattern.permute.xlu0 2
    %1316 = vperm.xlu0 %1315, %v1155
    %v1317 = vpop.permute.xlu0 %1316
    %1320 = vset.pattern.permute.xlu0 2
    %1321 = vperm.xlu0 %1320, %v1157
    %v1322 = vpop.permute.xlu0 %1321
    %1325 = vset.pattern.permute.xlu0 2
    %1326 = vperm.xlu0 %1325, %v1159
    %v1327 = vpop.permute.xlu0 %1326
    %1330 = vset.pattern.permute.xlu0 2
    %1331 = vperm.xlu0 %1330, %v1161
    %v1332 = vpop.permute.xlu0 %1331
    %1335 = vset.pattern.permute.xlu0 2
    %1336 = vperm.xlu0 %1335, %v1163
    %v1337 = vpop.permute.xlu0 %1336
    %1340 = vset.pattern.permute.xlu0 2
    %1341 = vperm.xlu0 %1340, %v1165
    %v1342 = vpop.permute.xlu0 %1341
    %1345 = vset.pattern.permute.xlu0 2
    %1346 = vperm.xlu0 %1345, %v1167
    %v1347 = vpop.permute.xlu0 %1346
    %v1349 = vmul.f32 %v1312, %v1301
    %v1350 = vmul.f32 %v1317, %v1302
    %v1351 = vmul.f32 %v1322, %v1303
    %v1352 = vmul.f32 %v1327, %v1304
    %v1353 = vmul.f32 %v1332, %v1305
    %v1354 = vmul.f32 %v1337, %v1306
    %v1355 = vmul.f32 %v1342, %v1307
    %v1356 = vmul.f32 %v1347, %v1308
    %v1357 = vpack.c.bf16 %v1219, %v1217
    %v1358 = vpack.c.bf16 %v1223, %v1221
    %v1359 = vpack.c.bf16 %v1227, %v1225
    %v1360 = vpack.c.bf16 %v1231, %v1229
    %v1369 = vunpack.c.l.b16 %v1292
    %v1370 = vunpack.c.l.b16 %v1293
    %v1371 = vunpack.c.l.b16 %v1294
    %v1372 = vunpack.c.l.b16 %v1295
    %v1373 = vunpack.c.l.b16 %v1296
    %v1374 = vunpack.c.l.b16 %v1297
    %v1375 = vunpack.c.l.b16 %v1298
    %v1376 = vunpack.c.l.b16 %v1299
    %v1377 = vpack.c.b16 %v1370, %v1369
    %v1378 = vpack.c.b16 %v1372, %v1371
    %v1379 = vpack.c.b16 %v1374, %v1373
    %v1380 = vpack.c.b16 %v1376, %v1375
    %v1386 = vsel %vm238, %v1357, 0
    %v1389 = vsel %vm238, %v1358, 0
    %v1392 = vsel %vm238, %v1359, 0
    %v1395 = vsel %vm238, %v1360, 0
    %1397 = vmatpush.bf16.msra.mxu0 0
    %1398 = vmatpush.bf16.msra.mxu0 0
    %1399 = vmatpush.bf16.msra.mxu0 0
    %1400 = vmatpush.bf16.msra.mxu0 0
    %1401 = vmatpush.bf16.msra.mxu0 %v1380
    %1402 = vmatpush.bf16.msra.mxu0 %v1379
    %1403 = vmatpush.bf16.msra.mxu0 %v1378
    %1404 = vmatpush.bf16.msra.mxu0 %v1377
    %1405 = vmatmul.bf16.gmra.mxu0 %v1386
    %v1406 = vpop.f32.mrf.mxu0
    %v1407 = vadd.f32 0.0, %v1406
    %v1408 = vpop.f32.mrf.mxu0
    %v1409 = vadd.f32 0.0, %v1408
    %1410 = vmatmul.bf16.gmra.mxu0 %v1389
    %v1411 = vpop.f32.mrf.mxu0
    %v1412 = vadd.f32 0.0, %v1411
    %v1413 = vpop.f32.mrf.mxu0
    %v1414 = vadd.f32 0.0, %v1413
    %1415 = vmatmul.bf16.gmra.mxu0 %v1392
    %v1416 = vpop.f32.mrf.mxu0
    %v1417 = vadd.f32 0.0, %v1416
    %v1418 = vpop.f32.mrf.mxu0
    %v1419 = vadd.f32 0.0, %v1418
    %1420 = vmatmul.bf16.gmra.mxu0 %v1395
    %v1421 = vpop.f32.mrf.mxu0
    %v1422 = vadd.f32 0.0, %v1421
    %v1423 = vpop.f32.mrf.mxu0
    %v1424 = vadd.f32 0.0, %v1423
    %1425 = vdwg.mxu0
    %v1426 = vadd.f32 %v1349, %v1407
    %v1427 = vadd.f32 %v1350, %v1409
    %v1428 = vadd.f32 %v1351, %v1412
    %v1429 = vadd.f32 %v1352, %v1414
    %v1430 = vadd.f32 %v1353, %v1417
    %v1431 = vadd.f32 %v1354, %v1419
    %v1432 = vadd.f32 %v1355, %v1422
    %v1433 = vadd.f32 %v1356, %v1424
    %1434 = vst.msk [vmem:[%s1300] sm:$0xff] %vm561, %v1426
    %1435 = vst.msk [vmem:[%s1300 + $0x8] sm:$0xff] %vm561, %v1427
    %1436 = vst.msk [vmem:[%s1300 + $0x10] sm:$0xff] %vm561, %v1428
    %1437 = vst.msk [vmem:[%s1300 + $0x18] sm:$0xff] %vm561, %v1429
    %1438 = vst.msk [vmem:[%s1300 + $0x20] sm:$0xff] %vm561, %v1430
    %1439 = vst.msk [vmem:[%s1300 + $0x28] sm:$0xff] %vm561, %v1431
    %1440 = vst.msk [vmem:[%s1300 + $0x30] sm:$0xff] %vm561, %v1432
    %1441 = vst.msk [vmem:[%s1300 + $0x38] sm:$0xff] %vm561, %v1433
    %1442 = vst.msk [vmem:[#allocation2] sm:$0xff] %vm1280, %v1136
    %1443 = vst.msk [vmem:[#allocation2 + $0x8] sm:$0xff] %vm1280, %v1137
    %1444 = vst.msk [vmem:[#allocation2 + $0x10] sm:$0xff] %vm1280, %v1138
    %1445 = vst.msk [vmem:[#allocation2 + $0x18] sm:$0xff] %vm1280, %v1139
    %1446 = vst.msk [vmem:[#allocation2 + $0x20] sm:$0xff] %vm1280, %v1140
    %1447 = vst.msk [vmem:[#allocation2 + $0x28] sm:$0xff] %vm1280, %v1141
    %1448 = vst.msk [vmem:[#allocation2 + $0x30] sm:$0xff] %vm1280, %v1142
    %1449 = vst.msk [vmem:[#allocation2 + $0x38] sm:$0xff] %vm1280, %v1143
  $region29: #{gat_model_forward.10} parent=0 // pred_fallthru
    _
  // Predicated region
  $region30: #{gat_model_forward.10} parent=0 // pred_check
    %p1450 = pneg %p25
  $region31: #{gat_model_forward.10} parent=0 // pred_check_branch
    %1452 = sbr.rel (%p1450) target = $region33
  $region32: #{gat_model_forward.10} parent=0 // pred_region
    %v1453 = vld [vmem:[#allocation3] sm:$0xff]
    %v1454 = vld [vmem:[#allocation3 + $0x8] sm:$0xff]
    %v1455 = vld [vmem:[#allocation3 + $0x10] sm:$0xff]
    %v1456 = vld [vmem:[#allocation3 + $0x18] sm:$0xff]
    %v1457 = vld [vmem:[#allocation3 + $0x20] sm:$0xff]
    %v1458 = vld [vmem:[#allocation3 + $0x28] sm:$0xff]
    %v1459 = vld [vmem:[#allocation3 + $0x30] sm:$0xff]
    %v1460 = vld [vmem:[#allocation3 + $0x38] sm:$0xff]
    %v1461 = vrcp.pop %v1453
    %v1462 = vrcp.pop %v1454
    %v1463 = vrcp.pop %v1455
    %v1464 = vrcp.pop %v1456
    %v1465 = vrcp.pop %v1457
    %v1466 = vrcp.pop %v1458
    %v1467 = vrcp.pop %v1459
    %v1468 = vrcp.pop %v1460
    %v1469 = vld [vmem:[#allocation4] sm:$0xff]
    %v1470 = vld [vmem:[#allocation4 + $0x8] sm:$0xff]
    %v1471 = vld [vmem:[#allocation4 + $0x10] sm:$0xff]
    %v1472 = vld [vmem:[#allocation4 + $0x18] sm:$0xff]
    %v1473 = vld [vmem:[#allocation4 + $0x20] sm:$0xff]
    %v1474 = vld [vmem:[#allocation4 + $0x28] sm:$0xff]
    %v1475 = vld [vmem:[#allocation4 + $0x30] sm:$0xff]
    %v1476 = vld [vmem:[#allocation4 + $0x38] sm:$0xff]
    %1478 = vset.pattern.permute.xlu0 0
    %1479 = vperm.xlu0 %1478, %v1461
    %v1480 = vpop.permute.xlu0 %1479
    %1483 = vset.pattern.permute.xlu0 0
    %1484 = vperm.xlu0 %1483, %v1462
    %v1485 = vpop.permute.xlu0 %1484
    %1488 = vset.pattern.permute.xlu0 0
    %1489 = vperm.xlu0 %1488, %v1463
    %v1490 = vpop.permute.xlu0 %1489
    %1493 = vset.pattern.permute.xlu0 0
    %1494 = vperm.xlu0 %1493, %v1464
    %v1495 = vpop.permute.xlu0 %1494
    %1498 = vset.pattern.permute.xlu0 0
    %1499 = vperm.xlu0 %1498, %v1465
    %v1500 = vpop.permute.xlu0 %1499
    %1503 = vset.pattern.permute.xlu0 0
    %1504 = vperm.xlu0 %1503, %v1466
    %v1505 = vpop.permute.xlu0 %1504
    %1508 = vset.pattern.permute.xlu0 0
    %1509 = vperm.xlu0 %1508, %v1467
    %v1510 = vpop.permute.xlu0 %1509
    %1513 = vset.pattern.permute.xlu0 0
    %1514 = vperm.xlu0 %1513, %v1468
    %v1515 = vpop.permute.xlu0 %1514
    %v1517 = vmul.f32 %v1469, %v1480
    %v1518 = vmul.f32 %v1470, %v1485
    %v1519 = vmul.f32 %v1471, %v1490
    %v1520 = vmul.f32 %v1472, %v1495
    %v1521 = vmul.f32 %v1473, %v1500
    %v1522 = vmul.f32 %v1474, %v1505
    %v1523 = vmul.f32 %v1475, %v1510
    %v1524 = vmul.f32 %v1476, %v1515
    %v1525 = vadd.f32 %v1517, 0.0
    %v1526 = vadd.f32 %v1518, 0.0
    %v1527 = vadd.f32 %v1519, 0.0
    %v1528 = vadd.f32 %v1520, 0.0
    %v1529 = vadd.f32 %v1521, 0.0
    %v1530 = vadd.f32 %v1522, 0.0
    %v1531 = vadd.f32 %v1523, 0.0
    %v1532 = vadd.f32 %v1524, 0.0
    %s1533 = scalar_lea.vmem [#allocation4], 64
    %v1534 = vld [vmem:[%s1533] sm:$0xff]
    %v1535 = vld [vmem:[%s1533 + $0x8] sm:$0xff]
    %v1536 = vld [vmem:[%s1533 + $0x10] sm:$0xff]
    %v1537 = vld [vmem:[%s1533 + $0x18] sm:$0xff]
    %v1538 = vld [vmem:[%s1533 + $0x20] sm:$0xff]
    %v1539 = vld [vmem:[%s1533 + $0x28] sm:$0xff]
    %v1540 = vld [vmem:[%s1533 + $0x30] sm:$0xff]
    %v1541 = vld [vmem:[%s1533 + $0x38] sm:$0xff]
    %1542 = vset.pattern.permute.xlu0 1
    %1543 = vperm.xlu0 %1542, %v1461
    %v1544 = vpop.permute.xlu0 %1543
    %1546 = vset.pattern.permute.xlu0 1
    %1547 = vperm.xlu0 %1546, %v1462
    %v1548 = vpop.permute.xlu0 %1547
    %1550 = vset.pattern.permute.xlu0 1
    %1551 = vperm.xlu0 %1550, %v1463
    %v1552 = vpop.permute.xlu0 %1551
    %1554 = vset.pattern.permute.xlu0 1
    %1555 = vperm.xlu0 %1554, %v1464
    %v1556 = vpop.permute.xlu0 %1555
    %1558 = vset.pattern.permute.xlu0 1
    %1559 = vperm.xlu0 %1558, %v1465
    %v1560 = vpop.permute.xlu0 %1559
    %1562 = vset.pattern.permute.xlu0 1
    %1563 = vperm.xlu0 %1562, %v1466
    %v1564 = vpop.permute.xlu0 %1563
    %1566 = vset.pattern.permute.xlu0 1
    %1567 = vperm.xlu0 %1566, %v1467
    %v1568 = vpop.permute.xlu0 %1567
    %1570 = vset.pattern.permute.xlu0 1
    %1571 = vperm.xlu0 %1570, %v1468
    %v1572 = vpop.permute.xlu0 %1571
    %v1574 = vmul.f32 %v1534, %v1544
    %v1575 = vmul.f32 %v1535, %v1548
    %v1576 = vmul.f32 %v1536, %v1552
    %v1577 = vmul.f32 %v1537, %v1556
    %v1578 = vmul.f32 %v1538, %v1560
    %v1579 = vmul.f32 %v1539, %v1564
    %v1580 = vmul.f32 %v1540, %v1568
    %v1581 = vmul.f32 %v1541, %v1572
    %v1582 = vadd.f32 %v1525, %v1574
    %v1583 = vadd.f32 %v1526, %v1575
    %v1584 = vadd.f32 %v1527, %v1576
    %v1585 = vadd.f32 %v1528, %v1577
    %v1586 = vadd.f32 %v1529, %v1578
    %v1587 = vadd.f32 %v1530, %v1579
    %v1588 = vadd.f32 %v1531, %v1580
    %v1589 = vadd.f32 %v1532, %v1581
    %s1590 = scalar_lea.vmem [#allocation4], 128
    %v1591 = vld [vmem:[%s1590] sm:$0xff]
    %v1592 = vld [vmem:[%s1590 + $0x8] sm:$0xff]
    %v1593 = vld [vmem:[%s1590 + $0x10] sm:$0xff]
    %v1594 = vld [vmem:[%s1590 + $0x18] sm:$0xff]
    %v1595 = vld [vmem:[%s1590 + $0x20] sm:$0xff]
    %v1596 = vld [vmem:[%s1590 + $0x28] sm:$0xff]
    %v1597 = vld [vmem:[%s1590 + $0x30] sm:$0xff]
    %v1598 = vld [vmem:[%s1590 + $0x38] sm:$0xff]
    %1599 = vset.pattern.permute.xlu0 2
    %1600 = vperm.xlu0 %1599, %v1461
    %v1601 = vpop.permute.xlu0 %1600
    %1603 = vset.pattern.permute.xlu0 2
    %1604 = vperm.xlu0 %1603, %v1462
    %v1605 = vpop.permute.xlu0 %1604
    %1607 = vset.pattern.permute.xlu0 2
    %1608 = vperm.xlu0 %1607, %v1463
    %v1609 = vpop.permute.xlu0 %1608
    %1611 = vset.pattern.permute.xlu0 2
    %1612 = vperm.xlu0 %1611, %v1464
    %v1613 = vpop.permute.xlu0 %1612
    %1615 = vset.pattern.permute.xlu0 2
    %1616 = vperm.xlu0 %1615, %v1465
    %v1617 = vpop.permute.xlu0 %1616
    %1619 = vset.pattern.permute.xlu0 2
    %1620 = vperm.xlu0 %1619, %v1466
    %v1621 = vpop.permute.xlu0 %1620
    %1623 = vset.pattern.permute.xlu0 2
    %1624 = vperm.xlu0 %1623, %v1467
    %v1625 = vpop.permute.xlu0 %1624
    %1627 = vset.pattern.permute.xlu0 2
    %1628 = vperm.xlu0 %1627, %v1468
    %v1629 = vpop.permute.xlu0 %1628
    %v1631 = vmul.f32 %v1591, %v1601
    %v1632 = vmul.f32 %v1592, %v1605
    %v1633 = vmul.f32 %v1593, %v1609
    %v1634 = vmul.f32 %v1594, %v1613
    %v1635 = vmul.f32 %v1595, %v1617
    %v1636 = vmul.f32 %v1596, %v1621
    %v1637 = vmul.f32 %v1597, %v1625
    %v1638 = vmul.f32 %v1598, %v1629
    %v1639 = vadd.f32 %v1582, %v1631
    %v1640 = vadd.f32 %v1583, %v1632
    %v1641 = vadd.f32 %v1584, %v1633
    %v1642 = vadd.f32 %v1585, %v1634
    %v1643 = vadd.f32 %v1586, %v1635
    %v1644 = vadd.f32 %v1587, %v1636
    %v1645 = vadd.f32 %v1588, %v1637
    %v1646 = vadd.f32 %v1589, %v1638
    %v1647 = vmul.f32 %v1639, 0.33333334
    %v1648 = vmul.f32 %v1640, 0.33333334
    %v1649 = vmul.f32 %v1641, 0.33333334
    %v1650 = vmul.f32 %v1642, 0.33333334
    %v1651 = vmul.f32 %v1643, 0.33333334
    %v1652 = vmul.f32 %v1644, 0.33333334
    %v1653 = vmul.f32 %v1645, 0.33333334
    %v1654 = vmul.f32 %v1646, 0.33333334
    %v1655 = vld [vmem:[%s5] sm:$0x1]
    %v1657 = vperm.slane %v1655, 0
    %v1659 = vadd.f32 %v1647, %v1657
    %v1660 = vadd.f32 %v1648, %v1657
    %v1661 = vadd.f32 %v1649, %v1657
    %v1662 = vadd.f32 %v1650, %v1657
    %v1663 = vadd.f32 %v1651, %v1657
    %v1664 = vadd.f32 %v1652, %v1657
    %v1665 = vadd.f32 %v1653, %v1657
    %v1666 = vadd.f32 %v1654, %v1657
    %vm1667 = vcmask 261120
    %1668 = vst.msk [vmem:[%s6] sm:$0xff] %vm1667, %v1659
    %1669 = vst.msk [vmem:[%s6 + $0x8] sm:$0xff] %vm1667, %v1660
    %1670 = vst.msk [vmem:[%s6 + $0x10] sm:$0xff] %vm1667, %v1661
    %1671 = vst.msk [vmem:[%s6 + $0x18] sm:$0xff] %vm1667, %v1662
    %1672 = vst.msk [vmem:[%s6 + $0x20] sm:$0xff] %vm1667, %v1663
    %1673 = vst.msk [vmem:[%s6 + $0x28] sm:$0xff] %vm1667, %v1664
    %1674 = vst.msk [vmem:[%s6 + $0x30] sm:$0xff] %vm1667, %v1665
    %1675 = vst.msk [vmem:[%s6 + $0x38] sm:$0xff] %vm1667, %v1666
  $region33: #{gat_model_forward.10} parent=0 // pred_fallthru
    _
  // Predicated region
  $region34: #{gat_model_forward.10} parent=0 // pred_check
    _
  $region35: #{gat_model_forward.10} parent=0 // pred_check_branch
    %1677 = sbr.rel (0) target = $region37
  $region36: #{gat_model_forward.10} parent=0 // pred_region
    _
  $region37: #{gat_model_forward.10} parent=0 // pred_fallthru
    _
  // Predicated region
  $region38: #{gat_model_forward.10} parent=0 // pred_check
    _
  $region39: #{gat_model_forward.10} parent=0 // pred_check_branch
    %1679 = sbr.rel (0) target = $region41
  $region40: #{gat_model_forward.10} parent=0 // pred_region
    _
  $region41: #{gat_model_forward.10} parent=0 // pred_fallthru
    _

// kernel: gat_model_forward.8
$region0: #{gat_model_forward.8}
  #allocation0 [shape = 'u32[]', space=smem, size = 0x4, offset = 0x4, fixed_abs, tag = 'smem constant byte address 0x4 - core index']
  #allocation1 [shape = 'u32[72,128]{1,0:T(1,128)}', space=vmem, size = 0x9000, scoped, tag = 'internal scratch']
  %s0 = inlined_call_operand.vmem [shape: f32[128,4], index: 0, kind: input, shape index: {}]
  %s1 = inlined_call_operand.vmem [shape: f32[4,16], index: 1, kind: input, shape index: {}]
  %s2 = inlined_call_operand.vmem [shape: f32[1,16], index: 2, kind: input, shape index: {}]
  %s3 = inlined_call_operand.vmem [shape: f32[16,32], index: 3, kind: input, shape index: {}]
  %s4 = inlined_call_operand.vmem [shape: f32[1,32], index: 4, kind: input, shape index: {}]
  %s5 = inlined_call_operand.vmem [shape: f32[128,32], index: 5, kind: output, shape index: {}]
  %s6 = sld [smem:[#allocation0]]
  $region30: #{gat_model_forward.8} parent=0
    _
  %s8 = ssub.s32 1, %s6
  %s9 = scalar_select 0, %s8, %s6
  // Predicated region
  $region2: #{gat_model_forward.8} parent=0 // pred_check
    _
  $region3: #{gat_model_forward.8} parent=0 // pred_check_branch
    %11 = sbr.rel (0) target = $region5
  $region4: #{gat_model_forward.8} parent=0 // pred_region
    _
  $region5: #{gat_model_forward.8} parent=0 // pred_fallthru
    _
  // Predicated region
  $region6: #{gat_model_forward.8} parent=0 // pred_check
    _
  $region7: #{gat_model_forward.8} parent=0 // pred_check_branch
    %13 = sbr.rel (0) target = $region9
  $region8: #{gat_model_forward.8} parent=0 // pred_region
    _
  $region9: #{gat_model_forward.8} parent=0 // pred_fallthru
    _
  // Predicated region
  $region10: #{gat_model_forward.8} parent=0 // pred_check
    _
  $region11: #{gat_model_forward.8} parent=0 // pred_check_branch
    %15 = sbr.rel (0) target = $region13
  $region12: #{gat_model_forward.8} parent=0 // pred_region
    _
  $region13: #{gat_model_forward.8} parent=0 // pred_fallthru
    _
  // Predicated region
  $region14: #{gat_model_forward.8} parent=0 // pred_check
    _
  $region15: #{gat_model_forward.8} parent=0 // pred_check_branch
    %17 = sbr.rel (0) target = $region17
  $region16: #{gat_model_forward.8} parent=0 // pred_region
    _
  $region17: #{gat_model_forward.8} parent=0 // pred_fallthru
    _
  // Predicated region
  $region18: #{gat_model_forward.8} parent=0 // pred_check
    _
  $region19: #{gat_model_forward.8} parent=0 // pred_check_branch
    %19 = sbr.rel (0) target = $region21
  $region20: #{gat_model_forward.8} parent=0 // pred_region
    _
  $region21: #{gat_model_forward.8} parent=0 // pred_fallthru
    _
  %v21 = vld [vmem:[%s0] sm:$0xff]
  %v22 = vld [vmem:[%s0 + $0x8] sm:$0xff]
  %v23 = vld [vmem:[%s0 + $0x10] sm:$0xff]
  %v24 = vld [vmem:[%s0 + $0x18] sm:$0xff]
  %v25 = vld [vmem:[%s0 + $0x20] sm:$0xff]
  %v26 = vld [vmem:[%s0 + $0x28] sm:$0xff]
  %v27 = vld [vmem:[%s0 + $0x30] sm:$0xff]
  %v28 = vld [vmem:[%s0 + $0x38] sm:$0xff]
  %v29 = vld [vmem:[%s0 + $0x40] sm:$0xff]
  %v30 = vld [vmem:[%s0 + $0x48] sm:$0xff]
  %v31 = vld [vmem:[%s0 + $0x50] sm:$0xff]
  %v32 = vld [vmem:[%s0 + $0x58] sm:$0xff]
  %v33 = vld [vmem:[%s0 + $0x60] sm:$0xff]
  %v34 = vld [vmem:[%s0 + $0x68] sm:$0xff]
  %v35 = vld [vmem:[%s0 + $0x70] sm:$0xff]
  %v36 = vld [vmem:[%s0 + $0x78] sm:$0xff]
  %v37 = vpack.c.bf16 %v22, %v21
  %v38 = vpack.c.bf16 %v24, %v23
  %v39 = vpack.c.bf16 %v26, %v25
  %v40 = vpack.c.bf16 %v28, %v27
  %v41 = vpack.c.bf16 %v30, %v29
  %v42 = vpack.c.bf16 %v32, %v31
  %v43 = vpack.c.bf16 %v34, %v33
  %v44 = vpack.c.bf16 %v36, %v35
  %v45 = vld [vmem:[%s1] sm:$0xf]
  %v46 = vpack.c.bf16 %v45, %v45
  %v47 = vld [vmem:[%s2] sm:$0x1]
  %v49 = vperm.slane %v47, 0
  %vm51 = vcmask 31744
  %v53 = vsel %vm51, %v37, 0
  %v56 = vsel %vm51, %v38, 0
  %v59 = vsel %vm51, %v39, 0
  %v62 = vsel %vm51, %v40, 0
  %v65 = vsel %vm51, %v41, 0
  %v68 = vsel %vm51, %v42, 0
  %v71 = vsel %vm51, %v43, 0
  %v74 = vsel %vm51, %v44, 0
  %vm76 = vcmask 1041408
  %v78 = vsel %vm76, %v46, 0
  %80 = vmatpush.bf16.msra.mxu0 0
  %81 = vmatpush.bf16.msra.mxu0 0
  %82 = vmatpush.bf16.msra.mxu0 0
  %83 = vmatpush.bf16.msra.mxu0 0
  %84 = vmatpush.bf16.msra.mxu0 0
  %85 = vmatpush.bf16.msra.mxu0 0
  %86 = vmatpush.bf16.msra.mxu0 0
  %87 = vmatpush.bf16.msra.mxu0 %v78
  %88 = vmatmul.bf16.gmra.mxu0 %v53
  %v89 = vpop.f32.mrf.mxu0
  %v90 = vadd.f32 %v49, %v89
  %v91 = vpop.f32.mrf.mxu0
  %v92 = vadd.f32 %v49, %v91
  %93 = vmatmul.bf16.gmra.mxu0 %v56
  %v94 = vpop.f32.mrf.mxu0
  %v95 = vadd.f32 %v49, %v94
  %v96 = vpop.f32.mrf.mxu0
  %v97 = vadd.f32 %v49, %v96
  %98 = vmatmul.bf16.gmra.mxu0 %v59
  %v99 = vpop.f32.mrf.mxu0
  %v100 = vadd.f32 %v49, %v99
  %v101 = vpop.f32.mrf.mxu0
  %v102 = vadd.f32 %v49, %v101
  %103 = vmatmul.bf16.gmra.mxu0 %v62
  %v104 = vpop.f32.mrf.mxu0
  %v105 = vadd.f32 %v49, %v104
  %v106 = vpop.f32.mrf.mxu0
  %v107 = vadd.f32 %v49, %v106
  %108 = vmatmul.bf16.gmra.mxu0 %v65
  %v109 = vpop.f32.mrf.mxu0
  %v110 = vadd.f32 %v49, %v109
  %v111 = vpop.f32.mrf.mxu0
  %v112 = vadd.f32 %v49, %v111
  %113 = vmatmul.bf16.gmra.mxu0 %v68
  %v114 = vpop.f32.mrf.mxu0
  %v115 = vadd.f32 %v49, %v114
  %v116 = vpop.f32.mrf.mxu0
  %v117 = vadd.f32 %v49, %v116
  %118 = vmatmul.bf16.gmra.mxu0 %v71
  %v119 = vpop.f32.mrf.mxu0
  %v120 = vadd.f32 %v49, %v119
  %v121 = vpop.f32.mrf.mxu0
  %v122 = vadd.f32 %v49, %v121
  %123 = vmatmul.bf16.gmra.mxu0 %v74
  %v124 = vpop.f32.mrf.mxu0
  %v125 = vadd.f32 %v49, %v124
  %v126 = vpop.f32.mrf.mxu0
  %v127 = vadd.f32 %v49, %v126
  %128 = vdwg.mxu0
  %v129 = vmax.f32 %v90, 0.0
  %v130 = vmax.f32 %v92, 0.0
  %v131 = vmax.f32 %v95, 0.0
  %v132 = vmax.f32 %v97, 0.0
  %v133 = vmax.f32 %v100, 0.0
  %v134 = vmax.f32 %v102, 0.0
  %v135 = vmax.f32 %v105, 0.0
  %v136 = vmax.f32 %v107, 0.0
  %v137 = vmax.f32 %v110, 0.0
  %v138 = vmax.f32 %v112, 0.0
  %v139 = vmax.f32 %v115, 0.0
  %v140 = vmax.f32 %v117, 0.0
  %v141 = vmax.f32 %v120, 0.0
  %v142 = vmax.f32 %v122, 0.0
  %v143 = vmax.f32 %v125, 0.0
  %v144 = vmax.f32 %v127, 0.0
  %v145 = vpack.c.bf16 %v130, %v129
  %v146 = vpack.c.bf16 %v132, %v131
  %v147 = vpack.c.bf16 %v134, %v133
  %v148 = vpack.c.bf16 %v136, %v135
  %v149 = vpack.c.bf16 %v138, %v137
  %v150 = vpack.c.bf16 %v140, %v139
  %v151 = vpack.c.bf16 %v142, %v141
  %v152 = vpack.c.bf16 %v144, %v143
  %v153 = vld [vmem:[%s3] sm:$0xff]
  %v154 = vld [vmem:[%s3 + $0x8] sm:$0xff]
  %v155 = vpack.c.bf16 %v154, %v153
  %v156 = vld [vmem:[%s4] sm:$0x1]
  %v158 = vperm.slane %v156, 0
  %vm160 = vcmask 130048
  %v162 = vsel %vm160, %v145, 0
  %v165 = vsel %vm160, %v146, 0
  %v168 = vsel %vm160, %v147, 0
  %v171 = vsel %vm160, %v148, 0
  %v174 = vsel %vm160, %v149, 0
  %v177 = vsel %vm160, %v150, 0
  %v180 = vsel %vm160, %v151, 0
  %v183 = vsel %vm160, %v152, 0
  %185 = vmatpush.bf16.msra.mxu0 0
  %186 = vmatpush.bf16.msra.mxu0 0
  %187 = vmatpush.bf16.msra.mxu0 0
  %188 = vmatpush.bf16.msra.mxu0 0
  %189 = vmatpush.bf16.msra.mxu0 0
  %190 = vmatpush.bf16.msra.mxu0 0
  %191 = vmatpush.bf16.msra.mxu0 0
  %192 = vmatpush.bf16.msra.mxu0 %v155
  %193 = vmatmul.bf16.gmra.mxu0 %v162
  %v194 = vpop.f32.mrf.mxu0
  %v195 = vadd.f32 %v158, %v194
  %v196 = vpop.f32.mrf.mxu0
  %v197 = vadd.f32 %v158, %v196
  %198 = vmatmul.bf16.gmra.mxu0 %v165
  %v199 = vpop.f32.mrf.mxu0
  %v200 = vadd.f32 %v158, %v199
  %v201 = vpop.f32.mrf.mxu0
  %v202 = vadd.f32 %v158, %v201
  %203 = vmatmul.bf16.gmra.mxu0 %v168
  %v204 = vpop.f32.mrf.mxu0
  %v205 = vadd.f32 %v158, %v204
  %v206 = vpop.f32.mrf.mxu0
  %v207 = vadd.f32 %v158, %v206
  %208 = vmatmul.bf16.gmra.mxu0 %v171
  %v209 = vpop.f32.mrf.mxu0
  %v210 = vadd.f32 %v158, %v209
  %v211 = vpop.f32.mrf.mxu0
  %v212 = vadd.f32 %v158, %v211
  %213 = vmatmul.bf16.gmra.mxu0 %v174
  %v214 = vpop.f32.mrf.mxu0
  %v215 = vadd.f32 %v158, %v214
  %v216 = vpop.f32.mrf.mxu0
  %v217 = vadd.f32 %v158, %v216
  %218 = vmatmul.bf16.gmra.mxu0 %v177
  %v219 = vpop.f32.mrf.mxu0
  %v220 = vadd.f32 %v158, %v219
  %v221 = vpop.f32.mrf.mxu0
  %v222 = vadd.f32 %v158, %v221
  %223 = vmatmul.bf16.gmra.mxu0 %v180
  %v224 = vpop.f32.mrf.mxu0
  %v225 = vadd.f32 %v158, %v224
  %v226 = vpop.f32.mrf.mxu0
  %v227 = vadd.f32 %v158, %v226
  %228 = vmatmul.bf16.gmra.mxu0 %v183
  %v229 = vpop.f32.mrf.mxu0
  %v230 = vadd.f32 %v158, %v229
  %v231 = vpop.f32.mrf.mxu0
  %v232 = vadd.f32 %v158, %v231
  %233 = vdwg.mxu0
  %vm234 = vcmask 261120
  %235 = vst.msk [vmem:[%s5] sm:$0xff] %vm234, %v195
  %236 = vst.msk [vmem:[%s5 + $0x8] sm:$0xff] %vm234, %v197
  %237 = vst.msk [vmem:[%s5 + $0x10] sm:$0xff] %vm234, %v200
  %238 = vst.msk [vmem:[%s5 + $0x18] sm:$0xff] %vm234, %v202
  %239 = vst.msk [vmem:[%s5 + $0x20] sm:$0xff] %vm234, %v205
  %240 = vst.msk [vmem:[%s5 + $0x28] sm:$0xff] %vm234, %v207
  %241 = vst.msk [vmem:[%s5 + $0x30] sm:$0xff] %vm234, %v210
  %242 = vst.msk [vmem:[%s5 + $0x38] sm:$0xff] %vm234, %v212
  %243 = vst.msk [vmem:[%s5 + $0x40] sm:$0xff] %vm234, %v215
  %244 = vst.msk [vmem:[%s5 + $0x48] sm:$0xff] %vm234, %v217
  %245 = vst.msk [vmem:[%s5 + $0x50] sm:$0xff] %vm234, %v220
  %246 = vst.msk [vmem:[%s5 + $0x58] sm:$0xff] %vm234, %v222
  %247 = vst.msk [vmem:[%s5 + $0x60] sm:$0xff] %vm234, %v225
  %248 = vst.msk [vmem:[%s5 + $0x68] sm:$0xff] %vm234, %v227
  %249 = vst.msk [vmem:[%s5 + $0x70] sm:$0xff] %vm234, %v230
  %250 = vst.msk [vmem:[%s5 + $0x78] sm:$0xff] %vm234, %v232
  // Predicated region
  $region22: #{gat_model_forward.8} parent=0 // pred_check
    _
  $region23: #{gat_model_forward.8} parent=0 // pred_check_branch
    %252 = sbr.rel (0) target = $region25
  $region24: #{gat_model_forward.8} parent=0 // pred_region
    _
  $region25: #{gat_model_forward.8} parent=0 // pred_fallthru
    _
  // Predicated region
  $region26: #{gat_model_forward.8} parent=0 // pred_check
    _
  $region27: #{gat_model_forward.8} parent=0 // pred_check_branch
    %254 = sbr.rel (0) target = $region29
  $region28: #{gat_model_forward.8} parent=0 // pred_region
    _
  $region29: #{gat_model_forward.8} parent=0 // pred_fallthru
    _

// kernel: gat_model_forward.13
$region0: #{gat_model_forward.13}
  #allocation0 [shape = 'u32[]', space=smem, size = 0x4, offset = 0x4, fixed_abs, tag = 'smem constant byte address 0x4 - core index']
  #allocation1 [shape = 'u32[72,128]{1,0:T(1,128)}', space=vmem, size = 0x9000, scoped, tag = 'internal scratch']
  #allocation2 [shape = 'f32[1,1]{1,0:T(1,128)S(1)}', space=vmem, size = 0x200, scoped, tag = 'scoped memory for gat_model_forward.13']
  %s0 = inlined_call_operand.vmem [shape: f32[128,96], index: 0, kind: input, shape index: {}]
  %s1 = inlined_call_operand.vmem [shape: f32[96,16], index: 1, kind: input, shape index: {}]
  %s2 = inlined_call_operand.vmem [shape: f32[1,16], index: 2, kind: input, shape index: {}]
  %s3 = inlined_call_operand.vmem [shape: f32[16,1], index: 3, kind: input, shape index: {}]
  %s4 = inlined_call_operand.<no memory space> [shape: f32[1,1], index: 4, kind: input, shape index: {}]
  %s5 = inlined_call_operand.vmem [shape: f32[128,1], index: 5, kind: output, shape index: {}]
  %s6 = sld [smem:[#allocation0]]
  $region30: #{gat_model_forward.13} parent=0
    _
  %s8 = ssub.s32 1, %s6
  %s9 = scalar_select 0, %s8, %s6
  %v10 = vstv %s4
  %11 = vst [vmem:[#allocation2] sm:$0x1] %v10
  // Predicated region
  $region2: #{gat_model_forward.13} parent=0 // pred_check
    _
  $region3: #{gat_model_forward.13} parent=0 // pred_check_branch
    %13 = sbr.rel (0) target = $region5
  $region4: #{gat_model_forward.13} parent=0 // pred_region
    _
  $region5: #{gat_model_forward.13} parent=0 // pred_fallthru
    _
  // Predicated region
  $region6: #{gat_model_forward.13} parent=0 // pred_check
    _
  $region7: #{gat_model_forward.13} parent=0 // pred_check_branch
    %15 = sbr.rel (0) target = $region9
  $region8: #{gat_model_forward.13} parent=0 // pred_region
    _
  $region9: #{gat_model_forward.13} parent=0 // pred_fallthru
    _
  // Predicated region
  $region10: #{gat_model_forward.13} parent=0 // pred_check
    _
  $region11: #{gat_model_forward.13} parent=0 // pred_check_branch
    %17 = sbr.rel (0) target = $region13
  $region12: #{gat_model_forward.13} parent=0 // pred_region
    _
  $region13: #{gat_model_forward.13} parent=0 // pred_fallthru
    _
  // Predicated region
  $region14: #{gat_model_forward.13} parent=0 // pred_check
    _
  $region15: #{gat_model_forward.13} parent=0 // pred_check_branch
    %19 = sbr.rel (0) target = $region17
  $region16: #{gat_model_forward.13} parent=0 // pred_region
    _
  $region17: #{gat_model_forward.13} parent=0 // pred_fallthru
    _
  // Predicated region
  $region18: #{gat_model_forward.13} parent=0 // pred_check
    _
  $region19: #{gat_model_forward.13} parent=0 // pred_check_branch
    %21 = sbr.rel (0) target = $region21
  $region20: #{gat_model_forward.13} parent=0 // pred_region
    _
  $region21: #{gat_model_forward.13} parent=0 // pred_fallthru
    _
  %v23 = vld [vmem:[%s0] sm:$0xff]
  %v24 = vld [vmem:[%s0 + $0x8] sm:$0xff]
  %v25 = vld [vmem:[%s0 + $0x10] sm:$0xff]
  %v26 = vld [vmem:[%s0 + $0x18] sm:$0xff]
  %v27 = vld [vmem:[%s0 + $0x20] sm:$0xff]
  %v28 = vld [vmem:[%s0 + $0x28] sm:$0xff]
  %v29 = vld [vmem:[%s0 + $0x30] sm:$0xff]
  %v30 = vld [vmem:[%s0 + $0x38] sm:$0xff]
  %v31 = vld [vmem:[%s0 + $0x40] sm:$0xff]
  %v32 = vld [vmem:[%s0 + $0x48] sm:$0xff]
  %v33 = vld [vmem:[%s0 + $0x50] sm:$0xff]
  %v34 = vld [vmem:[%s0 + $0x58] sm:$0xff]
  %v35 = vld [vmem:[%s0 + $0x60] sm:$0xff]
  %v36 = vld [vmem:[%s0 + $0x68] sm:$0xff]
  %v37 = vld [vmem:[%s0 + $0x70] sm:$0xff]
  %v38 = vld [vmem:[%s0 + $0x78] sm:$0xff]
  %v39 = vpack.c.bf16 %v24, %v23
  %v40 = vpack.c.bf16 %v26, %v25
  %v41 = vpack.c.bf16 %v28, %v27
  %v42 = vpack.c.bf16 %v30, %v29
  %v43 = vpack.c.bf16 %v32, %v31
  %v44 = vpack.c.bf16 %v34, %v33
  %v45 = vpack.c.bf16 %v36, %v35
  %v46 = vpack.c.bf16 %v38, %v37
  %v47 = vld [vmem:[%s1] sm:$0xff]
  %v48 = vld [vmem:[%s1 + $0x8] sm:$0xff]
  %v49 = vld [vmem:[%s1 + $0x10] sm:$0xff]
  %v50 = vld [vmem:[%s1 + $0x18] sm:$0xff]
  %v51 = vld [vmem:[%s1 + $0x20] sm:$0xff]
  %v52 = vld [vmem:[%s1 + $0x28] sm:$0xff]
  %v53 = vld [vmem:[%s1 + $0x30] sm:$0xff]
  %v54 = vld [vmem:[%s1 + $0x38] sm:$0xff]
  %v55 = vld [vmem:[%s1 + $0x40] sm:$0xff]
  %v56 = vld [vmem:[%s1 + $0x48] sm:$0xff]
  %v57 = vld [vmem:[%s1 + $0x50] sm:$0xff]
  %v58 = vld [vmem:[%s1 + $0x58] sm:$0xff]
  %v59 = vpack.c.bf16 %v48, %v47
  %v60 = vpack.c.bf16 %v50, %v49
  %v61 = vpack.c.bf16 %v52, %v51
  %v62 = vpack.c.bf16 %v54, %v53
  %v63 = vpack.c.bf16 %v56, %v55
  %v64 = vpack.c.bf16 %v58, %v57
  %v65 = vld [vmem:[%s2] sm:$0x1]
  %v67 = vperm.slane %v65, 0
  %vm69 = vcmask 785408
  %v71 = vsel %vm69, %v39, 0
  %v74 = vsel %vm69, %v40, 0
  %v77 = vsel %vm69, %v41, 0
  %v80 = vsel %vm69, %v42, 0
  %v83 = vsel %vm69, %v43, 0
  %v86 = vsel %vm69, %v44, 0
  %v89 = vsel %vm69, %v45, 0
  %v92 = vsel %vm69, %v46, 0
  %94 = vmatpush.bf16.msra.mxu0 0
  %95 = vmatpush.bf16.msra.mxu0 0
  %96 = vmatpush.bf16.msra.mxu0 %v64
  %97 = vmatpush.bf16.msra.mxu0 %v63
  %98 = vmatpush.bf16.msra.mxu0 %v62
  %99 = vmatpush.bf16.msra.mxu0 %v61
  %100 = vmatpush.bf16.msra.mxu0 %v60
  %101 = vmatpush.bf16.msra.mxu0 %v59
  %102 = vmatmul.bf16.gmra.mxu0 %v71
  %v103 = vpop.f32.mrf.mxu0
  %v104 = vadd.f32 %v67, %v103
  %v105 = vpop.f32.mrf.mxu0
  %v106 = vadd.f32 %v67, %v105
  %107 = vmatmul.bf16.gmra.mxu0 %v74
  %v108 = vpop.f32.mrf.mxu0
  %v109 = vadd.f32 %v67, %v108
  %v110 = vpop.f32.mrf.mxu0
  %v111 = vadd.f32 %v67, %v110
  %112 = vmatmul.bf16.gmra.mxu0 %v77
  %v113 = vpop.f32.mrf.mxu0
  %v114 = vadd.f32 %v67, %v113
  %v115 = vpop.f32.mrf.mxu0
  %v116 = vadd.f32 %v67, %v115
  %117 = vmatmul.bf16.gmra.mxu0 %v80
  %v118 = vpop.f32.mrf.mxu0
  %v119 = vadd.f32 %v67, %v118
  %v120 = vpop.f32.mrf.mxu0
  %v121 = vadd.f32 %v67, %v120
  %122 = vmatmul.bf16.gmra.mxu0 %v83
  %v123 = vpop.f32.mrf.mxu0
  %v124 = vadd.f32 %v67, %v123
  %v125 = vpop.f32.mrf.mxu0
  %v126 = vadd.f32 %v67, %v125
  %127 = vmatmul.bf16.gmra.mxu0 %v86
  %v128 = vpop.f32.mrf.mxu0
  %v129 = vadd.f32 %v67, %v128
  %v130 = vpop.f32.mrf.mxu0
  %v131 = vadd.f32 %v67, %v130
  %132 = vmatmul.bf16.gmra.mxu0 %v89
  %v133 = vpop.f32.mrf.mxu0
  %v134 = vadd.f32 %v67, %v133
  %v135 = vpop.f32.mrf.mxu0
  %v136 = vadd.f32 %v67, %v135
  %137 = vmatmul.bf16.gmra.mxu0 %v92
  %v138 = vpop.f32.mrf.mxu0
  %v139 = vadd.f32 %v67, %v138
  %v140 = vpop.f32.mrf.mxu0
  %v141 = vadd.f32 %v67, %v140
  %142 = vdwg.mxu0
  %v143 = vmax.f32 %v104, 0.0
  %v144 = vmax.f32 %v106, 0.0
  %v145 = vmax.f32 %v109, 0.0
  %v146 = vmax.f32 %v111, 0.0
  %v147 = vmax.f32 %v114, 0.0
  %v148 = vmax.f32 %v116, 0.0
  %v149 = vmax.f32 %v119, 0.0
  %v150 = vmax.f32 %v121, 0.0
  %v151 = vmax.f32 %v124, 0.0
  %v152 = vmax.f32 %v126, 0.0
  %v153 = vmax.f32 %v129, 0.0
  %v154 = vmax.f32 %v131, 0.0
  %v155 = vmax.f32 %v134, 0.0
  %v156 = vmax.f32 %v136, 0.0
  %v157 = vmax.f32 %v139, 0.0
  %v158 = vmax.f32 %v141, 0.0
  %v159 = vpack.c.bf16 %v144, %v143
  %v160 = vpack.c.bf16 %v146, %v145
  %v161 = vpack.c.bf16 %v148, %v147
  %v162 = vpack.c.bf16 %v150, %v149
  %v163 = vpack.c.bf16 %v152, %v151
  %v164 = vpack.c.bf16 %v154, %v153
  %v165 = vpack.c.bf16 %v156, %v155
  %v166 = vpack.c.bf16 %v158, %v157
  %v167 = vld [vmem:[%s3] sm:$0xff]
  %v168 = vld [vmem:[%s3 + $0x8] sm:$0xff]
  %v169 = vpack.c.bf16 %v168, %v167
  %v170 = vld [vmem:[#allocation2] sm:$0x1]
  %v172 = vperm.slane %v170, 0
  %vm174 = vcmask 130048
  %v176 = vsel %vm174, %v159, 0
  %v179 = vsel %vm174, %v160, 0
  %v182 = vsel %vm174, %v161, 0
  %v185 = vsel %vm174, %v162, 0
  %v188 = vsel %vm174, %v163, 0
  %v191 = vsel %vm174, %v164, 0
  %v194 = vsel %vm174, %v165, 0
  %v197 = vsel %vm174, %v166, 0
  %199 = vmatpush.bf16.msra.mxu0 0
  %200 = vmatpush.bf16.msra.mxu0 0
  %201 = vmatpush.bf16.msra.mxu0 0
  %202 = vmatpush.bf16.msra.mxu0 0
  %203 = vmatpush.bf16.msra.mxu0 0
  %204 = vmatpush.bf16.msra.mxu0 0
  %205 = vmatpush.bf16.msra.mxu0 0
  %206 = vmatpush.bf16.msra.mxu0 %v169
  %207 = vmatmul.bf16.gmra.mxu0 %v176
  %v208 = vpop.f32.mrf.mxu0
  %v209 = vadd.f32 %v172, %v208
  %v210 = vpop.f32.mrf.mxu0
  %v211 = vadd.f32 %v172, %v210
  %212 = vmatmul.bf16.gmra.mxu0 %v179
  %v213 = vpop.f32.mrf.mxu0
  %v214 = vadd.f32 %v172, %v213
  %v215 = vpop.f32.mrf.mxu0
  %v216 = vadd.f32 %v172, %v215
  %217 = vmatmul.bf16.gmra.mxu0 %v182
  %v218 = vpop.f32.mrf.mxu0
  %v219 = vadd.f32 %v172, %v218
  %v220 = vpop.f32.mrf.mxu0
  %v221 = vadd.f32 %v172, %v220
  %222 = vmatmul.bf16.gmra.mxu0 %v185
  %v223 = vpop.f32.mrf.mxu0
  %v224 = vadd.f32 %v172, %v223
  %v225 = vpop.f32.mrf.mxu0
  %v226 = vadd.f32 %v172, %v225
  %227 = vmatmul.bf16.gmra.mxu0 %v188
  %v228 = vpop.f32.mrf.mxu0
  %v229 = vadd.f32 %v172, %v228
  %v230 = vpop.f32.mrf.mxu0
  %v231 = vadd.f32 %v172, %v230
  %232 = vmatmul.bf16.gmra.mxu0 %v191
  %v233 = vpop.f32.mrf.mxu0
  %v234 = vadd.f32 %v172, %v233
  %v235 = vpop.f32.mrf.mxu0
  %v236 = vadd.f32 %v172, %v235
  %237 = vmatmul.bf16.gmra.mxu0 %v194
  %v238 = vpop.f32.mrf.mxu0
  %v239 = vadd.f32 %v172, %v238
  %v240 = vpop.f32.mrf.mxu0
  %v241 = vadd.f32 %v172, %v240
  %242 = vmatmul.bf16.gmra.mxu0 %v197
  %v243 = vpop.f32.mrf.mxu0
  %v244 = vadd.f32 %v172, %v243
  %v245 = vpop.f32.mrf.mxu0
  %v246 = vadd.f32 %v172, %v245
  %247 = vdwg.mxu0
  %vm248 = vcmask 7168
  %249 = vst.msk [vmem:[%s5] sm:$0xff] %vm248, %v209
  %250 = vst.msk [vmem:[%s5 + $0x8] sm:$0xff] %vm248, %v211
  %251 = vst.msk [vmem:[%s5 + $0x10] sm:$0xff] %vm248, %v214
  %252 = vst.msk [vmem:[%s5 + $0x18] sm:$0xff] %vm248, %v216
  %253 = vst.msk [vmem:[%s5 + $0x20] sm:$0xff] %vm248, %v219
  %254 = vst.msk [vmem:[%s5 + $0x28] sm:$0xff] %vm248, %v221
  %255 = vst.msk [vmem:[%s5 + $0x30] sm:$0xff] %vm248, %v224
  %256 = vst.msk [vmem:[%s5 + $0x38] sm:$0xff] %vm248, %v226
  %257 = vst.msk [vmem:[%s5 + $0x40] sm:$0xff] %vm248, %v229
  %258 = vst.msk [vmem:[%s5 + $0x48] sm:$0xff] %vm248, %v231
  %259 = vst.msk [vmem:[%s5 + $0x50] sm:$0xff] %vm248, %v234
  %260 = vst.msk [vmem:[%s5 + $0x58] sm:$0xff] %vm248, %v236
  %261 = vst.msk [vmem:[%s5 + $0x60] sm:$0xff] %vm248, %v239
  %262 = vst.msk [vmem:[%s5 + $0x68] sm:$0xff] %vm248, %v241
  %263 = vst.msk [vmem:[%s5 + $0x70] sm:$0xff] %vm248, %v244
  %264 = vst.msk [vmem:[%s5 + $0x78] sm:$0xff] %vm248, %v246
  // Predicated region
  $region22: #{gat_model_forward.13} parent=0 // pred_check
    _
  $region23: #{gat_model_forward.13} parent=0 // pred_check_branch
    %266 = sbr.rel (0) target = $region25
  $region24: #{gat_model_forward.13} parent=0 // pred_region
    _
  $region25: #{gat_model_forward.13} parent=0 // pred_fallthru
    _
  // Predicated region
  $region26: #{gat_model_forward.13} parent=0 // pred_check
    _
  $region27: #{gat_model_forward.13} parent=0 // pred_check_branch
    %268 = sbr.rel (0) target = $region29
  $region28: #{gat_model_forward.13} parent=0 // pred_region
    _
  $region29: #{gat_model_forward.13} parent=0 // pred_fallthru
    _

</llo_original>
